<compile_context>
chip_gen: v7x
topology: tpu7x:2x2x1
jax: 0.10.0
libtpu: 0.0.40
codegen_flags: <defaults>
</compile_context>

<pallas_src>
import functools
import math

import jax
import jax.numpy as jnp
from jax import lax
from jax.experimental import pallas as pl
from jax.experimental.pallas import tpu as pltpu


# -----------------------------------------------------------------------------
# Fused flash-MHA kernel: QKV 1x1 conv -> online-softmax attention -> merge conv
# -----------------------------------------------------------------------------
def _flash_mha_kernel(xq_ref, xk_ref, xv_ref, wqkv_ref, bqkv_ref, wm_ref, bm_ref,
                      o_ref, q_scr, k_scr, v_scr, m_scr, l_scr, acc_scr,
                      *, n_heads, head_dim, nk_real, persist_kv, mask_keys,
                      mxu_dtype):
    qi = pl.program_id(1)
    ki = pl.program_id(2)
    last_k = pl.num_programs(2) - 1
    TQ = xq_ref.shape[-1]
    TK = xk_ref.shape[-1]
    D = head_dim

    def to_mxu(a):
        if mxu_dtype is None or a.dtype == mxu_dtype:
            return a
        return a.astype(mxu_dtype)

    # ---- new query tile: project Q once (head permutation + 1/sqrt(D) already
    # folded into the weights) and reset the online-softmax state.
    @pl.when(ki == 0)
    def _():
        q = jnp.dot(wqkv_ref[0], to_mxu(xq_ref[0]),
                    preferred_element_type=jnp.float32) + bqkv_ref[0]
        q_scr[...] = q.astype(q_scr.dtype)
        m_scr[...] = jnp.full(m_scr.shape, -jnp.inf, m_scr.dtype)
        l_scr[...] = jnp.zeros(l_scr.shape, l_scr.dtype)
        acc_scr[...] = jnp.zeros(acc_scr.shape, acc_scr.dtype)

    # ---- K/V projection for the current key tile.  With persist_kv the full
    # projected K/V is built once (during the qi == 0 sweep) into scratch that
    # survives grid steps; later query tiles read it back instead of redoing
    # 2*d_model^2*TK MXU work per step.
    kcol = pl.multiple_of(ki * TK, TK) if persist_kv else 0

    def project_kv():
        k = jnp.dot(wqkv_ref[1], to_mxu(xk_ref[0]),
                    preferred_element_type=jnp.float32) + bqkv_ref[1]
        v = jnp.dot(wqkv_ref[2], to_mxu(xv_ref[0]),
                    preferred_element_type=jnp.float32) + bqkv_ref[2]
        k_scr[:, pl.ds(kcol, TK)] = k.astype(k_scr.dtype)
        v_scr[:, pl.ds(kcol, TK)] = v.astype(v_scr.dtype)

    if persist_kv:
        @pl.when(qi == 0)
        def _():
            project_kv()
    else:
        project_kv()

    # ---- mask for zero-padded key columns (static no-op when Nk % TK == 0).
    if mask_keys:
        key_idx = ki * TK + lax.broadcasted_iota(jnp.int32, (TK, 1), 0)
        key_ok = key_idx < nk_real
    else:
        key_ok = None

    # ---- per-head online-softmax update.  Scores are laid out (key, query) so the
    # softmax statistics are lane-dense (1, TQ) rows (no transposes anywhere).
    # NOTE: the QK^T / PV contractions have depth head_dim (< 128), so they use
    # only part of the MXU by construction; the QKV / merge projections (depth
    # d_model) carry the MXU efficiency.
    def head_body(h, carry):
        r0 = pl.multiple_of(h * D, D)
        qh = q_scr[pl.ds(r0, D), :]                    # (D, TQ)
        kh = k_scr[pl.ds(r0, D), pl.ds(kcol, TK)]      # (D, TK)
        vh = v_scr[pl.ds(r0, D), pl.ds(kcol, TK)]      # (D, TK)

        s = lax.dot_general(to_mxu(kh), to_mxu(qh), (((0,), (0,)), ((), ())),
                            preferred_element_type=jnp.float32)       # (TK, TQ)
        if key_ok is not None:
            s = jnp.where(key_ok, s, -1e30)

        m_old = m_scr[pl.ds(h, 1), :]                  # (1, TQ)
        l_old = l_scr[pl.ds(h, 1), :]
        m_new = jnp.maximum(m_old, jnp.max(s, axis=0, keepdims=True))
        alpha = jnp.exp(m_old - m_new)
        p = jnp.exp(s - m_new)                         # (TK, TQ), f32 softmax stats
        m_scr[pl.ds(h, 1), :] = m_new
        l_scr[pl.ds(h, 1), :] = alpha * l_old + jnp.sum(p, axis=0, keepdims=True)

        pv = lax.dot_general(to_mxu(vh), to_mxu(p), (((1,), (0,)), ((), ())),
                             preferred_element_type=jnp.float32)      # (D, TQ)
        acc_scr[pl.ds(r0, D), :] = alpha * acc_scr[pl.ds(r0, D), :] + pv
        return carry

    lax.fori_loop(0, n_heads, head_body, 0, unroll=True)

    # ---- last key tile: normalize and apply the merge 1x1 conv, then store the
    # lane-dense (d_model, TQ) output block.
    @pl.when(ki == last_k)
    def _():
        def norm_body(h, carry):
            r0 = pl.multiple_of(h * D, D)
            inv_l = pl.reciprocal(l_scr[pl.ds(h, 1), :], approx=True)   # EUP slot
            acc_scr[pl.ds(r0, D), :] = acc_scr[pl.ds(r0, D), :] * inv_l
            return carry
        lax.fori_loop(0, n_heads, norm_body, 0, unroll=True)

        out = jnp.dot(wm_ref[...], to_mxu(acc_scr[...]),
                      preferred_element_type=jnp.float32) + bm_ref[...]
        o_ref[0] = out.astype(o_ref.dtype)


def _round_up(x, m):
    return ((x + m - 1) // m) * m


def attention_forward(xq, xk, xv, w_qkv, b_qkv, w_merge, b_merge, *,
                      n_heads, head_dim, compute_dtype=jnp.bfloat16,
                      tq=256, tk=512, parallel_q=None):
    """xq: (B, d_model, Nq); xk, xv: (B, d_model, Nk) -> (B, d_model, Nq)."""
    B, d_model, Nq = xq.shape
    Nk = xk.shape[-1]
    assert xk.shape == (B, d_model, Nk) and xv.shape == (B, d_model, Nk)
    assert tq % 128 == 0 and tk % 128 == 0, "tile sizes must stay lane-aligned"

    # Lane-dense tiling (pad the sequence dims to multiples of 128 / the tile).
    TQ = min(tq, _round_up(Nq, 128))
    TK = min(tk, _round_up(Nk, 128))
    Nq_p = _round_up(Nq, TQ)
    Nk_p = _round_up(Nk, TK)
    if Nq_p != Nq:
        xq = jnp.pad(xq, ((0, 0), (0, 0), (0, Nq_p - Nq)))
    if Nk_p != Nk:
        xk = jnp.pad(xk, ((0, 0), (0, 0), (0, Nk_p - Nk)))
        xv = jnp.pad(xv, ((0, 0), (0, 0), (0, Nk_p - Nk)))
    n_q, n_k = Nq_p // TQ, Nk_p // TK

    # Megacore strategy: by default shard the batch axis across cores and keep the
    # query-tile axis "arbitrary" so the persistent K/V-projection scratch (filled
    # on the qi == 0 sweep) stays sound.  For B == 1 (or on request) switch to a
    # query-tile-parallel grid and recompute the per-tile K/V projection instead
    # (a cross-q-tile scratch is unsafe once the q axis may be split across cores).
    if parallel_q is None:
        parallel_q = (B == 1)
    persist_kv = (not parallel_q) and n_q > 1
    kv_width = Nk_p if persist_kv else TK

    # q/k/v scratch dtype: the compute dtype when per-head sublane slices stay
    # aligned (bf16 needs head_dim % 16 == 0), else f32 (still correct, just slower).
    if compute_dtype is None:
        qkv_dtype = jnp.float32
    else:
        pack = 4 // jnp.dtype(compute_dtype).itemsize
        qkv_dtype = compute_dtype if head_dim % (8 * pack) == 0 else jnp.float32

    if persist_kv:
        # For qi > 0 the kernel reads K/V from scratch; collapsing the block index
        # to a constant lets Pallas skip the (unused) HBM fetches on those steps.
        xk_map = lambda b, qi, ki: (b, 0, jnp.where(qi == 0, ki, 0))
    else:
        xk_map = lambda b, qi, ki: (b, 0, ki)

    kern = functools.partial(
        _flash_mha_kernel, n_heads=n_heads, head_dim=head_dim, nk_real=Nk,
        persist_kv=persist_kv, mask_keys=(Nk_p != Nk), mxu_dtype=compute_dtype)

    # Explicit VMEM budget (v7x has 64 MiB physical; v5e/v6e default scoped limit
    # is 16/32 MiB). Double-buffered blocks + resident weights + scratch + slack.
    in_b = jnp.dtype(xq.dtype).itemsize
    w_b = jnp.dtype(w_qkv.dtype).itemsize
    s_b = jnp.dtype(qkv_dtype).itemsize
    est = 2 * d_model * (TQ + 2 * TK) * in_b                 # x blocks (double buffered)
    est += 2 * d_model * TQ * in_b                           # out block (double buffered)
    est += 2 * 4 * d_model * d_model * w_b                   # weights (double buffered)
    est += 2 * 4 * d_model * 128 * 4                         # biases (lane-padded)
    est += d_model * TQ * s_b + 2 * d_model * kv_width * s_b  # q / k / v scratch
    est += d_model * TQ * 4 + 2 * max(n_heads, 8) * TQ * 4    # acc + m/l scratch
    vmem_limit = int(min(112 * 2 ** 20, max(32 * 2 ** 20, 2 * est)))

    out = pl.pallas_call(
        kern,
        out_shape=jax.ShapeDtypeStruct((B, d_model, Nq_p), xq.dtype),
        grid_spec=pltpu.PrefetchScalarGridSpec(
            num_scalar_prefetch=0,
            grid=(B, n_q, n_k),
            in_specs=[
                pl.BlockSpec((1, d_model, TQ), lambda b, qi, ki: (b, 0, qi)),
                pl.BlockSpec((1, d_model, TK), xk_map),
                pl.BlockSpec((1, d_model, TK), xk_map),
                # Weights/biases: constant block index -> fetched once, VMEM-resident.
                # TODO(synk): pipeline_mode=pl.Buffered(1) would drop their second
                # buffer (~MiB of headroom on v7x); left at the default for safety.
                pl.BlockSpec((3, d_model, d_model), lambda b, qi, ki: (0, 0, 0)),
                pl.BlockSpec((3, d_model, 1), lambda b, qi, ki: (0, 0, 0)),
                pl.BlockSpec((d_model, d_model), lambda b, qi, ki: (0, 0)),
                pl.BlockSpec((d_model, 1), lambda b, qi, ki: (0, 0)),
            ],
            out_specs=pl.BlockSpec((1, d_model, TQ), lambda b, qi, ki: (b, 0, qi)),
            scratch_shapes=[
                pltpu.VMEM((d_model, TQ), qkv_dtype),         # projected Q (current tile)
                pltpu.VMEM((d_model, kv_width), qkv_dtype),   # projected K
                pltpu.VMEM((d_model, kv_width), qkv_dtype),   # projected V
                pltpu.VMEM((n_heads, TQ), jnp.float32),       # online-softmax max
                pltpu.VMEM((n_heads, TQ), jnp.float32),       # online-softmax denom
                pltpu.VMEM((d_model, TQ), jnp.float32),       # f32 output accumulator
            ],
        ),
        compiler_params=pltpu.CompilerParams(
            dimension_semantics=("parallel",
                                 "parallel" if parallel_q else "arbitrary",
                                 "arbitrary"),
            vmem_limit_bytes=vmem_limit,
        ),
    )(xq, xk, xv, w_qkv, b_qkv, w_merge, b_merge)

    return out[:, :, :Nq] if Nq_p != Nq else out


# -----------------------------------------------------------------------------
# Module wrapper: parameter init + weight folding in plain JAX, hot path in Pallas
# -----------------------------------------------------------------------------
class AttentionPallas:
    def __init__(self, n_heads: int, d_model: int, key, compute_dtype=jnp.bfloat16):
        assert d_model % n_heads == 0
        self.n_heads = n_heads
        self.head_dim = d_model // n_heads
        self.d_model = d_model
        self.compute_dtype = compute_dtype   # MXU operand dtype; accumulation stays f32

        # PyTorch Conv1d(kernel_size=1) default init bound: 1/sqrt(fan_in).
        bound = 1.0 / math.sqrt(d_model)
        keys = jax.random.split(key, 8)

        def init_conv(kw, kb):
            w = jax.random.uniform(kw, (d_model, d_model), jnp.float32, -bound, bound)
            b = jax.random.uniform(kb, (d_model,), jnp.float32, -bound, bound)
            return w, b

        wq, bq = init_conv(keys[0], keys[1])
        wk, bk = init_conv(keys[2], keys[3])
        wv, bv = init_conv(keys[4], keys[5])
        wm, bm = init_conv(keys[6], keys[7])
        self.raw = dict(wq=wq, bq=bq, wk=wk, bk=bk, wv=wv, bv=bv, wm=wm, bm=bm)

        # Fold layout + scale into the weights (free at init time):
        #  * torch's .view(b, D, H, n) maps channel c -> (d = c // H, h = c % H); the
        #    kernel wants head-major channels c' = h*D + d, i.e. perm[h*D+d] = d*H + h.
        #  * 1/sqrt(head_dim) folded into the Q projection weight/bias.
        #  * weights pre-cast once to the MXU compute dtype; biases stay f32 (they are
        #    added to the f32 accumulator).
        H, D = n_heads, self.head_dim
        perm = jnp.arange(d_model).reshape(D, H).T.reshape(-1)
        scale = 1.0 / math.sqrt(D)
        w_dt = jnp.float32 if compute_dtype is None else compute_dtype
        self.w_qkv = jnp.stack(
            [wq[perm, :] * scale, wk[perm, :], wv[perm, :]]).astype(w_dt)      # (3, dm, dm)
        self.b_qkv = jnp.stack([bq[perm] * scale, bk[perm], bv[perm]])[:, :, None]  # f32
        self.w_merge = wm[:, perm].astype(w_dt)      # merge-conv input cols head-major
        self.b_merge = bm[:, None]                   # (dm, 1), f32

    def __call__(self, query, key, value, **kwargs):
        return attention_forward(query, key, value, self.w_qkv, self.b_qkv,
                                 self.w_merge, self.b_merge,
                                 n_heads=self.n_heads, head_dim=self.head_dim,
                                 compute_dtype=self.compute_dtype, **kwargs)

    # Pure-JAX f32 reference mirroring the PyTorch forward (for correctness checks).
    def reference(self, query, key, value):
        p = self.raw
        B = query.shape[0]
        H, D = self.n_heads, self.head_dim

        def conv(w, b, x):
            return jnp.einsum('oc,bcn->bon', w, x) + b[None, :, None]

        q = conv(p['wq'], p['bq'], query).reshape(B, D, H, -1)
        k = conv(p['wk'], p['bk'], key).reshape(B, D, H, -1)
        v = conv(p['wv'], p['bv'], value).reshape(B, D, H, -1)
        s = jnp.einsum('bdhn,bdhm->bhnm', q, k) / math.sqrt(D)
        a = jnp.einsum('bhnm,bdhm->bdhn', jax.nn.softmax(s, axis=-1), v)
        return conv(p['wm'], p['bm'], a.reshape(B, self.d_model, -1))


if __name__ == "__main__":
    root = jax.random.PRNGKey(0)
    k_params, k_q, k_k, k_v = jax.random.split(root, 4)

    # Case 1: bf16 MXU operands (default), aligned shapes (N % 128 == 0,
    # head_dim = 16), multiple query/key tiles -> exercises the persistent K/V
    # projection scratch + batch-parallel megacore path.
    n_heads, d_model, B, Nq, Nk = 4, 64, 2, 256, 384
    module = AttentionPallas(n_heads, d_model, k_params)
    q = jax.random.normal(k_q, (B, d_model, Nq), jnp.float32)
    k = jax.random.normal(k_k, (B, d_model, Nk), jnp.float32)
    v = jax.random.normal(k_v, (B, d_model, Nk), jnp.float32)
    out = module(q, k, v, tq=128, tk=128)
    jax.block_until_ready(out)
    assert out.shape == (B, d_model, Nq)
    ref = module.reference(q, k, v)
    err1 = float(jnp.max(jnp.abs(out - ref)))
    assert jnp.allclose(out, ref, rtol=5e-2, atol=5e-2), err1   # bf16 operand tolerance

    # Case 2: f32 path, B = 1 and non-128-multiple N -> exercises the
    # query-tile-parallel grid (per-step K/V projection), query padding and
    # key-padding masking.
    module32 = AttentionPallas(n_heads, d_model, k_params, compute_dtype=None)
    q2 = jax.random.normal(k_q, (1, d_model, 200), jnp.float32)
    k2 = jax.random.normal(k_k, (1, d_model, 200), jnp.float32)
    v2 = jax.random.normal(k_v, (1, d_model, 200), jnp.float32)
    out2 = module32(q2, k2, v2, tq=128, tk=128)
    jax.block_until_ready(out2)
    assert out2.shape == (1, d_model, 200)
    ref2 = module32.reference(q2, k2, v2)
    err2 = float(jnp.max(jnp.abs(out2 - ref2)))
    assert jnp.allclose(out2, ref2, rtol=1e-2, atol=1e-2), err2

    print("KERNEL_OK")
</pallas_src>

<mosaic_0001>
module attributes {stable_mosaic.version = 11 : i64} {
  func.func @_flash_mha_kernel(%arg0: i32, %arg1: i32, %arg2: i32, %arg3: memref<1x64x128xf32, #tpu.memory_space<vmem>>, %arg4: memref<1x64x128xf32, #tpu.memory_space<vmem>>, %arg5: memref<1x64x128xf32, #tpu.memory_space<vmem>>, %arg6: memref<3x64x64xbf16, #tpu.memory_space<vmem>>, %arg7: memref<3x64x1xf32, #tpu.memory_space<vmem>>, %arg8: memref<64x64xbf16, #tpu.memory_space<vmem>>, %arg9: memref<64x1xf32, #tpu.memory_space<vmem>>, %arg10: memref<1x64x128xf32, #tpu.memory_space<vmem>>, %arg11: memref<64x128xbf16, #tpu.memory_space<vmem>>, %arg12: memref<64x384xbf16, #tpu.memory_space<vmem>>, %arg13: memref<64x384xbf16, #tpu.memory_space<vmem>>, %arg14: memref<4x128xf32, #tpu.memory_space<vmem>>, %arg15: memref<4x128xf32, #tpu.memory_space<vmem>>, %arg16: memref<64x128xf32, #tpu.memory_space<vmem>>) attributes {dimension_semantics = [#tpu.dimension_semantics<parallel>, #tpu.dimension_semantics<arbitrary>, #tpu.dimension_semantics<arbitrary>], iteration_bounds = array<i64: 2, 2, 3>, scalar_prefetch = 0 : i64, scratch_operands = 6 : i64, tpu.core_type = #tpu.core_type<tc>, window_params = [{transform_indices = @transform_0, window_bounds = array<i64: 1, 64, 128>}, {transform_indices = @transform_1, window_bounds = array<i64: 1, 64, 128>}, {transform_indices = @transform_2, window_bounds = array<i64: 1, 64, 128>}, {pipeline_mode = #tpu.pipeline_mode<synchronous>, transform_indices = @transform_3, window_bounds = array<i64: 3, 64, 64>}, {pipeline_mode = #tpu.pipeline_mode<synchronous>, transform_indices = @transform_4, window_bounds = array<i64: 3, 64, 1>}, {pipeline_mode = #tpu.pipeline_mode<synchronous>, transform_indices = @transform_5, window_bounds = array<i64: 64, 64>}, {pipeline_mode = #tpu.pipeline_mode<synchronous>, transform_indices = @transform_6, window_bounds = array<i64: 64, 1>}, {transform_indices = @transform_7, window_bounds = array<i64: 1, 64, 128>}]} {
    %c0_i32 = arith.constant 0 : i32
    %0 = arith.cmpi eq, %arg2, %c0_i32 : i32
    %1 = arith.extui %0 : i1 to i32
    %c0_i32_0 = arith.constant 0 : i32
    %2 = arith.cmpi ne, %1, %c0_i32_0 : i32
    scf.if %2 {
      %c0_51 = arith.constant 0 : index
      %c0_52 = arith.constant 0 : index
      %c0_53 = arith.constant 0 : index
      %171 = vector.load %arg6[%c0_51, %c0_52, %c0_53] : memref<3x64x64xbf16, #tpu.memory_space<vmem>>, vector<1x64x64xbf16>
      %172 = vector.shape_cast %171 : vector<1x64x64xbf16> to vector<64x64xbf16>
      %c0_54 = arith.constant 0 : index
      %c0_55 = arith.constant 0 : index
      %c0_56 = arith.constant 0 : index
      %173 = vector.load %arg3[%c0_54, %c0_55, %c0_56] : memref<1x64x128xf32, #tpu.memory_space<vmem>>, vector<1x64x128xf32>
      %174 = vector.shape_cast %173 : vector<1x64x128xf32> to vector<64x128xf32>
      %175 = arith.truncf %174 : vector<64x128xf32> to vector<64x128xbf16>
      %cst_57 = arith.constant dense<0.000000e+00> : vector<64x128xf32>
      %176 = tpu.matmul %172, %175, %cst_57 {dimension_numbers = #tpu.dot_dimension_numbers<[1], [0], [0], [1], [0, 0, 1, 1], [], []>} : vector<64x64xbf16>, vector<64x128xbf16>, vector<64x128xf32> -> vector<64x128xf32>
      %c0_58 = arith.constant 0 : index
      %c0_59 = arith.constant 0 : index
      %c0_60 = arith.constant 0 : index
      %177 = vector.load %arg7[%c0_58, %c0_59, %c0_60] : memref<3x64x1xf32, #tpu.memory_space<vmem>>, vector<1x64x1xf32>
      %178 = vector.shape_cast %177 : vector<1x64x1xf32> to vector<64x1xf32>
      %179 = vector.broadcast %178 : vector<64x1xf32> to vector<64x128xf32>
      %180 = arith.addf %176, %179 : vector<64x128xf32>
      %181 = arith.truncf %180 : vector<64x128xf32> to vector<64x128xbf16>
      %c0_61 = arith.constant 0 : index
      %c0_62 = arith.constant 0 : index
      %182 = vector.load %arg11[%c0_61, %c0_62] : memref<64x128xbf16, #tpu.memory_space<vmem>>, vector<64x128xbf16>
      tpu.vector_store %arg11[%c0_61, %c0_62], %181 {strides = array<i32>} : memref<64x128xbf16, #tpu.memory_space<vmem>>, vector<64x128xbf16>,
      %cst_63 = arith.constant 0xFF800000 : f32
      %183 = vector.broadcast %cst_63 : f32 to vector<4x128xf32>
      %c0_64 = arith.constant 0 : index
      %c0_65 = arith.constant 0 : index
      %184 = vector.load %arg14[%c0_64, %c0_65] : memref<4x128xf32, #tpu.memory_space<vmem>>, vector<4x128xf32>
      tpu.vector_store %arg14[%c0_64, %c0_65], %183 {strides = array<i32>} : memref<4x128xf32, #tpu.memory_space<vmem>>, vector<4x128xf32>,
      %cst_66 = arith.constant 0.000000e+00 : f32
      %185 = vector.broadcast %cst_66 : f32 to vector<4x128xf32>
      %c0_67 = arith.constant 0 : index
      %c0_68 = arith.constant 0 : index
      %186 = vector.load %arg15[%c0_67, %c0_68] : memref<4x128xf32, #tpu.memory_space<vmem>>, vector<4x128xf32>
      tpu.vector_store %arg15[%c0_67, %c0_68], %185 {strides = array<i32>} : memref<4x128xf32, #tpu.memory_space<vmem>>, vector<4x128xf32>,
      %cst_69 = arith.constant 0.000000e+00 : f32
      %187 = vector.broadcast %cst_69 : f32 to vector<64x128xf32>
      %c0_70 = arith.constant 0 : index
      %c0_71 = arith.constant 0 : index
      %188 = vector.load %arg16[%c0_70, %c0_71] : memref<64x128xf32, #tpu.memory_space<vmem>>, vector<64x128xf32>
      tpu.vector_store %arg16[%c0_70, %c0_71], %187 {strides = array<i32>} : memref<64x128xf32, #tpu.memory_space<vmem>>, vector<64x128xf32>,
    } else {
    }
    %c128_i32 = arith.constant 128 : i32
    %3 = arith.muli %arg2, %c128_i32 : i32
    %4 = tpu.assume_multiple %3, 128 : i32
    %c0_i32_1 = arith.constant 0 : i32
    %5 = arith.cmpi eq, %arg1, %c0_i32_1 : i32
    %6 = arith.extui %5 : i1 to i32
    %c0_i32_2 = arith.constant 0 : i32
    %7 = arith.cmpi ne, %6, %c0_i32_2 : i32
    scf.if %7 {
      %c1 = arith.constant 1 : index
      %c0_51 = arith.constant 0 : index
      %c0_52 = arith.constant 0 : index
      %171 = vector.load %arg6[%c1, %c0_51, %c0_52] : memref<3x64x64xbf16, #tpu.memory_space<vmem>>, vector<1x64x64xbf16>
      %172 = vector.shape_cast %171 : vector<1x64x64xbf16> to vector<64x64xbf16>
      %c0_53 = arith.constant 0 : index
      %c0_54 = arith.constant 0 : index
      %c0_55 = arith.constant 0 : index
      %173 = vector.load %arg4[%c0_53, %c0_54, %c0_55] : memref<1x64x128xf32, #tpu.memory_space<vmem>>, vector<1x64x128xf32>
      %174 = vector.shape_cast %173 : vector<1x64x128xf32> to vector<64x128xf32>
      %175 = arith.truncf %174 : vector<64x128xf32> to vector<64x128xbf16>
      %cst_56 = arith.constant dense<0.000000e+00> : vector<64x128xf32>
      %176 = tpu.matmul %172, %175, %cst_56 {dimension_numbers = #tpu.dot_dimension_numbers<[1], [0], [0], [1], [0, 0, 1, 1], [], []>} : vector<64x64xbf16>, vector<64x128xbf16>, vector<64x128xf32> -> vector<64x128xf32>
      %c1_57 = arith.constant 1 : index
      %c0_58 = arith.constant 0 : index
      %c0_59 = arith.constant 0 : index
      %177 = vector.load %arg7[%c1_57, %c0_58, %c0_59] : memref<3x64x1xf32, #tpu.memory_space<vmem>>, vector<1x64x1xf32>
      %178 = vector.shape_cast %177 : vector<1x64x1xf32> to vector<64x1xf32>
      %179 = vector.broadcast %178 : vector<64x1xf32> to vector<64x128xf32>
      %180 = arith.addf %176, %179 : vector<64x128xf32>
      %c2 = arith.constant 2 : index
      %c0_60 = arith.constant 0 : index
      %c0_61 = arith.constant 0 : index
      %181 = vector.load %arg6[%c2, %c0_60, %c0_61] : memref<3x64x64xbf16, #tpu.memory_space<vmem>>, vector<1x64x64xbf16>
      %182 = vector.shape_cast %181 : vector<1x64x64xbf16> to vector<64x64xbf16>
      %c0_62 = arith.constant 0 : index
      %c0_63 = arith.constant 0 : index
      %c0_64 = arith.constant 0 : index
      %183 = vector.load %arg5[%c0_62, %c0_63, %c0_64] : memref<1x64x128xf32, #tpu.memory_space<vmem>>, vector<1x64x128xf32>
      %184 = vector.shape_cast %183 : vector<1x64x128xf32> to vector<64x128xf32>
      %185 = arith.truncf %184 : vector<64x128xf32> to vector<64x128xbf16>
      %cst_65 = arith.constant dense<0.000000e+00> : vector<64x128xf32>
      %186 = tpu.matmul %182, %185, %cst_65 {dimension_numbers = #tpu.dot_dimension_numbers<[1], [0], [0], [1], [0, 0, 1, 1], [], []>} : vector<64x64xbf16>, vector<64x128xbf16>, vector<64x128xf32> -> vector<64x128xf32>
      %c2_66 = arith.constant 2 : index
      %c0_67 = arith.constant 0 : index
      %c0_68 = arith.constant 0 : index
      %187 = vector.load %arg7[%c2_66, %c0_67, %c0_68] : memref<3x64x1xf32, #tpu.memory_space<vmem>>, vector<1x64x1xf32>
      %188 = vector.shape_cast %187 : vector<1x64x1xf32> to vector<64x1xf32>
      %189 = vector.broadcast %188 : vector<64x1xf32> to vector<64x128xf32>
      %190 = arith.addf %186, %189 : vector<64x128xf32>
      %191 = arith.truncf %180 : vector<64x128xf32> to vector<64x128xbf16>
      %c0_69 = arith.constant 0 : index
      %192 = arith.index_cast %4 : i32 to index
      %193 = vector.load %arg12[%c0_69, %192] : memref<64x384xbf16, #tpu.memory_space<vmem>>, vector<64x128xbf16>
      tpu.vector_store %arg12[%c0_69, %192], %191 {strides = array<i32>} : memref<64x384xbf16, #tpu.memory_space<vmem>>, vector<64x128xbf16>,
      %194 = arith.truncf %190 : vector<64x128xf32> to vector<64x128xbf16>
      %c0_70 = arith.constant 0 : index
      %195 = arith.index_cast %4 : i32 to index
      %196 = vector.load %arg13[%c0_70, %195] : memref<64x384xbf16, #tpu.memory_space<vmem>>, vector<64x128xbf16>
      tpu.vector_store %arg13[%c0_70, %195], %194 {strides = array<i32>} : memref<64x384xbf16, #tpu.memory_space<vmem>>, vector<64x128xbf16>,
    } else {
    }
    %c0_i32_3 = arith.constant 0 : i32
    %c16_i32 = arith.constant 16 : i32
    %8 = arith.muli %c0_i32_3, %c16_i32 : i32
    %9 = tpu.assume_multiple %8, 16 : i32
    %10 = arith.index_cast %9 : i32 to index
    %c0 = arith.constant 0 : index
    %11 = vector.load %arg11[%10, %c0] : memref<64x128xbf16, #tpu.memory_space<vmem>>, vector<16x128xbf16>
    %12 = arith.index_cast %9 : i32 to index
    %13 = arith.index_cast %4 : i32 to index
    %14 = vector.load %arg12[%12, %13] : memref<64x384xbf16, #tpu.memory_space<vmem>>, vector<16x128xbf16>
    %15 = arith.index_cast %9 : i32 to index
    %16 = arith.index_cast %4 : i32 to index
    %17 = vector.load %arg13[%15, %16] : memref<64x384xbf16, #tpu.memory_space<vmem>>, vector<16x128xbf16>
    %cst = arith.constant dense<0.000000e+00> : vector<128x128xf32>
    %18 = tpu.matmul %14, %11, %cst {dimension_numbers = #tpu.dot_dimension_numbers<[0], [0], [1], [1], [0, 1, 1, 1], [], []>} : vector<16x128xbf16>, vector<16x128xbf16>, vector<128x128xf32> -> vector<128x128xf32>
    %19 = arith.index_cast %c0_i32_3 : i32 to index
    %c0_4 = arith.constant 0 : index
    %20 = vector.load %arg14[%19, %c0_4] : memref<4x128xf32, #tpu.memory_space<vmem>>, vector<1x128xf32>
    %21 = arith.index_cast %c0_i32_3 : i32 to index
    %c0_5 = arith.constant 0 : index
    %22 = vector.load %arg15[%21, %c0_5] : memref<4x128xf32, #tpu.memory_space<vmem>>, vector<1x128xf32>
    %cst_6 = arith.constant dense<0xFF800000> : vector<128xf32>
    %23 = vector.multi_reduction <maximumf>, %18, %cst_6 [0] : vector<128x128xf32> to vector<128xf32>
    %24 = vector.shape_cast %23 : vector<128xf32> to vector<1x128xf32>
    %25 = arith.maximumf %20, %24 : vector<1x128xf32>
    %26 = arith.subf %20, %25 : vector<1x128xf32>
    %27 = math.exp %26 : vector<1x128xf32>
    %28 = vector.broadcast %25 : vector<1x128xf32> to vector<128x128xf32>
    %29 = arith.subf %18, %28 : vector<128x128xf32>
    %30 = math.exp %29 : vector<128x128xf32>
    %31 = arith.index_cast %c0_i32_3 : i32 to index
    %c0_7 = arith.constant 0 : index
    %32 = vector.load %arg14[%31, %c0_7] : memref<4x128xf32, #tpu.memory_space<vmem>>, vector<1x128xf32>
    tpu.vector_store %arg14[%31, %c0_7], %25 {strides = array<i32>} : memref<4x128xf32, #tpu.memory_space<vmem>>, vector<1x128xf32>,
    %33 = arith.mulf %27, %22 : vector<1x128xf32>
    %cst_8 = arith.constant dense<0.000000e+00> : vector<128xf32>
    %34 = vector.multi_reduction <add>, %30, %cst_8 [0] : vector<128x128xf32> to vector<128xf32>
    %35 = vector.shape_cast %34 : vector<128xf32> to vector<1x128xf32>
    %36 = arith.addf %33, %35 : vector<1x128xf32>
    %37 = arith.index_cast %c0_i32_3 : i32 to index
    %c0_9 = arith.constant 0 : index
    %38 = vector.load %arg15[%37, %c0_9] : memref<4x128xf32, #tpu.memory_space<vmem>>, vector<1x128xf32>
    tpu.vector_store %arg15[%37, %c0_9], %36 {strides = array<i32>} : memref<4x128xf32, #tpu.memory_space<vmem>>, vector<1x128xf32>,
    %39 = arith.truncf %30 : vector<128x128xf32> to vector<128x128xbf16>
    %cst_10 = arith.constant dense<0.000000e+00> : vector<16x128xf32>
    %40 = tpu.matmul %17, %39, %cst_10 {dimension_numbers = #tpu.dot_dimension_numbers<[1], [0], [0], [1], [0, 0, 1, 1], [], []>} : vector<16x128xbf16>, vector<128x128xbf16>, vector<16x128xf32> -> vector<16x128xf32>
    %41 = arith.index_cast %9 : i32 to index
    %c0_11 = arith.constant 0 : index
    %42 = vector.load %arg16[%41, %c0_11] : memref<64x128xf32, #tpu.memory_space<vmem>>, vector<16x128xf32>
    %43 = vector.broadcast %27 : vector<1x128xf32> to vector<16x128xf32>
    %44 = arith.mulf %43, %42 : vector<16x128xf32>
    %45 = arith.addf %44, %40 : vector<16x128xf32>
    %46 = arith.index_cast %9 : i32 to index
    %c0_12 = arith.constant 0 : index
    %47 = vector.load %arg16[%46, %c0_12] : memref<64x128xf32, #tpu.memory_space<vmem>>, vector<16x128xf32>
    tpu.vector_store %arg16[%46, %c0_12], %45 {strides = array<i32>} : memref<64x128xf32, #tpu.memory_space<vmem>>, vector<16x128xf32>,
    %c1_i32 = arith.constant 1 : i32
    %c16_i32_13 = arith.constant 16 : i32
    %48 = arith.muli %c1_i32, %c16_i32_13 : i32
    %49 = tpu.assume_multiple %48, 16 : i32
    %50 = arith.index_cast %49 : i32 to index
    %c0_14 = arith.constant 0 : index
    %51 = vector.load %arg11[%50, %c0_14] : memref<64x128xbf16, #tpu.memory_space<vmem>>, vector<16x128xbf16>
    %52 = arith.index_cast %49 : i32 to index
    %53 = arith.index_cast %4 : i32 to index
    %54 = vector.load %arg12[%52, %53] : memref<64x384xbf16, #tpu.memory_space<vmem>>, vector<16x128xbf16>
    %55 = arith.index_cast %49 : i32 to index
    %56 = arith.index_cast %4 : i32 to index
    %57 = vector.load %arg13[%55, %56] : memref<64x384xbf16, #tpu.memory_space<vmem>>, vector<16x128xbf16>
    %cst_15 = arith.constant dense<0.000000e+00> : vector<128x128xf32>
    %58 = tpu.matmul %54, %51, %cst_15 {dimension_numbers = #tpu.dot_dimension_numbers<[0], [0], [1], [1], [0, 1, 1, 1], [], []>} : vector<16x128xbf16>, vector<16x128xbf16>, vector<128x128xf32> -> vector<128x128xf32>
    %59 = arith.index_cast %c1_i32 : i32 to index
    %c0_16 = arith.constant 0 : index
    %60 = vector.load %arg14[%59, %c0_16] : memref<4x128xf32, #tpu.memory_space<vmem>>, vector<1x128xf32>
    %61 = arith.index_cast %c1_i32 : i32 to index
    %c0_17 = arith.constant 0 : index
    %62 = vector.load %arg15[%61, %c0_17] : memref<4x128xf32, #tpu.memory_space<vmem>>, vector<1x128xf32>
    %cst_18 = arith.constant dense<0xFF800000> : vector<128xf32>
    %63 = vector.multi_reduction <maximumf>, %58, %cst_18 [0] : vector<128x128xf32> to vector<128xf32>
    %64 = vector.shape_cast %63 : vector<128xf32> to vector<1x128xf32>
    %65 = arith.maximumf %60, %64 : vector<1x128xf32>
    %66 = arith.subf %60, %65 : vector<1x128xf32>
    %67 = math.exp %66 : vector<1x128xf32>
    %68 = vector.broadcast %65 : vector<1x128xf32> to vector<128x128xf32>
    %69 = arith.subf %58, %68 : vector<128x128xf32>
    %70 = math.exp %69 : vector<128x128xf32>
    %71 = arith.index_cast %c1_i32 : i32 to index
    %c0_19 = arith.constant 0 : index
    %72 = vector.load %arg14[%71, %c0_19] : memref<4x128xf32, #tpu.memory_space<vmem>>, vector<1x128xf32>
    tpu.vector_store %arg14[%71, %c0_19], %65 {strides = array<i32>} : memref<4x128xf32, #tpu.memory_space<vmem>>, vector<1x128xf32>,
    %73 = arith.mulf %67, %62 : vector<1x128xf32>
    %cst_20 = arith.constant dense<0.000000e+00> : vector<128xf32>
    %74 = vector.multi_reduction <add>, %70, %cst_20 [0] : vector<128x128xf32> to vector<128xf32>
    %75 = vector.shape_cast %74 : vector<128xf32> to vector<1x128xf32>
    %76 = arith.addf %73, %75 : vector<1x128xf32>
    %77 = arith.index_cast %c1_i32 : i32 to index
    %c0_21 = arith.constant 0 : index
    %78 = vector.load %arg15[%77, %c0_21] : memref<4x128xf32, #tpu.memory_space<vmem>>, vector<1x128xf32>
    tpu.vector_store %arg15[%77, %c0_21], %76 {strides = array<i32>} : memref<4x128xf32, #tpu.memory_space<vmem>>, vector<1x128xf32>,
    %79 = arith.truncf %70 : vector<128x128xf32> to vector<128x128xbf16>
    %cst_22 = arith.constant dense<0.000000e+00> : vector<16x128xf32>
    %80 = tpu.matmul %57, %79, %cst_22 {dimension_numbers = #tpu.dot_dimension_numbers<[1], [0], [0], [1], [0, 0, 1, 1], [], []>} : vector<16x128xbf16>, vector<128x128xbf16>, vector<16x128xf32> -> vector<16x128xf32>
    %81 = arith.index_cast %49 : i32 to index
    %c0_23 = arith.constant 0 : index
    %82 = vector.load %arg16[%81, %c0_23] : memref<64x128xf32, #tpu.memory_space<vmem>>, vector<16x128xf32>
    %83 = vector.broadcast %67 : vector<1x128xf32> to vector<16x128xf32>
    %84 = arith.mulf %83, %82 : vector<16x128xf32>
    %85 = arith.addf %84, %80 : vector<16x128xf32>
    %86 = arith.index_cast %49 : i32 to index
    %c0_24 = arith.constant 0 : index
    %87 = vector.load %arg16[%86, %c0_24] : memref<64x128xf32, #tpu.memory_space<vmem>>, vector<16x128xf32>
    tpu.vector_store %arg16[%86, %c0_24], %85 {strides = array<i32>} : memref<64x128xf32, #tpu.memory_space<vmem>>, vector<16x128xf32>,
    %c2_i32 = arith.constant 2 : i32
    %c16_i32_25 = arith.constant 16 : i32
    %88 = arith.muli %c2_i32, %c16_i32_25 : i32
    %89 = tpu.assume_multiple %88, 16 : i32
    %90 = arith.index_cast %89 : i32 to index
    %c0_26 = arith.constant 0 : index
    %91 = vector.load %arg11[%90, %c0_26] : memref<64x128xbf16, #tpu.memory_space<vmem>>, vector<16x128xbf16>
    %92 = arith.index_cast %89 : i32 to index
    %93 = arith.index_cast %4 : i32 to index
    %94 = vector.load %arg12[%92, %93] : memref<64x384xbf16, #tpu.memory_space<vmem>>, vector<16x128xbf16>
    %95 = arith.index_cast %89 : i32 to index
    %96 = arith.index_cast %4 : i32 to index
    %97 = vector.load %arg13[%95, %96] : memref<64x384xbf16, #tpu.memory_space<vmem>>, vector<16x128xbf16>
    %cst_27 = arith.constant dense<0.000000e+00> : vector<128x128xf32>
    %98 = tpu.matmul %94, %91, %cst_27 {dimension_numbers = #tpu.dot_dimension_numbers<[0], [0], [1], [1], [0, 1, 1, 1], [], []>} : vector<16x128xbf16>, vector<16x128xbf16>, vector<128x128xf32> -> vector<128x128xf32>
    %99 = arith.index_cast %c2_i32 : i32 to index
    %c0_28 = arith.constant 0 : index
    %100 = vector.load %arg14[%99, %c0_28] : memref<4x128xf32, #tpu.memory_space<vmem>>, vector<1x128xf32>
    %101 = arith.index_cast %c2_i32 : i32 to index
    %c0_29 = arith.constant 0 : index
    %102 = vector.load %arg15[%101, %c0_29] : memref<4x128xf32, #tpu.memory_space<vmem>>, vector<1x128xf32>
    %cst_30 = arith.constant dense<0xFF800000> : vector<128xf32>
    %103 = vector.multi_reduction <maximumf>, %98, %cst_30 [0] : vector<128x128xf32> to vector<128xf32>
    %104 = vector.shape_cast %103 : vector<128xf32> to vector<1x128xf32>
    %105 = arith.maximumf %100, %104 : vector<1x128xf32>
    %106 = arith.subf %100, %105 : vector<1x128xf32>
    %107 = math.exp %106 : vector<1x128xf32>
    %108 = vector.broadcast %105 : vector<1x128xf32> to vector<128x128xf32>
    %109 = arith.subf %98, %108 : vector<128x128xf32>
    %110 = math.exp %109 : vector<128x128xf32>
    %111 = arith.index_cast %c2_i32 : i32 to index
    %c0_31 = arith.constant 0 : index
    %112 = vector.load %arg14[%111, %c0_31] : memref<4x128xf32, #tpu.memory_space<vmem>>, vector<1x128xf32>
    tpu.vector_store %arg14[%111, %c0_31], %105 {strides = array<i32>} : memref<4x128xf32, #tpu.memory_space<vmem>>, vector<1x128xf32>,
    %113 = arith.mulf %107, %102 : vector<1x128xf32>
    %cst_32 = arith.constant dense<0.000000e+00> : vector<128xf32>
    %114 = vector.multi_reduction <add>, %110, %cst_32 [0] : vector<128x128xf32> to vector<128xf32>
    %115 = vector.shape_cast %114 : vector<128xf32> to vector<1x128xf32>
    %116 = arith.addf %113, %115 : vector<1x128xf32>
    %117 = arith.index_cast %c2_i32 : i32 to index
    %c0_33 = arith.constant 0 : index
    %118 = vector.load %arg15[%117, %c0_33] : memref<4x128xf32, #tpu.memory_space<vmem>>, vector<1x128xf32>
    tpu.vector_store %arg15[%117, %c0_33], %116 {strides = array<i32>} : memref<4x128xf32, #tpu.memory_space<vmem>>, vector<1x128xf32>,
    %119 = arith.truncf %110 : vector<128x128xf32> to vector<128x128xbf16>
    %cst_34 = arith.constant dense<0.000000e+00> : vector<16x128xf32>
    %120 = tpu.matmul %97, %119, %cst_34 {dimension_numbers = #tpu.dot_dimension_numbers<[1], [0], [0], [1], [0, 0, 1, 1], [], []>} : vector<16x128xbf16>, vector<128x128xbf16>, vector<16x128xf32> -> vector<16x128xf32>
    %121 = arith.index_cast %89 : i32 to index
    %c0_35 = arith.constant 0 : index
    %122 = vector.load %arg16[%121, %c0_35] : memref<64x128xf32, #tpu.memory_space<vmem>>, vector<16x128xf32>
    %123 = vector.broadcast %107 : vector<1x128xf32> to vector<16x128xf32>
    %124 = arith.mulf %123, %122 : vector<16x128xf32>
    %125 = arith.addf %124, %120 : vector<16x128xf32>
    %126 = arith.index_cast %89 : i32 to index
    %c0_36 = arith.constant 0 : index
    %127 = vector.load %arg16[%126, %c0_36] : memref<64x128xf32, #tpu.memory_space<vmem>>, vector<16x128xf32>
    tpu.vector_store %arg16[%126, %c0_36], %125 {strides = array<i32>} : memref<64x128xf32, #tpu.memory_space<vmem>>, vector<16x128xf32>,
    %c3_i32 = arith.constant 3 : i32
    %c16_i32_37 = arith.constant 16 : i32
    %128 = arith.muli %c3_i32, %c16_i32_37 : i32
    %129 = tpu.assume_multiple %128, 16 : i32
    %130 = arith.index_cast %129 : i32 to index
    %c0_38 = arith.constant 0 : index
    %131 = vector.load %arg11[%130, %c0_38] : memref<64x128xbf16, #tpu.memory_space<vmem>>, vector<16x128xbf16>
    %132 = arith.index_cast %129 : i32 to index
    %133 = arith.index_cast %4 : i32 to index
    %134 = vector.load %arg12[%132, %133] : memref<64x384xbf16, #tpu.memory_space<vmem>>, vector<16x128xbf16>
    %135 = arith.index_cast %129 : i32 to index
    %136 = arith.index_cast %4 : i32 to index
    %137 = vector.load %arg13[%135, %136] : memref<64x384xbf16, #tpu.memory_space<vmem>>, vector<16x128xbf16>
    %cst_39 = arith.constant dense<0.000000e+00> : vector<128x128xf32>
    %138 = tpu.matmul %134, %131, %cst_39 {dimension_numbers = #tpu.dot_dimension_numbers<[0], [0], [1], [1], [0, 1, 1, 1], [], []>} : vector<16x128xbf16>, vector<16x128xbf16>, vector<128x128xf32> -> vector<128x128xf32>
    %139 = arith.index_cast %c3_i32 : i32 to index
    %c0_40 = arith.constant 0 : index
    %140 = vector.load %arg14[%139, %c0_40] : memref<4x128xf32, #tpu.memory_space<vmem>>, vector<1x128xf32>
    %141 = arith.index_cast %c3_i32 : i32 to index
    %c0_41 = arith.constant 0 : index
    %142 = vector.load %arg15[%141, %c0_41] : memref<4x128xf32, #tpu.memory_space<vmem>>, vector<1x128xf32>
    %cst_42 = arith.constant dense<0xFF800000> : vector<128xf32>
    %143 = vector.multi_reduction <maximumf>, %138, %cst_42 [0] : vector<128x128xf32> to vector<128xf32>
    %144 = vector.shape_cast %143 : vector<128xf32> to vector<1x128xf32>
    %145 = arith.maximumf %140, %144 : vector<1x128xf32>
    %146 = arith.subf %140, %145 : vector<1x128xf32>
    %147 = math.exp %146 : vector<1x128xf32>
    %148 = vector.broadcast %145 : vector<1x128xf32> to vector<128x128xf32>
    %149 = arith.subf %138, %148 : vector<128x128xf32>
    %150 = math.exp %149 : vector<128x128xf32>
    %151 = arith.index_cast %c3_i32 : i32 to index
    %c0_43 = arith.constant 0 : index
    %152 = vector.load %arg14[%151, %c0_43] : memref<4x128xf32, #tpu.memory_space<vmem>>, vector<1x128xf32>
    tpu.vector_store %arg14[%151, %c0_43], %145 {strides = array<i32>} : memref<4x128xf32, #tpu.memory_space<vmem>>, vector<1x128xf32>,
    %153 = arith.mulf %147, %142 : vector<1x128xf32>
    %cst_44 = arith.constant dense<0.000000e+00> : vector<128xf32>
    %154 = vector.multi_reduction <add>, %150, %cst_44 [0] : vector<128x128xf32> to vector<128xf32>
    %155 = vector.shape_cast %154 : vector<128xf32> to vector<1x128xf32>
    %156 = arith.addf %153, %155 : vector<1x128xf32>
    %157 = arith.index_cast %c3_i32 : i32 to index
    %c0_45 = arith.constant 0 : index
    %158 = vector.load %arg15[%157, %c0_45] : memref<4x128xf32, #tpu.memory_space<vmem>>, vector<1x128xf32>
    tpu.vector_store %arg15[%157, %c0_45], %156 {strides = array<i32>} : memref<4x128xf32, #tpu.memory_space<vmem>>, vector<1x128xf32>,
    %159 = arith.truncf %150 : vector<128x128xf32> to vector<128x128xbf16>
    %cst_46 = arith.constant dense<0.000000e+00> : vector<16x128xf32>
    %160 = tpu.matmul %137, %159, %cst_46 {dimension_numbers = #tpu.dot_dimension_numbers<[1], [0], [0], [1], [0, 0, 1, 1], [], []>} : vector<16x128xbf16>, vector<128x128xbf16>, vector<16x128xf32> -> vector<16x128xf32>
    %161 = arith.index_cast %129 : i32 to index
    %c0_47 = arith.constant 0 : index
    %162 = vector.load %arg16[%161, %c0_47] : memref<64x128xf32, #tpu.memory_space<vmem>>, vector<16x128xf32>
    %163 = vector.broadcast %147 : vector<1x128xf32> to vector<16x128xf32>
    %164 = arith.mulf %163, %162 : vector<16x128xf32>
    %165 = arith.addf %164, %160 : vector<16x128xf32>
    %166 = arith.index_cast %129 : i32 to index
    %c0_48 = arith.constant 0 : index
    %167 = vector.load %arg16[%166, %c0_48] : memref<64x128xf32, #tpu.memory_space<vmem>>, vector<16x128xf32>
    tpu.vector_store %arg16[%166, %c0_48], %165 {strides = array<i32>} : memref<64x128xf32, #tpu.memory_space<vmem>>, vector<16x128xf32>,
    %c4_i32 = arith.constant 4 : i32
    %c2_i32_49 = arith.constant 2 : i32
    %168 = arith.cmpi eq, %arg2, %c2_i32_49 : i32
    %169 = arith.extui %168 : i1 to i32
    %c0_i32_50 = arith.constant 0 : i32
    %170 = arith.cmpi ne, %169, %c0_i32_50 : i32
    scf.if %170 {
      %c0_i32_51 = arith.constant 0 : i32
      %c16_i32_52 = arith.constant 16 : i32
      %171 = arith.muli %c0_i32_51, %c16_i32_52 : i32
      %172 = tpu.assume_multiple %171, 16 : i32
      %173 = arith.index_cast %c0_i32_51 : i32 to index
      %c0_53 = arith.constant 0 : index
      %174 = vector.load %arg15[%173, %c0_53] : memref<4x128xf32, #tpu.memory_space<vmem>>, vector<1x128xf32>
      %175 = tpu.reciprocal %174 {approx = true} : vector<1x128xf32> -> vector<1x128xf32>
      %176 = arith.index_cast %172 : i32 to index
      %c0_54 = arith.constant 0 : index
      %177 = vector.load %arg16[%176, %c0_54] : memref<64x128xf32, #tpu.memory_space<vmem>>, vector<16x128xf32>
      %178 = vector.broadcast %175 : vector<1x128xf32> to vector<16x128xf32>
      %179 = arith.mulf %177, %178 : vector<16x128xf32>
      %180 = arith.index_cast %172 : i32 to index
      %c0_55 = arith.constant 0 : index
      %181 = vector.load %arg16[%180, %c0_55] : memref<64x128xf32, #tpu.memory_space<vmem>>, vector<16x128xf32>
      tpu.vector_store %arg16[%180, %c0_55], %179 {strides = array<i32>} : memref<64x128xf32, #tpu.memory_space<vmem>>, vector<16x128xf32>,
      %c1_i32_56 = arith.constant 1 : i32
      %c16_i32_57 = arith.constant 16 : i32
      %182 = arith.muli %c1_i32_56, %c16_i32_57 : i32
      %183 = tpu.assume_multiple %182, 16 : i32
      %184 = arith.index_cast %c1_i32_56 : i32 to index
      %c0_58 = arith.constant 0 : index
      %185 = vector.load %arg15[%184, %c0_58] : memref<4x128xf32, #tpu.memory_space<vmem>>, vector<1x128xf32>
      %186 = tpu.reciprocal %185 {approx = true} : vector<1x128xf32> -> vector<1x128xf32>
      %187 = arith.index_cast %183 : i32 to index
      %c0_59 = arith.constant 0 : index
      %188 = vector.load %arg16[%187, %c0_59] : memref<64x128xf32, #tpu.memory_space<vmem>>, vector<16x128xf32>
      %189 = vector.broadcast %186 : vector<1x128xf32> to vector<16x128xf32>
      %190 = arith.mulf %188, %189 : vector<16x128xf32>
      %191 = arith.index_cast %183 : i32 to index
      %c0_60 = arith.constant 0 : index
      %192 = vector.load %arg16[%191, %c0_60] : memref<64x128xf32, #tpu.memory_space<vmem>>, vector<16x128xf32>
      tpu.vector_store %arg16[%191, %c0_60], %190 {strides = array<i32>} : memref<64x128xf32, #tpu.memory_space<vmem>>, vector<16x128xf32>,
      %c2_i32_61 = arith.constant 2 : i32
      %c16_i32_62 = arith.constant 16 : i32
      %193 = arith.muli %c2_i32_61, %c16_i32_62 : i32
      %194 = tpu.assume_multiple %193, 16 : i32
      %195 = arith.index_cast %c2_i32_61 : i32 to index
      %c0_63 = arith.constant 0 : index
      %196 = vector.load %arg15[%195, %c0_63] : memref<4x128xf32, #tpu.memory_space<vmem>>, vector<1x128xf32>
      %197 = tpu.reciprocal %196 {approx = true} : vector<1x128xf32> -> vector<1x128xf32>
      %198 = arith.index_cast %194 : i32 to index
      %c0_64 = arith.constant 0 : index
      %199 = vector.load %arg16[%198, %c0_64] : memref<64x128xf32, #tpu.memory_space<vmem>>, vector<16x128xf32>
      %200 = vector.broadcast %197 : vector<1x128xf32> to vector<16x128xf32>
      %201 = arith.mulf %199, %200 : vector<16x128xf32>
      %202 = arith.index_cast %194 : i32 to index
      %c0_65 = arith.constant 0 : index
      %203 = vector.load %arg16[%202, %c0_65] : memref<64x128xf32, #tpu.memory_space<vmem>>, vector<16x128xf32>
      tpu.vector_store %arg16[%202, %c0_65], %201 {strides = array<i32>} : memref<64x128xf32, #tpu.memory_space<vmem>>, vector<16x128xf32>,
      %c3_i32_66 = arith.constant 3 : i32
      %c16_i32_67 = arith.constant 16 : i32
      %204 = arith.muli %c3_i32_66, %c16_i32_67 : i32
      %205 = tpu.assume_multiple %204, 16 : i32
      %206 = arith.index_cast %c3_i32_66 : i32 to index
      %c0_68 = arith.constant 0 : index
      %207 = vector.load %arg15[%206, %c0_68] : memref<4x128xf32, #tpu.memory_space<vmem>>, vector<1x128xf32>
      %208 = tpu.reciprocal %207 {approx = true} : vector<1x128xf32> -> vector<1x128xf32>
      %209 = arith.index_cast %205 : i32 to index
      %c0_69 = arith.constant 0 : index
      %210 = vector.load %arg16[%209, %c0_69] : memref<64x128xf32, #tpu.memory_space<vmem>>, vector<16x128xf32>
      %211 = vector.broadcast %208 : vector<1x128xf32> to vector<16x128xf32>
      %212 = arith.mulf %210, %211 : vector<16x128xf32>
      %213 = arith.index_cast %205 : i32 to index
      %c0_70 = arith.constant 0 : index
      %214 = vector.load %arg16[%213, %c0_70] : memref<64x128xf32, #tpu.memory_space<vmem>>, vector<16x128xf32>
      tpu.vector_store %arg16[%213, %c0_70], %212 {strides = array<i32>} : memref<64x128xf32, #tpu.memory_space<vmem>>, vector<16x128xf32>,
      %c4_i32_71 = arith.constant 4 : i32
      %c0_72 = arith.constant 0 : index
      %c0_73 = arith.constant 0 : index
      %215 = vector.load %arg8[%c0_72, %c0_73] : memref<64x64xbf16, #tpu.memory_space<vmem>>, vector<64x64xbf16>
      %c0_74 = arith.constant 0 : index
      %c0_75 = arith.constant 0 : index
      %216 = vector.load %arg16[%c0_74, %c0_75] : memref<64x128xf32, #tpu.memory_space<vmem>>, vector<64x128xf32>
      %217 = arith.truncf %216 : vector<64x128xf32> to vector<64x128xbf16>
      %cst_76 = arith.constant dense<0.000000e+00> : vector<64x128xf32>
      %218 = tpu.matmul %215, %217, %cst_76 {dimension_numbers = #tpu.dot_dimension_numbers<[1], [0], [0], [1], [0, 0, 1, 1], [], []>} : vector<64x64xbf16>, vector<64x128xbf16>, vector<64x128xf32> -> vector<64x128xf32>
      %c0_77 = arith.constant 0 : index
      %c0_78 = arith.constant 0 : index
      %219 = vector.load %arg9[%c0_77, %c0_78] : memref<64x1xf32, #tpu.memory_space<vmem>>, vector<64x1xf32>
      %220 = vector.broadcast %219 : vector<64x1xf32> to vector<64x128xf32>
      %221 = arith.addf %218, %220 : vector<64x128xf32>
      %c0_79 = arith.constant 0 : index
      %c0_80 = arith.constant 0 : index
      %c0_81 = arith.constant 0 : index
      %222 = vector.load %arg10[%c0_79, %c0_80, %c0_81] : memref<1x64x128xf32, #tpu.memory_space<vmem>>, vector<1x64x128xf32>
      %223 = vector.shape_cast %222 : vector<1x64x128xf32> to vector<64x128xf32>
      %224 = vector.shape_cast %221 : vector<64x128xf32> to vector<1x64x128xf32>
      tpu.vector_store %arg10[%c0_79, %c0_80, %c0_81], %224 {strides = array<i32>} : memref<1x64x128xf32, #tpu.memory_space<vmem>>, vector<1x64x128xf32>,
    } else {
    }
    return
  }
  func.func @transform_0(%arg0: i32, %arg1: i32, %arg2: i32) -> (i32, i32, i32) {
    %c0_i32 = arith.constant 0 : i32
    %c0_i32_0 = arith.constant 0 : i32
    return %arg0, %c0_i32, %arg1 : i32, i32, i32
  }
  func.func @transform_1(%arg0: i32, %arg1: i32, %arg2: i32) -> (i32, i32, i32) {
    %c0_i32 = arith.constant 0 : i32
    %0 = arith.cmpi eq, %arg1, %c0_i32 : i32
    %c0_i32_0 = arith.constant 0 : i32
    %1 = arith.select %0, %arg2, %c0_i32_0 : i32
    %c0_i32_1 = arith.constant 0 : i32
    %c0_i32_2 = arith.constant 0 : i32
    return %arg0, %c0_i32_1, %1 : i32, i32, i32
  }
  func.func @transform_2(%arg0: i32, %arg1: i32, %arg2: i32) -> (i32, i32, i32) {
    %c0_i32 = arith.constant 0 : i32
    %0 = arith.cmpi eq, %arg1, %c0_i32 : i32
    %c0_i32_0 = arith.constant 0 : i32
    %1 = arith.select %0, %arg2, %c0_i32_0 : i32
    %c0_i32_1 = arith.constant 0 : i32
    %c0_i32_2 = arith.constant 0 : i32
    return %arg0, %c0_i32_1, %1 : i32, i32, i32
  }
  func.func @transform_3(%arg0: i32, %arg1: i32, %arg2: i32) -> (i32, i32, i32) {
    %c0_i32 = arith.constant 0 : i32
    %c0_i32_0 = arith.constant 0 : i32
    %c0_i32_1 = arith.constant 0 : i32
    %c0_i32_2 = arith.constant 0 : i32
    return %c0_i32, %c0_i32_0, %c0_i32_1 : i32, i32, i32
  }
  func.func @transform_4(%arg0: i32, %arg1: i32, %arg2: i32) -> (i32, i32, i32) {
    %c0_i32 = arith.constant 0 : i32
    %c0_i32_0 = arith.constant 0 : i32
    %c0_i32_1 = arith.constant 0 : i32
    %c0_i32_2 = arith.constant 0 : i32
    return %c0_i32, %c0_i32_0, %c0_i32_1 : i32, i32, i32
  }
  func.func @transform_5(%arg0: i32, %arg1: i32, %arg2: i32) -> (i32, i32) {
    %c0_i32 = arith.constant 0 : i32
    %c0_i32_0 = arith.constant 0 : i32
    %c0_i32_1 = arith.constant 0 : i32
    return %c0_i32, %c0_i32_0 : i32, i32
  }
  func.func @transform_6(%arg0: i32, %arg1: i32, %arg2: i32) -> (i32, i32) {
    %c0_i32 = arith.constant 0 : i32
    %c0_i32_0 = arith.constant 0 : i32
    %c0_i32_1 = arith.constant 0 : i32
    return %c0_i32, %c0_i32_0 : i32, i32
  }
  func.func @transform_7(%arg0: i32, %arg1: i32, %arg2: i32) -> (i32, i32, i32) {
    %c0_i32 = arith.constant 0 : i32
    %c0_i32_0 = arith.constant 0 : i32
    return %arg0, %c0_i32, %arg1 : i32, i32, i32
  }
}

</mosaic_0001>

<llo_original>
// kernel: tpu_custom_call.1
$region0: #{tpu_custom_call.1}
  #allocation0 [shape = 'u32[]', space=smem, size = 0x4, offset = 0x4, fixed_abs, tag = 'smem constant byte address 0x4 - core index']
  #allocation1 [shape = 'u32[144,128]{1,0:T(1,128)}', space=vmem, size = 0x12000, scoped, tag = 'internal scratch']
  #allocation2 [shape = 'bf16[64,128]{1,0:T(16,128)(2,1)}', space=vmem, size = 0x4000, scoped, tag = 'scratch operand']
  #allocation3 [shape = 'bf16[64,384]{1,0:T(16,128)(2,1)}', space=vmem, size = 0xc000, scoped, tag = 'scratch operand']
  #allocation4 [shape = 'bf16[64,384]{1,0:T(16,128)(2,1)}', space=vmem, size = 0xc000, scoped, tag = 'scratch operand']
  #allocation5 [shape = 'f32[4,128]{1,0:T(4,128)}', space=vmem, size = 0x800, scoped, tag = 'scratch operand']
  #allocation6 [shape = 'f32[4,128]{1,0:T(4,128)}', space=vmem, size = 0x800, scoped, tag = 'scratch operand']
  #allocation7 [shape = 'f32[64,128]{1,0:T(8,128)}', space=vmem, size = 0x8000, scoped, tag = 'scratch operand']
  %s0 = inlined_call_operand.vmem [shape: f32[2,64,256], index: 0, kind: input, shape index: {}]
  %s1 = inlined_call_operand.hbm [shape: f32[2,64,384], index: 1, kind: input, shape index: {}]
  %s2 = inlined_call_operand.hbm [shape: f32[2,64,384], index: 2, kind: input, shape index: {}]
  %s3 = inlined_call_operand.hbm [shape: bf16[3,64,64], index: 3, kind: input, shape index: {}]
  %s4 = inlined_call_operand.vmem [shape: f32[3,64,1], index: 4, kind: input, shape index: {}]
  %s5 = inlined_call_operand.hbm [shape: bf16[64,64], index: 5, kind: input, shape index: {}]
  %s6 = inlined_call_operand.vmem [shape: f32[64,1], index: 6, kind: input, shape index: {}]
  %s7 = inlined_call_operand.hbm [shape: f32[2,64,256], index: 7, kind: output, shape index: {}]
  %s8 = sld [smem:[#allocation0]]
  $region127: #{tpu_custom_call.1} parent=0
    _
  %s10 = ssub.s32 1, %s8
  %s11 = scalar_select 0, %s10, %s8
  $region1: #{tpu_custom_call.1} parent=0
    #allocation8 [shape = 'u8[65536]{0}', space=vmem, size = 0x10000, scoped, tag = 'input window, operand 0']
    #allocation9 [shape = 'u8[65536]{0}', space=vmem, size = 0x10000, scoped, tag = 'input window, operand 1']
    #allocation10 [shape = 's32[2]{0}', space=sflag, size = 0x8, scoped, tag = 'scoped memory for tpu_custom_call.1']
    #allocation11 [shape = 's32[2]{0}', space=sflag, size = 0x8, scoped, tag = 'scoped memory for tpu_custom_call.1']
    #allocation12 [shape = 'u8[65536]{0}', space=vmem, size = 0x10000, scoped, tag = 'input window, operand 2']
    #allocation13 [shape = 's32[2]{0}', space=sflag, size = 0x8, scoped, tag = 'scoped memory for tpu_custom_call.1']
    #allocation14 [shape = 'u8[49152]{0}', space=vmem, size = 0xc000, scoped, tag = 'input window, operand 3, single buffered']
    #allocation15 [shape = 'u8[16384]{0}', space=vmem, size = 0x4000, scoped, tag = 'input window, operand 5, single buffered']
    #allocation16 [shape = 's32[1]{0}', space=sflag, size = 0x4, scoped, tag = 'scoped memory for tpu_custom_call.1']
    #allocation17 [shape = 'u8[65536]{0}', space=vmem, size = 0x10000, scoped, tag = 'output window, operand 0']
    %12 = vsyncpa [#allocation10], 0
    %s13 = scalar_lea.sflag [#allocation10], 1
    %14 = vsyncpa %s13, 0
    %15 = vsyncpa [#allocation13], 0
    %s16 = scalar_lea.sflag [#allocation13], 1
    %17 = vsyncpa %s16, 0
    %18 = vsyncpa [#allocation16], 0
    %19 = vsyncpa [#allocation11], 0
    %s20 = scalar_lea.sflag [#allocation11], 1
    %21 = vsyncpa %s20, 0
    loop: start=0, step=1, limit=14
    $region2: #{tpu_custom_call.1} parent=1 // loop_pre_header
      _
    $region3: #{tpu_custom_call.1} parent=1 // loop_header
      %s23 = sphi 0, %s27
      %p24 = scmp.ge.s32.totalorder %s23, 14
      %s30 = sphi 0, %s49
      %s31 = sphi 0, %s45
      %s32 = sphi 0, %s41
      %s33 = sphi 0, %s30
      %s34 = sphi 0, %s31
      %s35 = sphi 0, %s32
      %s36 = sphi 0, %s33
      %s37 = sphi 0, %s34
      %s38 = sphi 0, %s35
      %s54 = sphi 0, %s56
      %s57 = sphi 0, %s54
      %s58 = sphi 0, %s57
      %s74 = sphi 0, %s58
      %s86 = sphi 0, %s88
      %s89 = sphi 0, %s86
      %s90 = sphi 0, %s89
      %s106 = sphi 0, %s90
      %s118 = sphi 0, %s120
      %s121 = sphi 0, %s118
      %s122 = sphi 0, %s121
      %s138 = sphi 0, %s122
      %s142 = sphi 0, %s142
      %s144 = sphi 0, %s142
      %s145 = sphi 0, %s144
      %s159 = sphi 0, %s145
      %s163 = sphi 0, %s163
      %s165 = sphi 0, %s163
      %s166 = sphi 0, %s165
      %s180 = sphi 0, %s166
      %s184 = sphi 0, %s184
      %s186 = sphi 0, %s184
      %s187 = sphi 0, %s186
      %s201 = sphi 0, %s187
      %s205 = sphi 0, %s205
      %s207 = sphi 0, %s205
      %s208 = sphi 0, %s207
      %s222 = sphi 0, %s208
      %s230 = sphi 0, %s232
      %s233 = sphi 0, %s230
      %s234 = sphi 0, %s233
      %s250 = sphi 0, %s234
    $region4: #{tpu_custom_call.1} parent=1 // loop_header_branch
      %26 = sbr.rel (%p24) target = $region8
    $region5: #{tpu_custom_call.1} parent=1 // loop_body
      %s28 = ssub.s32 %s23, 1
      %s29 = ssub.s32 %s23, 2
      %s39 = sadd.s32 1, %s32
      %p40 = scmp.ge.s32.totalorder %s39, 3
      %s41 = scalar_select %p40, 0, %s39
      %s42 = sadd.s32 1, %s31
      %s43 = scalar_select %p40, %s42, %s31
      %p44 = scmp.ge.s32.totalorder %s43, 2
      %s45 = scalar_select %p44, 0, %s43
      %s46 = sadd.s32 1, %s30
      %s47 = scalar_select %p44, %s46, %s30
      %p48 = scmp.ge.s32.totalorder %s47, 2
      %s49 = scalar_select %p48, 0, %s47
      %s50 = ssub.s32 %s30, %s49
      %s51 = ssub.s32 %s31, %s45
      %s52 = sor.u32 %s50, %s51
      %p53 = scmp.eq.s32.totalorder %s52, 0
      %s55 = sadd.s32 %s54, 1
      %s56 = scalar_select %p53, %s54, %s55
      %p59 = pneg %p53
      %p60 = scmp.eq.s32.totalorder %s23, 11
      %p61 = por %p59, %p60
      %p62 = scmp.ne.s32.totalorder %s54, %s57
      %p63 = scmp.eq.s32.totalorder %s23, 0
      %p64 = por %p62, %p63
      %p65 = scmp.ne.s32.totalorder %s54, %s57
      %p66 = scmp.eq.s32.totalorder %s28, 11
      %p67 = por %p65, %p66
      %p68 = scmp.ne.s32.totalorder %s57, %s58
      %p69 = scmp.eq.s32.totalorder %s28, 0
      %p70 = por %p68, %p69
      %p71 = scmp.ne.s32.totalorder %s57, %s58
      %p72 = scmp.eq.s32.totalorder %s29, 11
      %p73 = por %p71, %p72
      %p75 = scmp.ne.s32.totalorder %s58, %s74
      %p76 = scmp.eq.s32.totalorder %s29, 0
      %p77 = por %p75, %p76
      %p78 = scmp.eq.s32.totalorder %s31, 0
      %s79 = scalar_select %p78, %s32, 0
      %p80 = scmp.eq.s32.totalorder %s45, 0
      %s81 = scalar_select %p80, %s41, 0
      %s82 = ssub.s32 %s30, %s49
      %s83 = ssub.s32 %s79, %s81
      %s84 = sor.u32 %s82, %s83
      %p85 = scmp.eq.s32.totalorder %s84, 0
      %s87 = sadd.s32 %s86, 1
      %s88 = scalar_select %p85, %s86, %s87
      %p91 = pneg %p85
      %p92 = scmp.eq.s32.totalorder %s23, 11
      %p93 = por %p91, %p92
      %p94 = scmp.ne.s32.totalorder %s86, %s89
      %p95 = scmp.eq.s32.totalorder %s23, 0
      %p96 = por %p94, %p95
      %p97 = scmp.ne.s32.totalorder %s86, %s89
      %p98 = scmp.eq.s32.totalorder %s28, 11
      %p99 = por %p97, %p98
      %p100 = scmp.ne.s32.totalorder %s89, %s90
      %p101 = scmp.eq.s32.totalorder %s28, 0
      %p102 = por %p100, %p101
      %p103 = scmp.ne.s32.totalorder %s89, %s90
      %p104 = scmp.eq.s32.totalorder %s29, 11
      %p105 = por %p103, %p104
      %p107 = scmp.ne.s32.totalorder %s90, %s106
      %p108 = scmp.eq.s32.totalorder %s29, 0
      %p109 = por %p107, %p108
      %p110 = scmp.eq.s32.totalorder %s31, 0
      %s111 = scalar_select %p110, %s32, 0
      %p112 = scmp.eq.s32.totalorder %s45, 0
      %s113 = scalar_select %p112, %s41, 0
      %s114 = ssub.s32 %s30, %s49
      %s115 = ssub.s32 %s111, %s113
      %s116 = sor.u32 %s114, %s115
      %p117 = scmp.eq.s32.totalorder %s116, 0
      %s119 = sadd.s32 %s118, 1
      %s120 = scalar_select %p117, %s118, %s119
      %p123 = pneg %p117
      %p124 = scmp.eq.s32.totalorder %s23, 11
      %p125 = por %p123, %p124
      %p126 = scmp.ne.s32.totalorder %s118, %s121
      %p127 = scmp.eq.s32.totalorder %s23, 0
      %p128 = por %p126, %p127
      %p129 = scmp.ne.s32.totalorder %s118, %s121
      %p130 = scmp.eq.s32.totalorder %s28, 11
      %p131 = por %p129, %p130
      %p132 = scmp.ne.s32.totalorder %s121, %s122
      %p133 = scmp.eq.s32.totalorder %s28, 0
      %p134 = por %p132, %p133
      %p135 = scmp.ne.s32.totalorder %s121, %s122
      %p136 = scmp.eq.s32.totalorder %s29, 11
      %p137 = por %p135, %p136
      %p139 = scmp.ne.s32.totalorder %s122, %s138
      %p140 = scmp.eq.s32.totalorder %s29, 0
      %p141 = por %p139, %p140
      %s143 = sadd.s32 %s142, 1
      %p146 = scmp.eq.s32.totalorder %s23, 11
      %p147 = scmp.ne.s32.totalorder %s142, %s144
      %p148 = scmp.eq.s32.totalorder %s23, 0
      %p149 = por %p147, %p148
      %p150 = scmp.ne.s32.totalorder %s142, %s144
      %p151 = scmp.eq.s32.totalorder %s28, 11
      %p152 = por %p150, %p151
      %p153 = scmp.ne.s32.totalorder %s144, %s145
      %p154 = scmp.eq.s32.totalorder %s28, 0
      %p155 = por %p153, %p154
      %p156 = scmp.ne.s32.totalorder %s144, %s145
      %p157 = scmp.eq.s32.totalorder %s29, 11
      %p158 = por %p156, %p157
      %p160 = scmp.ne.s32.totalorder %s145, %s159
      %p161 = scmp.eq.s32.totalorder %s29, 0
      %p162 = por %p160, %p161
      %s164 = sadd.s32 %s163, 1
      %p167 = scmp.eq.s32.totalorder %s23, 11
      %p168 = scmp.ne.s32.totalorder %s163, %s165
      %p169 = scmp.eq.s32.totalorder %s23, 0
      %p170 = por %p168, %p169
      %p171 = scmp.ne.s32.totalorder %s163, %s165
      %p172 = scmp.eq.s32.totalorder %s28, 11
      %p173 = por %p171, %p172
      %p174 = scmp.ne.s32.totalorder %s165, %s166
      %p175 = scmp.eq.s32.totalorder %s28, 0
      %p176 = por %p174, %p175
      %p177 = scmp.ne.s32.totalorder %s165, %s166
      %p178 = scmp.eq.s32.totalorder %s29, 11
      %p179 = por %p177, %p178
      %p181 = scmp.ne.s32.totalorder %s166, %s180
      %p182 = scmp.eq.s32.totalorder %s29, 0
      %p183 = por %p181, %p182
      %s185 = sadd.s32 %s184, 1
      %p188 = scmp.eq.s32.totalorder %s23, 11
      %p189 = scmp.ne.s32.totalorder %s184, %s186
      %p190 = scmp.eq.s32.totalorder %s23, 0
      %p191 = por %p189, %p190
      %p192 = scmp.ne.s32.totalorder %s184, %s186
      %p193 = scmp.eq.s32.totalorder %s28, 11
      %p194 = por %p192, %p193
      %p195 = scmp.ne.s32.totalorder %s186, %s187
      %p196 = scmp.eq.s32.totalorder %s28, 0
      %p197 = por %p195, %p196
      %p198 = scmp.ne.s32.totalorder %s186, %s187
      %p199 = scmp.eq.s32.totalorder %s29, 11
      %p200 = por %p198, %p199
      %p202 = scmp.ne.s32.totalorder %s187, %s201
      %p203 = scmp.eq.s32.totalorder %s29, 0
      %p204 = por %p202, %p203
      %s206 = sadd.s32 %s205, 1
      %p209 = scmp.eq.s32.totalorder %s23, 11
      %p210 = scmp.ne.s32.totalorder %s205, %s207
      %p211 = scmp.eq.s32.totalorder %s23, 0
      %p212 = por %p210, %p211
      %p213 = scmp.ne.s32.totalorder %s205, %s207
      %p214 = scmp.eq.s32.totalorder %s28, 11
      %p215 = por %p213, %p214
      %p216 = scmp.ne.s32.totalorder %s207, %s208
      %p217 = scmp.eq.s32.totalorder %s28, 0
      %p218 = por %p216, %p217
      %p219 = scmp.ne.s32.totalorder %s207, %s208
      %p220 = scmp.eq.s32.totalorder %s29, 11
      %p221 = por %p219, %p220
      %p223 = scmp.ne.s32.totalorder %s208, %s222
      %p224 = scmp.eq.s32.totalorder %s29, 0
      %p225 = por %p223, %p224
      %s226 = ssub.s32 %s30, %s49
      %s227 = ssub.s32 %s31, %s45
      %s228 = sor.u32 %s226, %s227
      %p229 = scmp.eq.s32.totalorder %s228, 0
      %s231 = sadd.s32 %s230, 1
      %s232 = scalar_select %p229, %s230, %s231
      %p235 = pneg %p229
      %p236 = scmp.eq.s32.totalorder %s23, 11
      %p237 = por %p235, %p236
      %p238 = scmp.ne.s32.totalorder %s230, %s233
      %p239 = scmp.eq.s32.totalorder %s23, 0
      %p240 = por %p238, %p239
      %p241 = scmp.ne.s32.totalorder %s230, %s233
      %p242 = scmp.eq.s32.totalorder %s28, 11
      %p243 = por %p241, %p242
      %p244 = scmp.ne.s32.totalorder %s233, %s234
      %p245 = scmp.eq.s32.totalorder %s28, 0
      %p246 = por %p244, %p245
      %p247 = scmp.ne.s32.totalorder %s233, %s234
      %p248 = scmp.eq.s32.totalorder %s29, 11
      %p249 = por %p247, %p248
      %p251 = scmp.ne.s32.totalorder %s234, %s250
      %p252 = scmp.eq.s32.totalorder %s29, 0
      %p253 = por %p251, %p252
      %p254 = scmp.le.s32.totalorder 1, %s23
      %p255 = scmp.lt.s32.totalorder %s23, 13
      %p256 = pnand %p254, %p255
      %p257 = pneg %p256
      // Predicated region
      $region9: #{tpu_custom_call.1} parent=5 // pred_check
        _
      $region10: #{tpu_custom_call.1} parent=5 // pred_check_branch
        %259 = sbr.rel (%p256) target = $region12
      $region11: #{tpu_custom_call.1} parent=5 // pred_region
        %s260 = ssub.s32 %s23, 1
        // Predicated region
        $region13: #{tpu_custom_call.1} parent=11 // pred_check
          %p261 = pneg %p155
        $region14: #{tpu_custom_call.1} parent=11 // pred_check_branch
          %263 = sbr.rel (%p261) target = $region16
        $region15: #{tpu_custom_call.1} parent=11 // pred_region
          %s265 = ssub.s32 1536, 1536
          %266 = vsyncadd [#allocation13], %s265
          %s267 = sshll.u32 [#allocation14], 4
          %s268 = int_to_ptr.vmem [resolvable:$true] %s267
          %273 = dma.hbm_to_vmem [thread:$0]  %s3, 1536, %s268, [#allocation13], 64, 64, 4
        $region16: #{tpu_custom_call.1} parent=11 // pred_fallthru
          _
        // Predicated region
        $region17: #{tpu_custom_call.1} parent=11 // pred_check
          %p274 = pneg %p176
        $region18: #{tpu_custom_call.1} parent=11 // pred_check_branch
          %276 = sbr.rel (%p274) target = $region20
        $region19: #{tpu_custom_call.1} parent=11 // pred_region
          _
        $region20: #{tpu_custom_call.1} parent=11 // pred_fallthru
          _
        // Predicated region
        $region21: #{tpu_custom_call.1} parent=11 // pred_check
          %p277 = pneg %p197
        $region22: #{tpu_custom_call.1} parent=11 // pred_check_branch
          %279 = sbr.rel (%p277) target = $region24
        $region23: #{tpu_custom_call.1} parent=11 // pred_region
          %s281 = ssub.s32 512, 512
          %282 = vsyncadd [#allocation16], %s281
          %s283 = sshll.u32 [#allocation15], 4
          %s284 = int_to_ptr.vmem [resolvable:$true] %s283
          %289 = dma.hbm_to_vmem [thread:$0]  %s5, 512, %s284, [#allocation16], 64, 64, 4
        $region24: #{tpu_custom_call.1} parent=11 // pred_fallthru
          _
        // Predicated region
        $region25: #{tpu_custom_call.1} parent=11 // pred_check
          %p290 = pneg %p218
        $region26: #{tpu_custom_call.1} parent=11 // pred_check_branch
          %292 = sbr.rel (%p290) target = $region28
        $region27: #{tpu_custom_call.1} parent=11 // pred_region
          _
        $region28: #{tpu_custom_call.1} parent=11 // pred_fallthru
          _
      $region12: #{tpu_custom_call.1} parent=5 // pred_fallthru
        _
      %p293 = scmp.lt.s32.totalorder %s23, 12
      // Predicated region
      $region29: #{tpu_custom_call.1} parent=5 // pred_check
        %p294 = pneg %p293
      $region30: #{tpu_custom_call.1} parent=5 // pred_check_branch
        %296 = sbr.rel (%p294) target = $region32
      $region31: #{tpu_custom_call.1} parent=5 // pred_region
        // Predicated region
        $region33: #{tpu_custom_call.1} parent=31 // pred_check
          %p297 = pneg %p64
        $region34: #{tpu_custom_call.1} parent=31 // pred_check_branch
          %299 = sbr.rel (%p297) target = $region36
        $region35: #{tpu_custom_call.1} parent=31 // pred_region
          %s300 = sand.u32 %s54, 1
          %s301 = sand.u32 %s54, 1
          %s302 = smul.addr %s301, 64
          %s303 = scalar_lea.vmem [#allocation8], %s302
          %s304 = smul.addr %s30, 16
          %s305 = sadd.s32 %s31, %s304
          %s306 = smul.addr %s305, 8
          %s307 = scalar_lea.vmem %s0, %s306
          // Predicated region
          $region37: #{tpu_custom_call.1} parent=35 // pred_check
            _
          $region38: #{tpu_custom_call.1} parent=35 // pred_check_branch
            %309 = sbr.rel (0) target = $region40
          $region39: #{tpu_custom_call.1} parent=35 // pred_region
            // Predicated region
            $region41: #{tpu_custom_call.1} parent=39 // pred_check
              _
            $region42: #{tpu_custom_call.1} parent=39 // pred_check_branch
              %311 = sbr.rel (0) target = $region44
            $region43: #{tpu_custom_call.1} parent=39 // pred_region
              // Predicated region
              $region56: #{tpu_custom_call.1} parent=43 // pred_check
                _
              $region57: #{tpu_custom_call.1} parent=43 // pred_check_branch
                %340 = sbr.rel (0) target = $region59
              $region58: #{tpu_custom_call.1} parent=43 // pred_region
                loop: start=0, step=1, limit=1
                $region60: #{tpu_custom_call.1} parent=58 // loop_pre_header
                  _
                $region61: #{tpu_custom_call.1} parent=58 // loop_header
                  %s342 = sphi 0, %s346
                  %p343 = scmp.ge.s32.totalorder %s342, 1
                  %s347 = sphi %s307, %s307
                  %s348 = sphi %s303, %s303
                $region62: #{tpu_custom_call.1} parent=58 // loop_header_branch
                  %345 = sbr.rel (%p343) target = $region66
                $region63: #{tpu_custom_call.1} parent=58 // loop_body
                  %v349 = vld [vmem:[%s347] sm:$0xff]
                  %350 = vst [vmem:[%s348] sm:$0xff] %v349
                  %v351 = vld [vmem:[%s347 + $0x10] sm:$0xff]
                  %352 = vst [vmem:[%s348 + $0x8] sm:$0xff] %v351
                  %v353 = vld [vmem:[%s347 + $0x20] sm:$0xff]
                  %354 = vst [vmem:[%s348 + $0x10] sm:$0xff] %v353
                  %v355 = vld [vmem:[%s347 + $0x30] sm:$0xff]
                  %356 = vst [vmem:[%s348 + $0x18] sm:$0xff] %v355
                  %v357 = vld [vmem:[%s347 + $0x40] sm:$0xff]
                  %358 = vst [vmem:[%s348 + $0x20] sm:$0xff] %v357
                  %v359 = vld [vmem:[%s347 + $0x50] sm:$0xff]
                  %360 = vst [vmem:[%s348 + $0x28] sm:$0xff] %v359
                  %v361 = vld [vmem:[%s347 + $0x60] sm:$0xff]
                  %362 = vst [vmem:[%s348 + $0x30] sm:$0xff] %v361
                  %v363 = vld [vmem:[%s347 + $0x70] sm:$0xff]
                  %364 = vst [vmem:[%s348 + $0x38] sm:$0xff] %v363
                $region64: #{tpu_custom_call.1} parent=58 // loop_footer
                  %s346 = sadd.s32 1, %s342
                $region65: #{tpu_custom_call.1} parent=58 // loop_footer_branch
                  %341 = sbr.rel target = $region61
                $region66: #{tpu_custom_call.1} parent=58 // loop_exit
                  _
              $region59: #{tpu_custom_call.1} parent=43 // pred_fallthru
                _
              // Predicated region
              $region67: #{tpu_custom_call.1} parent=43 // pred_check
                _
              $region68: #{tpu_custom_call.1} parent=43 // pred_check_branch
                %366 = sbr.rel target = $region70
              $region69: #{tpu_custom_call.1} parent=43 // pred_region
                _
              $region70: #{tpu_custom_call.1} parent=43 // pred_fallthru
                _
            $region44: #{tpu_custom_call.1} parent=39 // pred_fallthru
              _
            // Predicated region
            $region45: #{tpu_custom_call.1} parent=39 // pred_check
              _
            $region46: #{tpu_custom_call.1} parent=39 // pred_check_branch
              %313 = sbr.rel target = $region48
            $region47: #{tpu_custom_call.1} parent=39 // pred_region
              loop: start=0, step=1, limit=1
              $region49: #{tpu_custom_call.1} parent=47 // loop_pre_header
                _
              $region50: #{tpu_custom_call.1} parent=47 // loop_header
                %s316 = sphi 0, %s320
                %p317 = scmp.ge.s32.totalorder %s316, 1
                %s321 = sphi %s307, %s307
                %s322 = sphi %s303, %s303
              $region51: #{tpu_custom_call.1} parent=47 // loop_header_branch
                %319 = sbr.rel (%p317) target = $region55
              $region52: #{tpu_custom_call.1} parent=47 // loop_body
                %v323 = vld [vmem:[%s321] sm:$0xff]
                %324 = vst [vmem:[%s322] sm:$0xff] %v323
                %v325 = vld [vmem:[%s321 + $0x10] sm:$0xff]
                %326 = vst [vmem:[%s322 + $0x8] sm:$0xff] %v325
                %v327 = vld [vmem:[%s321 + $0x20] sm:$0xff]
                %328 = vst [vmem:[%s322 + $0x10] sm:$0xff] %v327
                %v329 = vld [vmem:[%s321 + $0x30] sm:$0xff]
                %330 = vst [vmem:[%s322 + $0x18] sm:$0xff] %v329
                %v331 = vld [vmem:[%s321 + $0x40] sm:$0xff]
                %332 = vst [vmem:[%s322 + $0x20] sm:$0xff] %v331
                %v333 = vld [vmem:[%s321 + $0x50] sm:$0xff]
                %334 = vst [vmem:[%s322 + $0x28] sm:$0xff] %v333
                %v335 = vld [vmem:[%s321 + $0x60] sm:$0xff]
                %336 = vst [vmem:[%s322 + $0x30] sm:$0xff] %v335
                %v337 = vld [vmem:[%s321 + $0x70] sm:$0xff]
                %338 = vst [vmem:[%s322 + $0x38] sm:$0xff] %v337
              $region53: #{tpu_custom_call.1} parent=47 // loop_footer
                %s320 = sadd.s32 1, %s316
              $region54: #{tpu_custom_call.1} parent=47 // loop_footer_branch
                %315 = sbr.rel target = $region50
              $region55: #{tpu_custom_call.1} parent=47 // loop_exit
                _
            $region48: #{tpu_custom_call.1} parent=39 // pred_fallthru
              _
          $region40: #{tpu_custom_call.1} parent=35 // pred_fallthru
            _
          %367 = vnop
        $region36: #{tpu_custom_call.1} parent=31 // pred_fallthru
          _
        // Predicated region
        $region71: #{tpu_custom_call.1} parent=31 // pred_check
          %p368 = pneg %p96
        $region72: #{tpu_custom_call.1} parent=31 // pred_check_branch
          %370 = sbr.rel (%p368) target = $region74
        $region73: #{tpu_custom_call.1} parent=31 // pred_region
          %s371 = sand.u32 %s86, 1
          %s372 = scalar_lea.sflag [#allocation10], %s371
          %s373 = sand.u32 %s86, 1
          %s374 = smul.addr %s373, 64
          %s375 = scalar_lea.vmem [#allocation9], %s374
          %p376 = scmp.eq.s32.totalorder %s31, 0
          %s377 = scalar_select %p376, %s32, 0
          %s379 = ssub.s32 1024, 1024
          %380 = vsyncadd %s372, %s379
          %s381 = smul.addr %s30, 24
          %s382 = sadd.s32 %s377, %s381
          %s383 = smul.addr %s382, 128
          %s384 = scalar_lea.hbm %s1, %s383
          %s385 = sshll.u32 %s375, 4
          %s386 = int_to_ptr.vmem [resolvable:$true] %s385
          %391 = dma.hbm_to_vmem [thread:$0]  %s384, 1024, %s386, %s372, 384, 128, 8
        $region74: #{tpu_custom_call.1} parent=31 // pred_fallthru
          _
        // Predicated region
        $region75: #{tpu_custom_call.1} parent=31 // pred_check
          %p392 = pneg %p128
        $region76: #{tpu_custom_call.1} parent=31 // pred_check_branch
          %394 = sbr.rel (%p392) target = $region78
        $region77: #{tpu_custom_call.1} parent=31 // pred_region
          %s395 = sand.u32 %s23, 1
          %s396 = scalar_lea.sflag [#allocation13], %s395
          %s397 = sand.u32 %s118, 1
          %s398 = smul.addr %s397, 64
          %s399 = scalar_lea.vmem [#allocation12], %s398
          %p400 = scmp.eq.s32.totalorder %s31, 0
          %s401 = scalar_select %p400, %s32, 0
          %s403 = ssub.s32 1024, 1024
          %404 = vsyncadd %s396, %s403
          %s405 = smul.addr %s30, 24
          %s406 = sadd.s32 %s401, %s405
          %s407 = smul.addr %s406, 128
          %s408 = scalar_lea.hbm %s2, %s407
          %s409 = sshll.u32 %s399, 4
          %s410 = int_to_ptr.vmem [resolvable:$true] %s409
          %415 = dma.hbm_to_vmem [thread:$0]  %s408, 1024, %s410, %s396, 384, 128, 8
        $region78: #{tpu_custom_call.1} parent=31 // pred_fallthru
          _
      $region32: #{tpu_custom_call.1} parent=5 // pred_fallthru
        _
      %p416 = scmp.le.s32.totalorder 1, %s23
      %p417 = scmp.lt.s32.totalorder %s23, 13
      %p418 = pnand %p416, %p417
      %p419 = pneg %p418
      // Predicated region
      $region79: #{tpu_custom_call.1} parent=5 // pred_check
        _
      $region80: #{tpu_custom_call.1} parent=5 // pred_check_branch
        %421 = sbr.rel (%p418) target = $region82
      $region81: #{tpu_custom_call.1} parent=5 // pred_region
        %s422 = ssub.s32 %s23, 1
        %s423 = sand.u32 %s57, 1
        %s424 = sand.u32 %s57, 1
        %s425 = smul.addr %s424, 64
        %s426 = scalar_lea.vmem [#allocation8], %s425
        // Predicated region
        $region83: #{tpu_custom_call.1} parent=81 // pred_check
          %p427 = pneg %p70
        $region84: #{tpu_custom_call.1} parent=81 // pred_check_branch
          %429 = sbr.rel (%p427) target = $region86
        $region85: #{tpu_custom_call.1} parent=81 // pred_region
          _
        $region86: #{tpu_custom_call.1} parent=81 // pred_fallthru
          _
        %s430 = sand.u32 %s89, 1
        %s431 = scalar_lea.sflag [#allocation10], %s430
        %s432 = sand.u32 %s89, 1
        %s433 = smul.addr %s432, 64
        %s434 = scalar_lea.vmem [#allocation9], %s433
        // Predicated region
        $region87: #{tpu_custom_call.1} parent=81 // pred_check
          %p435 = pneg %p102
        $region88: #{tpu_custom_call.1} parent=81 // pred_check_branch
          %437 = sbr.rel (%p435) target = $region90
        $region89: #{tpu_custom_call.1} parent=81 // pred_region
          %438 = dma.done %s431, 1024
        $region90: #{tpu_custom_call.1} parent=81 // pred_fallthru
          _
        %s439 = sand.u32 %s28, 1
        %s440 = scalar_lea.sflag [#allocation13], %s439
        %s441 = sand.u32 %s121, 1
        %s442 = smul.addr %s441, 64
        %s443 = scalar_lea.vmem [#allocation12], %s442
        // Predicated region
        $region91: #{tpu_custom_call.1} parent=81 // pred_check
          %p444 = pneg %p134
        $region92: #{tpu_custom_call.1} parent=81 // pred_check_branch
          %446 = sbr.rel (%p444) target = $region94
        $region93: #{tpu_custom_call.1} parent=81 // pred_region
          %447 = dma.done %s440, 1024
        $region94: #{tpu_custom_call.1} parent=81 // pred_fallthru
          _
        // Predicated region
        $region95: #{tpu_custom_call.1} parent=81 // pred_check
          %p448 = pneg %p155
        $region96: #{tpu_custom_call.1} parent=81 // pred_check_branch
          %450 = sbr.rel (%p448) target = $region98
        $region97: #{tpu_custom_call.1} parent=81 // pred_region
          %451 = dma.done [#allocation13], 1536
        $region98: #{tpu_custom_call.1} parent=81 // pred_fallthru
          _
        // Predicated region
        $region99: #{tpu_custom_call.1} parent=81 // pred_check
          %p452 = pneg %p197
        $region100: #{tpu_custom_call.1} parent=81 // pred_check_branch
          %454 = sbr.rel (%p452) target = $region102
        $region101: #{tpu_custom_call.1} parent=81 // pred_region
          %455 = dma.done [#allocation16], 512
        $region102: #{tpu_custom_call.1} parent=81 // pred_fallthru
          _
        %s456 = sand.u32 %s57, 1
        %s457 = sand.u32 %s57, 1
        %s458 = smul.addr %s457, 64
        %s459 = scalar_lea.vmem [#allocation8], %s458
        %p460 = pneg %p70
        %p461 = pneg %p67
        %s462 = sand.u32 %s89, 1
        %s463 = scalar_lea.sflag [#allocation10], %s462
        %s464 = sand.u32 %s89, 1
        %s465 = smul.addr %s464, 64
        %s466 = scalar_lea.vmem [#allocation9], %s465
        %p467 = pneg %p102
        %p468 = pneg %p99
        %s469 = sand.u32 %s28, 1
        %s470 = scalar_lea.sflag [#allocation13], %s469
        %s471 = sand.u32 %s121, 1
        %s472 = smul.addr %s471, 64
        %s473 = scalar_lea.vmem [#allocation12], %s472
        %p474 = pneg %p134
        %p475 = pneg %p131
        %p476 = pneg %p155
        %p477 = pneg %p152
        %p478 = pneg %p176
        %p479 = pneg %p173
        %p480 = pneg %p197
        %p481 = pneg %p194
        %p482 = pneg %p218
        %p483 = pneg %p215
        %p484 = pneg %p246
        %p485 = pneg %p243
        %s486 = sand.u32 %s233, 1
        %s487 = scalar_lea.sflag [#allocation11], %s486
        %s488 = sand.u32 %s233, 1
        %s489 = smul.addr %s488, 64
        %s490 = scalar_lea.vmem [#allocation17], %s489
        %p491 = scmp.eq.s32.totalorder %s34, 0
        %s492 = scalar_select %p491, %s35, 0
        %p493 = scmp.eq.s32.totalorder %s34, 0
        %s494 = scalar_select %p493, %s35, 0
        %p496 = scmp.eq.s32.totalorder %s35, 0
        // Predicated region
        $region103: #{tpu_custom_call.1} parent=81 // pred_check
          %p497 = pneg %p496
        $region104: #{tpu_custom_call.1} parent=81 // pred_check_branch
          %499 = sbr.rel (%p497) target = $region106
        $region105: #{tpu_custom_call.1} parent=81 // pred_region
          %v500 = vld [vmem:[#allocation14] sm:$0xf]
          %v501 = vld [vmem:[#allocation14 + $0x4] sm:$0xf]
          %v502 = vld [vmem:[#allocation14 + $0x8] sm:$0xf]
          %v503 = vld [vmem:[#allocation14 + $0xc] sm:$0xf]
          %v504 = vld [vmem:[#allocation14 + $0x10] sm:$0xf]
          %v505 = vld [vmem:[#allocation14 + $0x14] sm:$0xf]
          %v506 = vld [vmem:[#allocation14 + $0x18] sm:$0xf]
          %v507 = vld [vmem:[#allocation14 + $0x1c] sm:$0xf]
          %v508 = vld [vmem:[%s426] sm:$0xff]
          %v509 = vld [vmem:[%s426 + $0x8] sm:$0xff]
          %v510 = vld [vmem:[%s426 + $0x10] sm:$0xff]
          %v511 = vld [vmem:[%s426 + $0x18] sm:$0xff]
          %v512 = vld [vmem:[%s426 + $0x20] sm:$0xff]
          %v513 = vld [vmem:[%s426 + $0x28] sm:$0xff]
          %v514 = vld [vmem:[%s426 + $0x30] sm:$0xff]
          %v515 = vld [vmem:[%s426 + $0x38] sm:$0xff]
          %v516 = vpack.c.bf16 %v509, %v508
          %v517 = vpack.c.bf16 %v511, %v510
          %v518 = vpack.c.bf16 %v513, %v512
          %v519 = vpack.c.bf16 %v515, %v514
          %v520 = vld [vmem:[%s4] sm:$0xff]
          %v521 = vld [vmem:[%s4 + $0x8] sm:$0xff]
          %v522 = vld [vmem:[%s4 + $0x10] sm:$0xff]
          %v523 = vld [vmem:[%s4 + $0x18] sm:$0xff]
          %v524 = vld [vmem:[%s4 + $0x20] sm:$0xff]
          %v525 = vld [vmem:[%s4 + $0x28] sm:$0xff]
          %v526 = vld [vmem:[%s4 + $0x30] sm:$0xff]
          %v527 = vld [vmem:[%s4 + $0x38] sm:$0xff]
          %529 = vset.pattern.permute.xlu0 0
          %530 = vperm.xlu0 %529, %v520
          %v531 = vpop.permute.xlu0 %530
          %534 = vset.pattern.permute.xlu0 0
          %535 = vperm.xlu0 %534, %v521
          %v536 = vpop.permute.xlu0 %535
          %539 = vset.pattern.permute.xlu0 0
          %540 = vperm.xlu0 %539, %v522
          %v541 = vpop.permute.xlu0 %540
          %544 = vset.pattern.permute.xlu0 0
          %545 = vperm.xlu0 %544, %v523
          %v546 = vpop.permute.xlu0 %545
          %549 = vset.pattern.permute.xlu0 0
          %550 = vperm.xlu0 %549, %v524
          %v551 = vpop.permute.xlu0 %550
          %554 = vset.pattern.permute.xlu0 0
          %555 = vperm.xlu0 %554, %v525
          %v556 = vpop.permute.xlu0 %555
          %559 = vset.pattern.permute.xlu0 0
          %560 = vperm.xlu0 %559, %v526
          %v561 = vpop.permute.xlu0 %560
          %564 = vset.pattern.permute.xlu0 0
          %565 = vperm.xlu0 %564, %v527
          %v566 = vpop.permute.xlu0 %565
          %v576 = vunpack.c.l.b16 %v500
          %v577 = vunpack.c.l.b16 %v501
          %v578 = vunpack.c.l.b16 %v502
          %v579 = vunpack.c.l.b16 %v503
          %v580 = vunpack.c.l.b16 %v504
          %v581 = vunpack.c.l.b16 %v505
          %v582 = vunpack.c.l.b16 %v506
          %v583 = vunpack.c.l.b16 %v507
          %v584 = vpack.c.b16 %v577, %v576
          %v585 = vpack.c.b16 %v579, %v578
          %v586 = vpack.c.b16 %v581, %v580
          %v587 = vpack.c.b16 %v583, %v582
          %vm588 = vcmask 523264
          %v590 = vsel %vm588, %v584, 0
          %v593 = vsel %vm588, %v585, 0
          %v596 = vsel %vm588, %v586, 0
          %v599 = vsel %vm588, %v587, 0
          %601 = vmatprep.subr.bf16.mxu0 0
          %602 = vmatpush1.bf16.msra.mxu0 %v516
          %603 = vmatprep.subr.bf16.mxu0 0
          %604 = vmatpush1.bf16.msra.mxu0 %v517
          %605 = vmatprep.subr.bf16.mxu0 0
          %606 = vmatpush1.bf16.msra.mxu0 %v518
          %607 = vmatprep.subr.bf16.mxu0 0
          %608 = vmatpush1.bf16.msra.mxu0 %v519
          %609 = vmatprep.subr.bf16.mxu0 0
          %610 = vmatpush1.bf16.msra.mxu0 0
          %611 = vmatprep.subr.bf16.mxu0 0
          %612 = vmatpush1.bf16.msra.mxu0 0
          %613 = vmatprep.subr.bf16.mxu0 0
          %614 = vmatpush1.bf16.msra.mxu0 0
          %615 = vmatprep.subr.bf16.mxu0 0
          %616 = vmatpush1.bf16.msra.mxu0 0
          %617 = vmatprep.subr.bf16.mxu0 0
          %618 = vmatpush1.bf16.msra.mxu0 0
          %619 = vmatprep.subr.bf16.mxu0 0
          %620 = vmatpush1.bf16.msra.mxu0 0
          %621 = vmatprep.subr.bf16.mxu0 0
          %622 = vmatpush1.bf16.msra.mxu0 0
          %623 = vmatprep.subr.bf16.mxu0 0
          %624 = vmatpush1.bf16.msra.mxu0 0
          %625 = vmatprep.subr.bf16.mxu0 0
          %626 = vmatpush1.bf16.msra.mxu0 0
          %627 = vmatprep.subr.bf16.mxu0 0
          %628 = vmatpush1.bf16.msra.mxu0 0
          %629 = vmatprep.subr.bf16.mxu0 0
          %630 = vmatpush1.bf16.msra.mxu0 0
          %631 = vmatprep.subr.bf16.mxu0 0
          %632 = vmatpush1.bf16.msra.mxu0 0
          %633 = vmatprep.mubr.bf16.mxu0 0
          %634 = vmatmul.mubr.bf16.gmra.mrb[0].mxu0 %v590
          %v635 = vpop.f32.mrb[0].mxu0
          %v636 = vadd.f32 %v531, %v635
          %v637 = vpop.f32.mrb[0].mxu0
          %v638 = vpop.f32.mrb[0].mxu0
          %v639 = vadd.f32 %v536, %v638
          %v640 = vpop.f32.mrb[0].mxu0
          %641 = vmatprep.mubr.bf16.mxu0 0
          %642 = vmatmul.mubr.bf16.gmra.mrb[0].mxu0 %v593
          %v643 = vpop.f32.mrb[0].mxu0
          %v644 = vadd.f32 %v541, %v643
          %v645 = vpop.f32.mrb[0].mxu0
          %v646 = vpop.f32.mrb[0].mxu0
          %v647 = vadd.f32 %v546, %v646
          %v648 = vpop.f32.mrb[0].mxu0
          %649 = vmatprep.mubr.bf16.mxu0 0
          %650 = vmatmul.mubr.bf16.gmra.mrb[0].mxu0 %v596
          %v651 = vpop.f32.mrb[0].mxu0
          %v652 = vadd.f32 %v551, %v651
          %v653 = vpop.f32.mrb[0].mxu0
          %v654 = vpop.f32.mrb[0].mxu0
          %v655 = vadd.f32 %v556, %v654
          %v656 = vpop.f32.mrb[0].mxu0
          %657 = vmatprep.mubr.bf16.mxu0 0
          %658 = vmatmul.mubr.bf16.gmra.mrb[0].mxu0 %v599
          %v659 = vpop.f32.mrb[0].mxu0
          %v660 = vadd.f32 %v561, %v659
          %v661 = vpop.f32.mrb[0].mxu0
          %v662 = vpop.f32.mrb[0].mxu0
          %v663 = vadd.f32 %v566, %v662
          %v664 = vpop.f32.mrb[0].mxu0
          %665 = vdwg.mxu0
          %v666 = vpack.c.bf16 %v639, %v636
          %v667 = vpack.c.bf16 %v647, %v644
          %v668 = vpack.c.bf16 %v655, %v652
          %v669 = vpack.c.bf16 %v663, %v660
          %670 = vst [vmem:[#allocation2] sm:$0xff] %v666
          %671 = vst [vmem:[#allocation2 + $0x8] sm:$0xff] %v667
          %672 = vst [vmem:[#allocation2 + $0x10] sm:$0xff] %v668
          %673 = vst [vmem:[#allocation2 + $0x18] sm:$0xff] %v669
          %674 = vst [vmem:[#allocation5] sm:$0xf] -inf
          %675 = vst [vmem:[#allocation6] sm:$0xf] 0.0
          %676 = vst [vmem:[#allocation7] sm:$0xff] 0.0
          %677 = vst [vmem:[#allocation7 + $0x8] sm:$0xff] 0.0
          %678 = vst [vmem:[#allocation7 + $0x10] sm:$0xff] 0.0
          %679 = vst [vmem:[#allocation7 + $0x18] sm:$0xff] 0.0
          %680 = vst [vmem:[#allocation7 + $0x20] sm:$0xff] 0.0
          %681 = vst [vmem:[#allocation7 + $0x28] sm:$0xff] 0.0
          %682 = vst [vmem:[#allocation7 + $0x30] sm:$0xff] 0.0
          %683 = vst [vmem:[#allocation7 + $0x38] sm:$0xff] 0.0
        $region106: #{tpu_custom_call.1} parent=81 // pred_fallthru
          _
        %s684 = smul.u32 %s35, 128
        %p685 = scmp.eq.s32.totalorder %s34, 0
        // Predicated region
        $region107: #{tpu_custom_call.1} parent=81 // pred_check
          %p686 = pneg %p685
        $region108: #{tpu_custom_call.1} parent=81 // pred_check_branch
          %688 = sbr.rel (%p686) target = $region110
        $region109: #{tpu_custom_call.1} parent=81 // pred_region
          %s689 = scalar_lea.vmem [#allocation14], 32
          %v690 = vld [vmem:[%s689] sm:$0xf]
          %v691 = vld [vmem:[%s689 + $0x4] sm:$0xf]
          %v692 = vld [vmem:[%s689 + $0x8] sm:$0xf]
          %v693 = vld [vmem:[%s689 + $0xc] sm:$0xf]
          %v694 = vld [vmem:[%s689 + $0x10] sm:$0xf]
          %v695 = vld [vmem:[%s689 + $0x14] sm:$0xf]
          %v696 = vld [vmem:[%s689 + $0x18] sm:$0xf]
          %v697 = vld [vmem:[%s689 + $0x1c] sm:$0xf]
          %v698 = vld [vmem:[%s434] sm:$0xff]
          %v699 = vld [vmem:[%s434 + $0x8] sm:$0xff]
          %v700 = vld [vmem:[%s434 + $0x10] sm:$0xff]
          %v701 = vld [vmem:[%s434 + $0x18] sm:$0xff]
          %v702 = vld [vmem:[%s434 + $0x20] sm:$0xff]
          %v703 = vld [vmem:[%s434 + $0x28] sm:$0xff]
          %v704 = vld [vmem:[%s434 + $0x30] sm:$0xff]
          %v705 = vld [vmem:[%s434 + $0x38] sm:$0xff]
          %v706 = vpack.c.bf16 %v699, %v698
          %v707 = vpack.c.bf16 %v701, %v700
          %v708 = vpack.c.bf16 %v703, %v702
          %v709 = vpack.c.bf16 %v705, %v704
          %s710 = scalar_lea.vmem %s4, 64
          %v711 = vld [vmem:[%s710] sm:$0xff]
          %v712 = vld [vmem:[%s710 + $0x8] sm:$0xff]
          %v713 = vld [vmem:[%s710 + $0x10] sm:$0xff]
          %v714 = vld [vmem:[%s710 + $0x18] sm:$0xff]
          %v715 = vld [vmem:[%s710 + $0x20] sm:$0xff]
          %v716 = vld [vmem:[%s710 + $0x28] sm:$0xff]
          %v717 = vld [vmem:[%s710 + $0x30] sm:$0xff]
          %v718 = vld [vmem:[%s710 + $0x38] sm:$0xff]
          %720 = vset.pattern.permute.xlu0 0
          %721 = vperm.xlu0 %720, %v711
          %v722 = vpop.permute.xlu0 %721
          %725 = vset.pattern.permute.xlu0 0
          %726 = vperm.xlu0 %725, %v712
          %v727 = vpop.permute.xlu0 %726
          %730 = vset.pattern.permute.xlu0 0
          %731 = vperm.xlu0 %730, %v713
          %v732 = vpop.permute.xlu0 %731
          %735 = vset.pattern.permute.xlu0 0
          %736 = vperm.xlu0 %735, %v714
          %v737 = vpop.permute.xlu0 %736
          %740 = vset.pattern.permute.xlu0 0
          %741 = vperm.xlu0 %740, %v715
          %v742 = vpop.permute.xlu0 %741
          %745 = vset.pattern.permute.xlu0 0
          %746 = vperm.xlu0 %745, %v716
          %v747 = vpop.permute.xlu0 %746
          %750 = vset.pattern.permute.xlu0 0
          %751 = vperm.xlu0 %750, %v717
          %v752 = vpop.permute.xlu0 %751
          %755 = vset.pattern.permute.xlu0 0
          %756 = vperm.xlu0 %755, %v718
          %v757 = vpop.permute.xlu0 %756
          %v767 = vunpack.c.l.b16 %v690
          %v768 = vunpack.c.l.b16 %v691
          %v769 = vunpack.c.l.b16 %v692
          %v770 = vunpack.c.l.b16 %v693
          %v771 = vunpack.c.l.b16 %v694
          %v772 = vunpack.c.l.b16 %v695
          %v773 = vunpack.c.l.b16 %v696
          %v774 = vunpack.c.l.b16 %v697
          %v775 = vpack.c.b16 %v768, %v767
          %v776 = vpack.c.b16 %v770, %v769
          %v777 = vpack.c.b16 %v772, %v771
          %v778 = vpack.c.b16 %v774, %v773
          %vm779 = vcmask 523264
          %v781 = vsel %vm779, %v775, 0
          %v784 = vsel %vm779, %v776, 0
          %v787 = vsel %vm779, %v777, 0
          %v790 = vsel %vm779, %v778, 0
          %792 = vmatprep.subr.bf16.mxu0 0
          %793 = vmatpush1.bf16.msra.mxu0 %v706
          %794 = vmatprep.subr.bf16.mxu0 0
          %795 = vmatpush1.bf16.msra.mxu0 %v707
          %796 = vmatprep.subr.bf16.mxu0 0
          %797 = vmatpush1.bf16.msra.mxu0 %v708
          %798 = vmatprep.subr.bf16.mxu0 0
          %799 = vmatpush1.bf16.msra.mxu0 %v709
          %800 = vmatprep.subr.bf16.mxu0 0
          %801 = vmatpush1.bf16.msra.mxu0 0
          %802 = vmatprep.subr.bf16.mxu0 0
          %803 = vmatpush1.bf16.msra.mxu0 0
          %804 = vmatprep.subr.bf16.mxu0 0
          %805 = vmatpush1.bf16.msra.mxu0 0
          %806 = vmatprep.subr.bf16.mxu0 0
          %807 = vmatpush1.bf16.msra.mxu0 0
          %808 = vmatprep.subr.bf16.mxu0 0
          %809 = vmatpush1.bf16.msra.mxu0 0
          %810 = vmatprep.subr.bf16.mxu0 0
          %811 = vmatpush1.bf16.msra.mxu0 0
          %812 = vmatprep.subr.bf16.mxu0 0
          %813 = vmatpush1.bf16.msra.mxu0 0
          %814 = vmatprep.subr.bf16.mxu0 0
          %815 = vmatpush1.bf16.msra.mxu0 0
          %816 = vmatprep.subr.bf16.mxu0 0
          %817 = vmatpush1.bf16.msra.mxu0 0
          %818 = vmatprep.subr.bf16.mxu0 0
          %819 = vmatpush1.bf16.msra.mxu0 0
          %820 = vmatprep.subr.bf16.mxu0 0
          %821 = vmatpush1.bf16.msra.mxu0 0
          %822 = vmatprep.subr.bf16.mxu0 0
          %823 = vmatpush1.bf16.msra.mxu0 0
          %824 = vmatprep.mubr.bf16.mxu0 0
          %825 = vmatmul.mubr.bf16.gmra.mrb[0].mxu0 %v781
          %v826 = vpop.f32.mrb[0].mxu0
          %v827 = vadd.f32 %v722, %v826
          %v828 = vpop.f32.mrb[0].mxu0
          %v829 = vpop.f32.mrb[0].mxu0
          %v830 = vadd.f32 %v727, %v829
          %v831 = vpop.f32.mrb[0].mxu0
          %832 = vmatprep.mubr.bf16.mxu0 0
          %833 = vmatmul.mubr.bf16.gmra.mrb[0].mxu0 %v784
          %v834 = vpop.f32.mrb[0].mxu0
          %v835 = vadd.f32 %v732, %v834
          %v836 = vpop.f32.mrb[0].mxu0
          %v837 = vpop.f32.mrb[0].mxu0
          %v838 = vadd.f32 %v737, %v837
          %v839 = vpop.f32.mrb[0].mxu0
          %840 = vmatprep.mubr.bf16.mxu0 0
          %841 = vmatmul.mubr.bf16.gmra.mrb[0].mxu0 %v787
          %v842 = vpop.f32.mrb[0].mxu0
          %v843 = vadd.f32 %v742, %v842
          %v844 = vpop.f32.mrb[0].mxu0
          %v845 = vpop.f32.mrb[0].mxu0
          %v846 = vadd.f32 %v747, %v845
          %v847 = vpop.f32.mrb[0].mxu0
          %848 = vmatprep.mubr.bf16.mxu0 0
          %849 = vmatmul.mubr.bf16.gmra.mrb[0].mxu0 %v790
          %v850 = vpop.f32.mrb[0].mxu0
          %v851 = vadd.f32 %v752, %v850
          %v852 = vpop.f32.mrb[0].mxu0
          %v853 = vpop.f32.mrb[0].mxu0
          %v854 = vadd.f32 %v757, %v853
          %v855 = vpop.f32.mrb[0].mxu0
          %856 = vdwg.mxu0
          %s857 = scalar_lea.vmem [#allocation14], 64
          %v858 = vld [vmem:[%s857] sm:$0xf]
          %v859 = vld [vmem:[%s857 + $0x4] sm:$0xf]
          %v860 = vld [vmem:[%s857 + $0x8] sm:$0xf]
          %v861 = vld [vmem:[%s857 + $0xc] sm:$0xf]
          %v862 = vld [vmem:[%s857 + $0x10] sm:$0xf]
          %v863 = vld [vmem:[%s857 + $0x14] sm:$0xf]
          %v864 = vld [vmem:[%s857 + $0x18] sm:$0xf]
          %v865 = vld [vmem:[%s857 + $0x1c] sm:$0xf]
          %v866 = vld [vmem:[%s443] sm:$0xff]
          %v867 = vld [vmem:[%s443 + $0x8] sm:$0xff]
          %v868 = vld [vmem:[%s443 + $0x10] sm:$0xff]
          %v869 = vld [vmem:[%s443 + $0x18] sm:$0xff]
          %v870 = vld [vmem:[%s443 + $0x20] sm:$0xff]
          %v871 = vld [vmem:[%s443 + $0x28] sm:$0xff]
          %v872 = vld [vmem:[%s443 + $0x30] sm:$0xff]
          %v873 = vld [vmem:[%s443 + $0x38] sm:$0xff]
          %v874 = vpack.c.bf16 %v867, %v866
          %v875 = vpack.c.bf16 %v869, %v868
          %v876 = vpack.c.bf16 %v871, %v870
          %v877 = vpack.c.bf16 %v873, %v872
          %s878 = scalar_lea.vmem %s4, 128
          %v879 = vld [vmem:[%s878] sm:$0xff]
          %v880 = vld [vmem:[%s878 + $0x8] sm:$0xff]
          %v881 = vld [vmem:[%s878 + $0x10] sm:$0xff]
          %v882 = vld [vmem:[%s878 + $0x18] sm:$0xff]
          %v883 = vld [vmem:[%s878 + $0x20] sm:$0xff]
          %v884 = vld [vmem:[%s878 + $0x28] sm:$0xff]
          %v885 = vld [vmem:[%s878 + $0x30] sm:$0xff]
          %v886 = vld [vmem:[%s878 + $0x38] sm:$0xff]
          %888 = vset.pattern.permute.xlu0 0
          %889 = vperm.xlu0 %888, %v879
          %v890 = vpop.permute.xlu0 %889
          %893 = vset.pattern.permute.xlu0 0
          %894 = vperm.xlu0 %893, %v880
          %v895 = vpop.permute.xlu0 %894
          %898 = vset.pattern.permute.xlu0 0
          %899 = vperm.xlu0 %898, %v881
          %v900 = vpop.permute.xlu0 %899
          %903 = vset.pattern.permute.xlu0 0
          %904 = vperm.xlu0 %903, %v882
          %v905 = vpop.permute.xlu0 %904
          %908 = vset.pattern.permute.xlu0 0
          %909 = vperm.xlu0 %908, %v883
          %v910 = vpop.permute.xlu0 %909
          %913 = vset.pattern.permute.xlu0 0
          %914 = vperm.xlu0 %913, %v884
          %v915 = vpop.permute.xlu0 %914
          %918 = vset.pattern.permute.xlu0 0
          %919 = vperm.xlu0 %918, %v885
          %v920 = vpop.permute.xlu0 %919
          %923 = vset.pattern.permute.xlu0 0
          %924 = vperm.xlu0 %923, %v886
          %v925 = vpop.permute.xlu0 %924
          %v935 = vunpack.c.l.b16 %v858
          %v936 = vunpack.c.l.b16 %v859
          %v937 = vunpack.c.l.b16 %v860
          %v938 = vunpack.c.l.b16 %v861
          %v939 = vunpack.c.l.b16 %v862
          %v940 = vunpack.c.l.b16 %v863
          %v941 = vunpack.c.l.b16 %v864
          %v942 = vunpack.c.l.b16 %v865
          %v943 = vpack.c.b16 %v936, %v935
          %v944 = vpack.c.b16 %v938, %v937
          %v945 = vpack.c.b16 %v940, %v939
          %v946 = vpack.c.b16 %v942, %v941
          %v948 = vsel %vm779, %v943, 0
          %v951 = vsel %vm779, %v944, 0
          %v954 = vsel %vm779, %v945, 0
          %v957 = vsel %vm779, %v946, 0
          %959 = vmatprep.subr.bf16.mxu0 0
          %960 = vmatpush1.bf16.msra.mxu0 %v874
          %961 = vmatprep.subr.bf16.mxu0 0
          %962 = vmatpush1.bf16.msra.mxu0 %v875
          %963 = vmatprep.subr.bf16.mxu0 0
          %964 = vmatpush1.bf16.msra.mxu0 %v876
          %965 = vmatprep.subr.bf16.mxu0 0
          %966 = vmatpush1.bf16.msra.mxu0 %v877
          %967 = vmatprep.subr.bf16.mxu0 0
          %968 = vmatpush1.bf16.msra.mxu0 0
          %969 = vmatprep.subr.bf16.mxu0 0
          %970 = vmatpush1.bf16.msra.mxu0 0
          %971 = vmatprep.subr.bf16.mxu0 0
          %972 = vmatpush1.bf16.msra.mxu0 0
          %973 = vmatprep.subr.bf16.mxu0 0
          %974 = vmatpush1.bf16.msra.mxu0 0
          %975 = vmatprep.subr.bf16.mxu0 0
          %976 = vmatpush1.bf16.msra.mxu0 0
          %977 = vmatprep.subr.bf16.mxu0 0
          %978 = vmatpush1.bf16.msra.mxu0 0
          %979 = vmatprep.subr.bf16.mxu0 0
          %980 = vmatpush1.bf16.msra.mxu0 0
          %981 = vmatprep.subr.bf16.mxu0 0
          %982 = vmatpush1.bf16.msra.mxu0 0
          %983 = vmatprep.subr.bf16.mxu0 0
          %984 = vmatpush1.bf16.msra.mxu0 0
          %985 = vmatprep.subr.bf16.mxu0 0
          %986 = vmatpush1.bf16.msra.mxu0 0
          %987 = vmatprep.subr.bf16.mxu0 0
          %988 = vmatpush1.bf16.msra.mxu0 0
          %989 = vmatprep.subr.bf16.mxu0 0
          %990 = vmatpush1.bf16.msra.mxu0 0
          %991 = vmatprep.mubr.bf16.mxu0 0
          %992 = vmatmul.mubr.bf16.gmra.mrb[0].mxu0 %v948
          %v993 = vpop.f32.mrb[0].mxu0
          %v994 = vadd.f32 %v890, %v993
          %v995 = vpop.f32.mrb[0].mxu0
          %v996 = vpop.f32.mrb[0].mxu0
          %v997 = vadd.f32 %v895, %v996
          %v998 = vpop.f32.mrb[0].mxu0
          %999 = vmatprep.mubr.bf16.mxu0 0
          %1000 = vmatmul.mubr.bf16.gmra.mrb[0].mxu0 %v951
          %v1001 = vpop.f32.mrb[0].mxu0
          %v1002 = vadd.f32 %v900, %v1001
          %v1003 = vpop.f32.mrb[0].mxu0
          %v1004 = vpop.f32.mrb[0].mxu0
          %v1005 = vadd.f32 %v905, %v1004
          %v1006 = vpop.f32.mrb[0].mxu0
          %1007 = vmatprep.mubr.bf16.mxu0 0
          %1008 = vmatmul.mubr.bf16.gmra.mrb[0].mxu0 %v954
          %v1009 = vpop.f32.mrb[0].mxu0
          %v1010 = vadd.f32 %v910, %v1009
          %v1011 = vpop.f32.mrb[0].mxu0
          %v1012 = vpop.f32.mrb[0].mxu0
          %v1013 = vadd.f32 %v915, %v1012
          %v1014 = vpop.f32.mrb[0].mxu0
          %1015 = vmatprep.mubr.bf16.mxu0 0
          %1016 = vmatmul.mubr.bf16.gmra.mrb[0].mxu0 %v957
          %v1017 = vpop.f32.mrb[0].mxu0
          %v1018 = vadd.f32 %v920, %v1017
          %v1019 = vpop.f32.mrb[0].mxu0
          %v1020 = vpop.f32.mrb[0].mxu0
          %v1021 = vadd.f32 %v925, %v1020
          %v1022 = vpop.f32.mrb[0].mxu0
          %1023 = vdwg.mxu0
          %v1024 = vpack.c.bf16 %v830, %v827
          %v1025 = vpack.c.bf16 %v838, %v835
          %v1026 = vpack.c.bf16 %v846, %v843
          %v1027 = vpack.c.bf16 %v854, %v851
          %s1028 = sshra.s32 %s684, 7
          %s1029 = sand.u32 %s684, 127
          %s1030 = smul.addr %s1028, 8
          %s1031 = scalar_lea.vmem [#allocation3], %s1030
          %1032 = vst [vmem:[%s1031] sm:$0xff] %v1024
          %1033 = vst [vmem:[%s1031 + $0x18] sm:$0xff] %v1025
          %1034 = vst [vmem:[%s1031 + $0x30] sm:$0xff] %v1026
          %1035 = vst [vmem:[%s1031 + $0x48] sm:$0xff] %v1027
          %v1036 = vpack.c.bf16 %v997, %v994
          %v1037 = vpack.c.bf16 %v1005, %v1002
          %v1038 = vpack.c.bf16 %v1013, %v1010
          %v1039 = vpack.c.bf16 %v1021, %v1018
          %s1040 = smul.addr %s1028, 8
          %s1041 = scalar_lea.vmem [#allocation4], %s1040
          %1042 = vst [vmem:[%s1041] sm:$0xff] %v1036
          %1043 = vst [vmem:[%s1041 + $0x18] sm:$0xff] %v1037
          %1044 = vst [vmem:[%s1041 + $0x30] sm:$0xff] %v1038
          %1045 = vst [vmem:[%s1041 + $0x48] sm:$0xff] %v1039
        $region110: #{tpu_custom_call.1} parent=81 // pred_fallthru
          _
        %v1046 = vld [vmem:[#allocation2] sm:$0xff]
        %s1047 = sshra.s32 %s684, 7
        %s1048 = sand.u32 %s684, 127
        %s1049 = smul.u32 0, 3
        %s1050 = sadd.s32 %s1047, %s1049
        %s1051 = smul.addr %s1050, 8
        %s1052 = scalar_lea.vmem [#allocation3], %s1051
        %v1053 = vld [vmem:[%s1052] sm:$0xff]
        %s1054 = smul.addr %s1050, 8
        %s1055 = scalar_lea.vmem [#allocation4], %s1054
        %v1056 = vld [vmem:[%s1055] sm:$0xff]
        %1057 = vxpose.xlu0.c.b16.start [1/8] %v1053, 128
        %1058 = vxpose.xlu0.c.b16.cont [2/8] 0, 128
        %1059 = vxpose.xlu0.c.b16.cont [3/8] 0, 128
        %1060 = vxpose.xlu0.c.b16.cont [4/8] 0, 128
        %1061 = vxpose.xlu0.c.b16.cont [5/8] 0, 128
        %1062 = vxpose.xlu0.c.b16.cont [6/8] 0, 128
        %1063 = vxpose.xlu0.c.b16.cont [7/8] 0, 128
        %1064 = vxpose.xlu0.c.b16.end [8/8] 0, 128
        %v1065 = vpop.trf.xlu0
        %v1066 = vpop.trf.xlu0
        %v1067 = vpop.trf.xlu0
        %v1068 = vpop.trf.xlu0
        %v1069 = vpop.trf.xlu0
        %v1070 = vpop.trf.xlu0
        %v1071 = vpop.trf.xlu0
        %v1072 = vpop.trf.xlu0
        %vm1073 = vcmask 130048
        %v1075 = vsel %vm1073, %v1065, 0
        %v1078 = vsel %vm1073, %v1066, 0
        %v1081 = vsel %vm1073, %v1067, 0
        %v1084 = vsel %vm1073, %v1068, 0
        %v1087 = vsel %vm1073, %v1069, 0
        %v1090 = vsel %vm1073, %v1070, 0
        %v1093 = vsel %vm1073, %v1071, 0
        %v1096 = vsel %vm1073, %v1072, 0
        %1098 = vmatprep.subr.bf16.mxu0 0
        %1099 = vmatpush1.bf16.msra.mxu0 %v1046
        %1100 = vmatprep.subr.bf16.mxu0 0
        %1101 = vmatpush1.bf16.msra.mxu0 0
        %1102 = vmatprep.subr.bf16.mxu0 0
        %1103 = vmatpush1.bf16.msra.mxu0 0
        %1104 = vmatprep.subr.bf16.mxu0 0
        %1105 = vmatpush1.bf16.msra.mxu0 0
        %1106 = vmatprep.subr.bf16.mxu0 0
        %1107 = vmatpush1.bf16.msra.mxu0 0
        %1108 = vmatprep.subr.bf16.mxu0 0
        %1109 = vmatpush1.bf16.msra.mxu0 0
        %1110 = vmatprep.subr.bf16.mxu0 0
        %1111 = vmatpush1.bf16.msra.mxu0 0
        %1112 = vmatprep.subr.bf16.mxu0 0
        %1113 = vmatpush1.bf16.msra.mxu0 0
        %1114 = vmatprep.subr.bf16.mxu0 0
        %1115 = vmatpush1.bf16.msra.mxu0 0
        %1116 = vmatprep.subr.bf16.mxu0 0
        %1117 = vmatpush1.bf16.msra.mxu0 0
        %1118 = vmatprep.subr.bf16.mxu0 0
        %1119 = vmatpush1.bf16.msra.mxu0 0
        %1120 = vmatprep.subr.bf16.mxu0 0
        %1121 = vmatpush1.bf16.msra.mxu0 0
        %1122 = vmatprep.subr.bf16.mxu0 0
        %1123 = vmatpush1.bf16.msra.mxu0 0
        %1124 = vmatprep.subr.bf16.mxu0 0
        %1125 = vmatpush1.bf16.msra.mxu0 0
        %1126 = vmatprep.subr.bf16.mxu0 0
        %1127 = vmatpush1.bf16.msra.mxu0 0
        %1128 = vmatprep.subr.bf16.mxu0 0
        %1129 = vmatpush1.bf16.msra.mxu0 0
        %1130 = vmatprep.mubr.bf16.mxu0 0
        %1131 = vmatmul.mubr.bf16.gmra.mrb[0].mxu0 %v1075
        %v1132 = vpop.f32.mrb[0].mxu0
        %v1133 = vadd.f32 0.0, %v1132
        %v1134 = vpop.f32.mrb[0].mxu0
        %v1135 = vpop.f32.mrb[0].mxu0
        %v1136 = vadd.f32 0.0, %v1135
        %v1137 = vpop.f32.mrb[0].mxu0
        %1138 = vmatprep.mubr.bf16.mxu0 0
        %1139 = vmatmul.mubr.bf16.gmra.mrb[0].mxu0 %v1078
        %v1140 = vpop.f32.mrb[0].mxu0
        %v1141 = vadd.f32 0.0, %v1140
        %v1142 = vpop.f32.mrb[0].mxu0
        %v1143 = vpop.f32.mrb[0].mxu0
        %v1144 = vadd.f32 0.0, %v1143
        %v1145 = vpop.f32.mrb[0].mxu0
        %1146 = vmatprep.mubr.bf16.mxu0 0
        %1147 = vmatmul.mubr.bf16.gmra.mrb[0].mxu0 %v1081
        %v1148 = vpop.f32.mrb[0].mxu0
        %v1149 = vadd.f32 0.0, %v1148
        %v1150 = vpop.f32.mrb[0].mxu0
        %v1151 = vpop.f32.mrb[0].mxu0
        %v1152 = vadd.f32 0.0, %v1151
        %v1153 = vpop.f32.mrb[0].mxu0
        %1154 = vmatprep.mubr.bf16.mxu0 0
        %1155 = vmatmul.mubr.bf16.gmra.mrb[0].mxu0 %v1084
        %v1156 = vpop.f32.mrb[0].mxu0
        %v1157 = vadd.f32 0.0, %v1156
        %v1158 = vpop.f32.mrb[0].mxu0
        %v1159 = vpop.f32.mrb[0].mxu0
        %v1160 = vadd.f32 0.0, %v1159
        %v1161 = vpop.f32.mrb[0].mxu0
        %1162 = vmatprep.mubr.bf16.mxu0 0
        %1163 = vmatmul.mubr.bf16.gmra.mrb[0].mxu0 %v1087
        %v1164 = vpop.f32.mrb[0].mxu0
        %v1165 = vadd.f32 0.0, %v1164
        %v1166 = vpop.f32.mrb[0].mxu0
        %v1167 = vpop.f32.mrb[0].mxu0
        %v1168 = vadd.f32 0.0, %v1167
        %v1169 = vpop.f32.mrb[0].mxu0
        %1170 = vmatprep.mubr.bf16.mxu0 0
        %1171 = vmatmul.mubr.bf16.gmra.mrb[0].mxu0 %v1090
        %v1172 = vpop.f32.mrb[0].mxu0
        %v1173 = vadd.f32 0.0, %v1172
        %v1174 = vpop.f32.mrb[0].mxu0
        %v1175 = vpop.f32.mrb[0].mxu0
        %v1176 = vadd.f32 0.0, %v1175
        %v1177 = vpop.f32.mrb[0].mxu0
        %1178 = vmatprep.mubr.bf16.mxu0 0
        %1179 = vmatmul.mubr.bf16.gmra.mrb[0].mxu0 %v1093
        %v1180 = vpop.f32.mrb[0].mxu0
        %v1181 = vadd.f32 0.0, %v1180
        %v1182 = vpop.f32.mrb[0].mxu0
        %v1183 = vpop.f32.mrb[0].mxu0
        %v1184 = vadd.f32 0.0, %v1183
        %v1185 = vpop.f32.mrb[0].mxu0
        %1186 = vmatprep.mubr.bf16.mxu0 0
        %1187 = vmatmul.mubr.bf16.gmra.mrb[0].mxu0 %v1096
        %v1188 = vpop.f32.mrb[0].mxu0
        %v1189 = vadd.f32 0.0, %v1188
        %v1190 = vpop.f32.mrb[0].mxu0
        %v1191 = vpop.f32.mrb[0].mxu0
        %v1192 = vadd.f32 0.0, %v1191
        %v1193 = vpop.f32.mrb[0].mxu0
        %1194 = vdwg.mxu0
        %v1195 = vld [vmem:[#allocation5] sm:$0x1]
        %v1196 = vld [vmem:[#allocation6] sm:$0x1]
        %v1197 = vmax.f32 %v1133, %v1149
        %v1198 = vmax.f32 %v1136, %v1152
        %v1199 = vmax.f32 %v1141, %v1157
        %v1200 = vmax.f32 %v1144, %v1160
        %v1201 = vmax.f32 %v1197, %v1165
        %v1202 = vmax.f32 %v1198, %v1168
        %v1203 = vmax.f32 %v1199, %v1173
        %v1204 = vmax.f32 %v1200, %v1176
        %v1205 = vmax.f32 %v1201, %v1181
        %v1206 = vmax.f32 %v1202, %v1184
        %v1207 = vmax.f32 %v1203, %v1189
        %v1208 = vmax.f32 %v1204, %v1192
        %v1209 = vmax.f32 %v1205, %v1206
        %v1210 = vmax.f32 %v1207, %v1208
        %v1211 = vmax.f32 %v1209, %v1210
        %v1212 = vrot.slane %v1211, 4
        %v1213 = vmax.f32 %v1211, %v1212
        %v1214 = vrot.slane %v1213, 2
        %v1215 = vmax.f32 %v1213, %v1214
        %v1216 = vrot.slane %v1215, 1
        %v1217 = vmax.f32 %v1215, %v1216
        %v1218 = vmax.f32 %v1195, %v1217
        %v1219 = vsub.f32 %v1195, %v1218
        %v1220 = vmul.f32 %v1219, 1.442695
        %v1221 = vpow.pop %v1220
        %v1222 = vlaneseq
        %v1223 = vshrl.u32 %v1222, 7
        %v1224 = vsub.s32 0, %v1223
        %v1225 = vrot.slane %v1218, %v1224
        %v1226 = vsub.f32 %v1133, %v1225
        %v1227 = vsub.f32 %v1136, %v1225
        %v1228 = vsub.f32 %v1141, %v1225
        %v1229 = vsub.f32 %v1144, %v1225
        %v1230 = vsub.f32 %v1149, %v1225
        %v1231 = vsub.f32 %v1152, %v1225
        %v1232 = vsub.f32 %v1157, %v1225
        %v1233 = vsub.f32 %v1160, %v1225
        %v1234 = vsub.f32 %v1165, %v1225
        %v1235 = vsub.f32 %v1168, %v1225
        %v1236 = vsub.f32 %v1173, %v1225
        %v1237 = vsub.f32 %v1176, %v1225
        %v1238 = vsub.f32 %v1181, %v1225
        %v1239 = vsub.f32 %v1184, %v1225
        %v1240 = vsub.f32 %v1189, %v1225
        %v1241 = vsub.f32 %v1192, %v1225
        %v1242 = vmul.f32 %v1226, 1.442695
        %v1243 = vpow.pop %v1242
        %v1244 = vmul.f32 %v1227, 1.442695
        %v1245 = vpow.pop %v1244
        %v1246 = vmul.f32 %v1228, 1.442695
        %v1247 = vpow.pop %v1246
        %v1248 = vmul.f32 %v1229, 1.442695
        %v1249 = vpow.pop %v1248
        %v1250 = vmul.f32 %v1230, 1.442695
        %v1251 = vpow.pop %v1250
        %v1252 = vmul.f32 %v1231, 1.442695
        %v1253 = vpow.pop %v1252
        %v1254 = vmul.f32 %v1232, 1.442695
        %v1255 = vpow.pop %v1254
        %v1256 = vmul.f32 %v1233, 1.442695
        %v1257 = vpow.pop %v1256
        %v1258 = vmul.f32 %v1234, 1.442695
        %v1259 = vpow.pop %v1258
        %v1260 = vmul.f32 %v1235, 1.442695
        %v1261 = vpow.pop %v1260
        %v1262 = vmul.f32 %v1236, 1.442695
        %v1263 = vpow.pop %v1262
        %v1264 = vmul.f32 %v1237, 1.442695
        %v1265 = vpow.pop %v1264
        %v1266 = vmul.f32 %v1238, 1.442695
        %v1267 = vpow.pop %v1266
        %v1268 = vmul.f32 %v1239, 1.442695
        %v1269 = vpow.pop %v1268
        %v1270 = vmul.f32 %v1240, 1.442695
        %v1271 = vpow.pop %v1270
        %v1272 = vmul.f32 %v1241, 1.442695
        %v1273 = vpow.pop %v1272
        %1274 = vst [vmem:[#allocation5] sm:$0x1] %v1218
        %v1275 = vmul.f32 %v1221, %v1196
        %v1276 = vadd.f32 %v1243, %v1245
        %v1277 = vadd.f32 %v1276, %v1247
        %v1278 = vadd.f32 %v1277, %v1249
        %v1279 = vadd.f32 %v1278, %v1251
        %v1280 = vadd.f32 %v1279, %v1253
        %v1281 = vadd.f32 %v1280, %v1255
        %v1282 = vadd.f32 %v1281, %v1257
        %v1283 = vadd.f32 %v1282, %v1259
        %v1284 = vadd.f32 %v1283, %v1261
        %v1285 = vadd.f32 %v1284, %v1263
        %v1286 = vadd.f32 %v1285, %v1265
        %v1287 = vadd.f32 %v1286, %v1267
        %v1288 = vadd.f32 %v1287, %v1269
        %v1289 = vadd.f32 %v1288, %v1271
        %v1290 = vadd.f32 %v1289, %v1273
        %v1291 = vrot.slane %v1290, 4
        %v1292 = vadd.f32 %v1290, %v1291
        %v1293 = vrot.slane %v1292, 2
        %v1294 = vadd.f32 %v1292, %v1293
        %v1295 = vrot.slane %v1294, 1
        %v1296 = vadd.f32 %v1294, %v1295
        %v1297 = vadd.f32 %v1275, %v1296
        %1298 = vst [vmem:[#allocation6] sm:$0x1] %v1297
        %v1299 = vpack.c.bf16 %v1245, %v1243
        %v1300 = vpack.c.bf16 %v1249, %v1247
        %v1301 = vpack.c.bf16 %v1253, %v1251
        %v1302 = vpack.c.bf16 %v1257, %v1255
        %v1303 = vpack.c.bf16 %v1261, %v1259
        %v1304 = vpack.c.bf16 %v1265, %v1263
        %v1305 = vpack.c.bf16 %v1269, %v1267
        %v1306 = vpack.c.bf16 %v1273, %v1271
        %1307 = vmatprep.subr.bf16.mxu0 0
        %1308 = vmatpush1.bf16.msra.mxu0 %v1299
        %1309 = vmatprep.subr.bf16.mxu0 0
        %1310 = vmatpush1.bf16.msra.mxu0 %v1300
        %1311 = vmatprep.subr.bf16.mxu0 0
        %1312 = vmatpush1.bf16.msra.mxu0 %v1301
        %1313 = vmatprep.subr.bf16.mxu0 0
        %1314 = vmatpush1.bf16.msra.mxu0 %v1302
        %1315 = vmatprep.subr.bf16.mxu0 0
        %1316 = vmatpush1.bf16.msra.mxu0 %v1303
        %1317 = vmatprep.subr.bf16.mxu0 0
        %1318 = vmatpush1.bf16.msra.mxu0 %v1304
        %1319 = vmatprep.subr.bf16.mxu0 0
        %1320 = vmatpush1.bf16.msra.mxu0 %v1305
        %1321 = vmatprep.subr.bf16.mxu0 0
        %1322 = vmatpush1.bf16.msra.mxu0 %v1306
        %1323 = vmatprep.subr.bf16.mxu0 0
        %1324 = vmatpush1.bf16.msra.mxu0 0
        %1325 = vmatprep.subr.bf16.mxu0 0
        %1326 = vmatpush1.bf16.msra.mxu0 0
        %1327 = vmatprep.subr.bf16.mxu0 0
        %1328 = vmatpush1.bf16.msra.mxu0 0
        %1329 = vmatprep.subr.bf16.mxu0 0
        %1330 = vmatpush1.bf16.msra.mxu0 0
        %1331 = vmatprep.subr.bf16.mxu0 0
        %1332 = vmatpush1.bf16.msra.mxu0 0
        %1333 = vmatprep.subr.bf16.mxu0 0
        %1334 = vmatpush1.bf16.msra.mxu0 0
        %1335 = vmatprep.subr.bf16.mxu0 0
        %1336 = vmatpush1.bf16.msra.mxu0 0
        %1337 = vmatprep.subr.bf16.mxu0 0
        %1338 = vmatpush1.bf16.msra.mxu0 0
        %1339 = vmatprep.mubr.bf16.mxu0 0
        %1340 = vmatmul.mubr.bf16.gmra.mrb[0].mxu0 %v1056
        %v1341 = vpop.f32.mrb[0].mxu0
        %v1342 = vadd.f32 0.0, %v1341
        %v1343 = vpop.f32.mrb[0].mxu0
        %v1344 = vpop.f32.mrb[0].mxu0
        %v1345 = vadd.f32 0.0, %v1344
        %v1346 = vpop.f32.mrb[0].mxu0
        %1347 = vdwg.mxu0
        %v1348 = vld [vmem:[#allocation7] sm:$0xff]
        %v1349 = vld [vmem:[#allocation7 + $0x8] sm:$0xff]
        %v1350 = vlaneseq
        %v1351 = vshrl.u32 %v1350, 7
        %v1352 = vsub.s32 0, %v1351
        %v1353 = vrot.slane %v1221, %v1352
        %v1354 = vmul.f32 %v1353, %v1348
        %v1355 = vmul.f32 %v1353, %v1349
        %v1356 = vadd.f32 %v1354, %v1342
        %v1357 = vadd.f32 %v1355, %v1345
        %1358 = vst [vmem:[#allocation7] sm:$0xff] %v1356
        %1359 = vst [vmem:[#allocation7 + $0x8] sm:$0xff] %v1357
        %s1360 = scalar_lea.vmem [#allocation2], 8
        %v1361 = vld [vmem:[%s1360] sm:$0xff]
        %s1362 = smul.u32 1, 3
        %s1363 = sadd.s32 %s1047, %s1362
        %s1364 = smul.addr %s1363, 8
        %s1365 = scalar_lea.vmem [#allocation3], %s1364
        %v1366 = vld [vmem:[%s1365] sm:$0xff]
        %s1367 = smul.addr %s1363, 8
        %s1368 = scalar_lea.vmem [#allocation4], %s1367
        %v1369 = vld [vmem:[%s1368] sm:$0xff]
        %1370 = vxpose.xlu0.c.b16.start [1/8] %v1366, 128
        %1371 = vxpose.xlu0.c.b16.cont [2/8] 0, 128
        %1372 = vxpose.xlu0.c.b16.cont [3/8] 0, 128
        %1373 = vxpose.xlu0.c.b16.cont [4/8] 0, 128
        %1374 = vxpose.xlu0.c.b16.cont [5/8] 0, 128
        %1375 = vxpose.xlu0.c.b16.cont [6/8] 0, 128
        %1376 = vxpose.xlu0.c.b16.cont [7/8] 0, 128
        %1377 = vxpose.xlu0.c.b16.end [8/8] 0, 128
        %v1378 = vpop.trf.xlu0
        %v1379 = vpop.trf.xlu0
        %v1380 = vpop.trf.xlu0
        %v1381 = vpop.trf.xlu0
        %v1382 = vpop.trf.xlu0
        %v1383 = vpop.trf.xlu0
        %v1384 = vpop.trf.xlu0
        %v1385 = vpop.trf.xlu0
        %v1387 = vsel %vm1073, %v1378, 0
        %v1390 = vsel %vm1073, %v1379, 0
        %v1393 = vsel %vm1073, %v1380, 0
        %v1396 = vsel %vm1073, %v1381, 0
        %v1399 = vsel %vm1073, %v1382, 0
        %v1402 = vsel %vm1073, %v1383, 0
        %v1405 = vsel %vm1073, %v1384, 0
        %v1408 = vsel %vm1073, %v1385, 0
        %1410 = vmatprep.subr.bf16.mxu0 0
        %1411 = vmatpush1.bf16.msra.mxu0 %v1361
        %1412 = vmatprep.subr.bf16.mxu0 0
        %1413 = vmatpush1.bf16.msra.mxu0 0
        %1414 = vmatprep.subr.bf16.mxu0 0
        %1415 = vmatpush1.bf16.msra.mxu0 0
        %1416 = vmatprep.subr.bf16.mxu0 0
        %1417 = vmatpush1.bf16.msra.mxu0 0
        %1418 = vmatprep.subr.bf16.mxu0 0
        %1419 = vmatpush1.bf16.msra.mxu0 0
        %1420 = vmatprep.subr.bf16.mxu0 0
        %1421 = vmatpush1.bf16.msra.mxu0 0
        %1422 = vmatprep.subr.bf16.mxu0 0
        %1423 = vmatpush1.bf16.msra.mxu0 0
        %1424 = vmatprep.subr.bf16.mxu0 0
        %1425 = vmatpush1.bf16.msra.mxu0 0
        %1426 = vmatprep.subr.bf16.mxu0 0
        %1427 = vmatpush1.bf16.msra.mxu0 0
        %1428 = vmatprep.subr.bf16.mxu0 0
        %1429 = vmatpush1.bf16.msra.mxu0 0
        %1430 = vmatprep.subr.bf16.mxu0 0
        %1431 = vmatpush1.bf16.msra.mxu0 0
        %1432 = vmatprep.subr.bf16.mxu0 0
        %1433 = vmatpush1.bf16.msra.mxu0 0
        %1434 = vmatprep.subr.bf16.mxu0 0
        %1435 = vmatpush1.bf16.msra.mxu0 0
        %1436 = vmatprep.subr.bf16.mxu0 0
        %1437 = vmatpush1.bf16.msra.mxu0 0
        %1438 = vmatprep.subr.bf16.mxu0 0
        %1439 = vmatpush1.bf16.msra.mxu0 0
        %1440 = vmatprep.subr.bf16.mxu0 0
        %1441 = vmatpush1.bf16.msra.mxu0 0
        %1442 = vmatprep.mubr.bf16.mxu0 0
        %1443 = vmatmul.mubr.bf16.gmra.mrb[0].mxu0 %v1387
        %v1444 = vpop.f32.mrb[0].mxu0
        %v1445 = vadd.f32 0.0, %v1444
        %v1446 = vpop.f32.mrb[0].mxu0
        %v1447 = vpop.f32.mrb[0].mxu0
        %v1448 = vadd.f32 0.0, %v1447
        %v1449 = vpop.f32.mrb[0].mxu0
        %1450 = vmatprep.mubr.bf16.mxu0 0
        %1451 = vmatmul.mubr.bf16.gmra.mrb[0].mxu0 %v1390
        %v1452 = vpop.f32.mrb[0].mxu0
        %v1453 = vadd.f32 0.0, %v1452
        %v1454 = vpop.f32.mrb[0].mxu0
        %v1455 = vpop.f32.mrb[0].mxu0
        %v1456 = vadd.f32 0.0, %v1455
        %v1457 = vpop.f32.mrb[0].mxu0
        %1458 = vmatprep.mubr.bf16.mxu0 0
        %1459 = vmatmul.mubr.bf16.gmra.mrb[0].mxu0 %v1393
        %v1460 = vpop.f32.mrb[0].mxu0
        %v1461 = vadd.f32 0.0, %v1460
        %v1462 = vpop.f32.mrb[0].mxu0
        %v1463 = vpop.f32.mrb[0].mxu0
        %v1464 = vadd.f32 0.0, %v1463
        %v1465 = vpop.f32.mrb[0].mxu0
        %1466 = vmatprep.mubr.bf16.mxu0 0
        %1467 = vmatmul.mubr.bf16.gmra.mrb[0].mxu0 %v1396
        %v1468 = vpop.f32.mrb[0].mxu0
        %v1469 = vadd.f32 0.0, %v1468
        %v1470 = vpop.f32.mrb[0].mxu0
        %v1471 = vpop.f32.mrb[0].mxu0
        %v1472 = vadd.f32 0.0, %v1471
        %v1473 = vpop.f32.mrb[0].mxu0
        %1474 = vmatprep.mubr.bf16.mxu0 0
        %1475 = vmatmul.mubr.bf16.gmra.mrb[0].mxu0 %v1399
        %v1476 = vpop.f32.mrb[0].mxu0
        %v1477 = vadd.f32 0.0, %v1476
        %v1478 = vpop.f32.mrb[0].mxu0
        %v1479 = vpop.f32.mrb[0].mxu0
        %v1480 = vadd.f32 0.0, %v1479
        %v1481 = vpop.f32.mrb[0].mxu0
        %1482 = vmatprep.mubr.bf16.mxu0 0
        %1483 = vmatmul.mubr.bf16.gmra.mrb[0].mxu0 %v1402
        %v1484 = vpop.f32.mrb[0].mxu0
        %v1485 = vadd.f32 0.0, %v1484
        %v1486 = vpop.f32.mrb[0].mxu0
        %v1487 = vpop.f32.mrb[0].mxu0
        %v1488 = vadd.f32 0.0, %v1487
        %v1489 = vpop.f32.mrb[0].mxu0
        %1490 = vmatprep.mubr.bf16.mxu0 0
        %1491 = vmatmul.mubr.bf16.gmra.mrb[0].mxu0 %v1405
        %v1492 = vpop.f32.mrb[0].mxu0
        %v1493 = vadd.f32 0.0, %v1492
        %v1494 = vpop.f32.mrb[0].mxu0
        %v1495 = vpop.f32.mrb[0].mxu0
        %v1496 = vadd.f32 0.0, %v1495
        %v1497 = vpop.f32.mrb[0].mxu0
        %1498 = vmatprep.mubr.bf16.mxu0 0
        %1499 = vmatmul.mubr.bf16.gmra.mrb[0].mxu0 %v1408
        %v1500 = vpop.f32.mrb[0].mxu0
        %v1501 = vadd.f32 0.0, %v1500
        %v1502 = vpop.f32.mrb[0].mxu0
        %v1503 = vpop.f32.mrb[0].mxu0
        %v1504 = vadd.f32 0.0, %v1503
        %v1505 = vpop.f32.mrb[0].mxu0
        %1506 = vdwg.mxu0
        %v1507 = vld [vmem:[#allocation5 + $0x1] sm:$0x1]
        %v1508 = vld [vmem:[#allocation6 + $0x1] sm:$0x1]
        %v1509 = vmax.f32 %v1445, %v1461
        %v1510 = vmax.f32 %v1448, %v1464
        %v1511 = vmax.f32 %v1453, %v1469
        %v1512 = vmax.f32 %v1456, %v1472
        %v1513 = vmax.f32 %v1509, %v1477
        %v1514 = vmax.f32 %v1510, %v1480
        %v1515 = vmax.f32 %v1511, %v1485
        %v1516 = vmax.f32 %v1512, %v1488
        %v1517 = vmax.f32 %v1513, %v1493
        %v1518 = vmax.f32 %v1514, %v1496
        %v1519 = vmax.f32 %v1515, %v1501
        %v1520 = vmax.f32 %v1516, %v1504
        %v1521 = vmax.f32 %v1517, %v1518
        %v1522 = vmax.f32 %v1519, %v1520
        %v1523 = vmax.f32 %v1521, %v1522
        %v1524 = vrot.slane %v1523, 4
        %v1525 = vmax.f32 %v1523, %v1524
        %v1526 = vrot.slane %v1525, 2
        %v1527 = vmax.f32 %v1525, %v1526
        %v1528 = vrot.slane %v1527, 1
        %v1529 = vmax.f32 %v1527, %v1528
        %v1530 = vmax.f32 %v1507, %v1529
        %v1531 = vsub.f32 %v1507, %v1530
        %v1532 = vmul.f32 %v1531, 1.442695
        %v1533 = vpow.pop %v1532
        %v1534 = vlaneseq
        %v1535 = vshrl.u32 %v1534, 7
        %v1536 = vsub.s32 0, %v1535
        %v1537 = vrot.slane %v1530, %v1536
        %v1538 = vsub.f32 %v1445, %v1537
        %v1539 = vsub.f32 %v1448, %v1537
        %v1540 = vsub.f32 %v1453, %v1537
        %v1541 = vsub.f32 %v1456, %v1537
        %v1542 = vsub.f32 %v1461, %v1537
        %v1543 = vsub.f32 %v1464, %v1537
        %v1544 = vsub.f32 %v1469, %v1537
        %v1545 = vsub.f32 %v1472, %v1537
        %v1546 = vsub.f32 %v1477, %v1537
        %v1547 = vsub.f32 %v1480, %v1537
        %v1548 = vsub.f32 %v1485, %v1537
        %v1549 = vsub.f32 %v1488, %v1537
        %v1550 = vsub.f32 %v1493, %v1537
        %v1551 = vsub.f32 %v1496, %v1537
        %v1552 = vsub.f32 %v1501, %v1537
        %v1553 = vsub.f32 %v1504, %v1537
        %v1554 = vmul.f32 %v1538, 1.442695
        %v1555 = vpow.pop %v1554
        %v1556 = vmul.f32 %v1539, 1.442695
        %v1557 = vpow.pop %v1556
        %v1558 = vmul.f32 %v1540, 1.442695
        %v1559 = vpow.pop %v1558
        %v1560 = vmul.f32 %v1541, 1.442695
        %v1561 = vpow.pop %v1560
        %v1562 = vmul.f32 %v1542, 1.442695
        %v1563 = vpow.pop %v1562
        %v1564 = vmul.f32 %v1543, 1.442695
        %v1565 = vpow.pop %v1564
        %v1566 = vmul.f32 %v1544, 1.442695
        %v1567 = vpow.pop %v1566
        %v1568 = vmul.f32 %v1545, 1.442695
        %v1569 = vpow.pop %v1568
        %v1570 = vmul.f32 %v1546, 1.442695
        %v1571 = vpow.pop %v1570
        %v1572 = vmul.f32 %v1547, 1.442695
        %v1573 = vpow.pop %v1572
        %v1574 = vmul.f32 %v1548, 1.442695
        %v1575 = vpow.pop %v1574
        %v1576 = vmul.f32 %v1549, 1.442695
        %v1577 = vpow.pop %v1576
        %v1578 = vmul.f32 %v1550, 1.442695
        %v1579 = vpow.pop %v1578
        %v1580 = vmul.f32 %v1551, 1.442695
        %v1581 = vpow.pop %v1580
        %v1582 = vmul.f32 %v1552, 1.442695
        %v1583 = vpow.pop %v1582
        %v1584 = vmul.f32 %v1553, 1.442695
        %v1585 = vpow.pop %v1584
        %1586 = vst [vmem:[#allocation5 + $0x1] sm:$0x1] %v1530
        %v1587 = vmul.f32 %v1533, %v1508
        %v1588 = vadd.f32 %v1555, %v1557
        %v1589 = vadd.f32 %v1588, %v1559
        %v1590 = vadd.f32 %v1589, %v1561
        %v1591 = vadd.f32 %v1590, %v1563
        %v1592 = vadd.f32 %v1591, %v1565
        %v1593 = vadd.f32 %v1592, %v1567
        %v1594 = vadd.f32 %v1593, %v1569
        %v1595 = vadd.f32 %v1594, %v1571
        %v1596 = vadd.f32 %v1595, %v1573
        %v1597 = vadd.f32 %v1596, %v1575
        %v1598 = vadd.f32 %v1597, %v1577
        %v1599 = vadd.f32 %v1598, %v1579
        %v1600 = vadd.f32 %v1599, %v1581
        %v1601 = vadd.f32 %v1600, %v1583
        %v1602 = vadd.f32 %v1601, %v1585
        %v1603 = vrot.slane %v1602, 4
        %v1604 = vadd.f32 %v1602, %v1603
        %v1605 = vrot.slane %v1604, 2
        %v1606 = vadd.f32 %v1604, %v1605
        %v1607 = vrot.slane %v1606, 1
        %v1608 = vadd.f32 %v1606, %v1607
        %v1609 = vadd.f32 %v1587, %v1608
        %1610 = vst [vmem:[#allocation6 + $0x1] sm:$0x1] %v1609
        %v1611 = vpack.c.bf16 %v1557, %v1555
        %v1612 = vpack.c.bf16 %v1561, %v1559
        %v1613 = vpack.c.bf16 %v1565, %v1563
        %v1614 = vpack.c.bf16 %v1569, %v1567
        %v1615 = vpack.c.bf16 %v1573, %v1571
        %v1616 = vpack.c.bf16 %v1577, %v1575
        %v1617 = vpack.c.bf16 %v1581, %v1579
        %v1618 = vpack.c.bf16 %v1585, %v1583
        %1619 = vmatprep.subr.bf16.mxu0 0
        %1620 = vmatpush1.bf16.msra.mxu0 %v1611
        %1621 = vmatprep.subr.bf16.mxu0 0
        %1622 = vmatpush1.bf16.msra.mxu0 %v1612
        %1623 = vmatprep.subr.bf16.mxu0 0
        %1624 = vmatpush1.bf16.msra.mxu0 %v1613
        %1625 = vmatprep.subr.bf16.mxu0 0
        %1626 = vmatpush1.bf16.msra.mxu0 %v1614
        %1627 = vmatprep.subr.bf16.mxu0 0
        %1628 = vmatpush1.bf16.msra.mxu0 %v1615
        %1629 = vmatprep.subr.bf16.mxu0 0
        %1630 = vmatpush1.bf16.msra.mxu0 %v1616
        %1631 = vmatprep.subr.bf16.mxu0 0
        %1632 = vmatpush1.bf16.msra.mxu0 %v1617
        %1633 = vmatprep.subr.bf16.mxu0 0
        %1634 = vmatpush1.bf16.msra.mxu0 %v1618
        %1635 = vmatprep.subr.bf16.mxu0 0
        %1636 = vmatpush1.bf16.msra.mxu0 0
        %1637 = vmatprep.subr.bf16.mxu0 0
        %1638 = vmatpush1.bf16.msra.mxu0 0
        %1639 = vmatprep.subr.bf16.mxu0 0
        %1640 = vmatpush1.bf16.msra.mxu0 0
        %1641 = vmatprep.subr.bf16.mxu0 0
        %1642 = vmatpush1.bf16.msra.mxu0 0
        %1643 = vmatprep.subr.bf16.mxu0 0
        %1644 = vmatpush1.bf16.msra.mxu0 0
        %1645 = vmatprep.subr.bf16.mxu0 0
        %1646 = vmatpush1.bf16.msra.mxu0 0
        %1647 = vmatprep.subr.bf16.mxu0 0
        %1648 = vmatpush1.bf16.msra.mxu0 0
        %1649 = vmatprep.subr.bf16.mxu0 0
        %1650 = vmatpush1.bf16.msra.mxu0 0
        %1651 = vmatprep.mubr.bf16.mxu0 0
        %1652 = vmatmul.mubr.bf16.gmra.mrb[0].mxu0 %v1369
        %v1653 = vpop.f32.mrb[0].mxu0
        %v1654 = vadd.f32 0.0, %v1653
        %v1655 = vpop.f32.mrb[0].mxu0
        %v1656 = vpop.f32.mrb[0].mxu0
        %v1657 = vadd.f32 0.0, %v1656
        %v1658 = vpop.f32.mrb[0].mxu0
        %1659 = vdwg.mxu0
        %s1660 = scalar_lea.vmem [#allocation7], 16
        %v1661 = vld [vmem:[%s1660] sm:$0xff]
        %v1662 = vld [vmem:[%s1660 + $0x8] sm:$0xff]
        %v1663 = vlaneseq
        %v1664 = vshrl.u32 %v1663, 7
        %v1665 = vsub.s32 0, %v1664
        %v1666 = vrot.slane %v1533, %v1665
        %v1667 = vmul.f32 %v1666, %v1661
        %v1668 = vmul.f32 %v1666, %v1662
        %v1669 = vadd.f32 %v1667, %v1654
        %v1670 = vadd.f32 %v1668, %v1657
        %1671 = vst [vmem:[%s1660] sm:$0xff] %v1669
        %1672 = vst [vmem:[%s1660 + $0x8] sm:$0xff] %v1670
        %s1673 = scalar_lea.vmem [#allocation2], 16
        %v1674 = vld [vmem:[%s1673] sm:$0xff]
        %s1675 = smul.u32 2, 3
        %s1676 = sadd.s32 %s1047, %s1675
        %s1677 = smul.addr %s1676, 8
        %s1678 = scalar_lea.vmem [#allocation3], %s1677
        %v1679 = vld [vmem:[%s1678] sm:$0xff]
        %s1680 = smul.addr %s1676, 8
        %s1681 = scalar_lea.vmem [#allocation4], %s1680
        %v1682 = vld [vmem:[%s1681] sm:$0xff]
        %1683 = vxpose.xlu0.c.b16.start [1/8] %v1679, 128
        %1684 = vxpose.xlu0.c.b16.cont [2/8] 0, 128
        %1685 = vxpose.xlu0.c.b16.cont [3/8] 0, 128
        %1686 = vxpose.xlu0.c.b16.cont [4/8] 0, 128
        %1687 = vxpose.xlu0.c.b16.cont [5/8] 0, 128
        %1688 = vxpose.xlu0.c.b16.cont [6/8] 0, 128
        %1689 = vxpose.xlu0.c.b16.cont [7/8] 0, 128
        %1690 = vxpose.xlu0.c.b16.end [8/8] 0, 128
        %v1691 = vpop.trf.xlu0
        %v1692 = vpop.trf.xlu0
        %v1693 = vpop.trf.xlu0
        %v1694 = vpop.trf.xlu0
        %v1695 = vpop.trf.xlu0
        %v1696 = vpop.trf.xlu0
        %v1697 = vpop.trf.xlu0
        %v1698 = vpop.trf.xlu0
        %v1700 = vsel %vm1073, %v1691, 0
        %v1703 = vsel %vm1073, %v1692, 0
        %v1706 = vsel %vm1073, %v1693, 0
        %v1709 = vsel %vm1073, %v1694, 0
        %v1712 = vsel %vm1073, %v1695, 0
        %v1715 = vsel %vm1073, %v1696, 0
        %v1718 = vsel %vm1073, %v1697, 0
        %v1721 = vsel %vm1073, %v1698, 0
        %1723 = vmatprep.subr.bf16.mxu0 0
        %1724 = vmatpush1.bf16.msra.mxu0 %v1674
        %1725 = vmatprep.subr.bf16.mxu0 0
        %1726 = vmatpush1.bf16.msra.mxu0 0
        %1727 = vmatprep.subr.bf16.mxu0 0
        %1728 = vmatpush1.bf16.msra.mxu0 0
        %1729 = vmatprep.subr.bf16.mxu0 0
        %1730 = vmatpush1.bf16.msra.mxu0 0
        %1731 = vmatprep.subr.bf16.mxu0 0
        %1732 = vmatpush1.bf16.msra.mxu0 0
        %1733 = vmatprep.subr.bf16.mxu0 0
        %1734 = vmatpush1.bf16.msra.mxu0 0
        %1735 = vmatprep.subr.bf16.mxu0 0
        %1736 = vmatpush1.bf16.msra.mxu0 0
        %1737 = vmatprep.subr.bf16.mxu0 0
        %1738 = vmatpush1.bf16.msra.mxu0 0
        %1739 = vmatprep.subr.bf16.mxu0 0
        %1740 = vmatpush1.bf16.msra.mxu0 0
        %1741 = vmatprep.subr.bf16.mxu0 0
        %1742 = vmatpush1.bf16.msra.mxu0 0
        %1743 = vmatprep.subr.bf16.mxu0 0
        %1744 = vmatpush1.bf16.msra.mxu0 0
        %1745 = vmatprep.subr.bf16.mxu0 0
        %1746 = vmatpush1.bf16.msra.mxu0 0
        %1747 = vmatprep.subr.bf16.mxu0 0
        %1748 = vmatpush1.bf16.msra.mxu0 0
        %1749 = vmatprep.subr.bf16.mxu0 0
        %1750 = vmatpush1.bf16.msra.mxu0 0
        %1751 = vmatprep.subr.bf16.mxu0 0
        %1752 = vmatpush1.bf16.msra.mxu0 0
        %1753 = vmatprep.subr.bf16.mxu0 0
        %1754 = vmatpush1.bf16.msra.mxu0 0
        %1755 = vmatprep.mubr.bf16.mxu0 0
        %1756 = vmatmul.mubr.bf16.gmra.mrb[0].mxu0 %v1700
        %v1757 = vpop.f32.mrb[0].mxu0
        %v1758 = vadd.f32 0.0, %v1757
        %v1759 = vpop.f32.mrb[0].mxu0
        %v1760 = vpop.f32.mrb[0].mxu0
        %v1761 = vadd.f32 0.0, %v1760
        %v1762 = vpop.f32.mrb[0].mxu0
        %1763 = vmatprep.mubr.bf16.mxu0 0
        %1764 = vmatmul.mubr.bf16.gmra.mrb[0].mxu0 %v1703
        %v1765 = vpop.f32.mrb[0].mxu0
        %v1766 = vadd.f32 0.0, %v1765
        %v1767 = vpop.f32.mrb[0].mxu0
        %v1768 = vpop.f32.mrb[0].mxu0
        %v1769 = vadd.f32 0.0, %v1768
        %v1770 = vpop.f32.mrb[0].mxu0
        %1771 = vmatprep.mubr.bf16.mxu0 0
        %1772 = vmatmul.mubr.bf16.gmra.mrb[0].mxu0 %v1706
        %v1773 = vpop.f32.mrb[0].mxu0
        %v1774 = vadd.f32 0.0, %v1773
        %v1775 = vpop.f32.mrb[0].mxu0
        %v1776 = vpop.f32.mrb[0].mxu0
        %v1777 = vadd.f32 0.0, %v1776
        %v1778 = vpop.f32.mrb[0].mxu0
        %1779 = vmatprep.mubr.bf16.mxu0 0
        %1780 = vmatmul.mubr.bf16.gmra.mrb[0].mxu0 %v1709
        %v1781 = vpop.f32.mrb[0].mxu0
        %v1782 = vadd.f32 0.0, %v1781
        %v1783 = vpop.f32.mrb[0].mxu0
        %v1784 = vpop.f32.mrb[0].mxu0
        %v1785 = vadd.f32 0.0, %v1784
        %v1786 = vpop.f32.mrb[0].mxu0
        %1787 = vmatprep.mubr.bf16.mxu0 0
        %1788 = vmatmul.mubr.bf16.gmra.mrb[0].mxu0 %v1712
        %v1789 = vpop.f32.mrb[0].mxu0
        %v1790 = vadd.f32 0.0, %v1789
        %v1791 = vpop.f32.mrb[0].mxu0
        %v1792 = vpop.f32.mrb[0].mxu0
        %v1793 = vadd.f32 0.0, %v1792
        %v1794 = vpop.f32.mrb[0].mxu0
        %1795 = vmatprep.mubr.bf16.mxu0 0
        %1796 = vmatmul.mubr.bf16.gmra.mrb[0].mxu0 %v1715
        %v1797 = vpop.f32.mrb[0].mxu0
        %v1798 = vadd.f32 0.0, %v1797
        %v1799 = vpop.f32.mrb[0].mxu0
        %v1800 = vpop.f32.mrb[0].mxu0
        %v1801 = vadd.f32 0.0, %v1800
        %v1802 = vpop.f32.mrb[0].mxu0
        %1803 = vmatprep.mubr.bf16.mxu0 0
        %1804 = vmatmul.mubr.bf16.gmra.mrb[0].mxu0 %v1718
        %v1805 = vpop.f32.mrb[0].mxu0
        %v1806 = vadd.f32 0.0, %v1805
        %v1807 = vpop.f32.mrb[0].mxu0
        %v1808 = vpop.f32.mrb[0].mxu0
        %v1809 = vadd.f32 0.0, %v1808
        %v1810 = vpop.f32.mrb[0].mxu0
        %1811 = vmatprep.mubr.bf16.mxu0 0
        %1812 = vmatmul.mubr.bf16.gmra.mrb[0].mxu0 %v1721
        %v1813 = vpop.f32.mrb[0].mxu0
        %v1814 = vadd.f32 0.0, %v1813
        %v1815 = vpop.f32.mrb[0].mxu0
        %v1816 = vpop.f32.mrb[0].mxu0
        %v1817 = vadd.f32 0.0, %v1816
        %v1818 = vpop.f32.mrb[0].mxu0
        %1819 = vdwg.mxu0
        %v1820 = vld [vmem:[#allocation5 + $0x2] sm:$0x1]
        %v1821 = vld [vmem:[#allocation6 + $0x2] sm:$0x1]
        %v1822 = vmax.f32 %v1758, %v1774
        %v1823 = vmax.f32 %v1761, %v1777
        %v1824 = vmax.f32 %v1766, %v1782
        %v1825 = vmax.f32 %v1769, %v1785
        %v1826 = vmax.f32 %v1822, %v1790
        %v1827 = vmax.f32 %v1823, %v1793
        %v1828 = vmax.f32 %v1824, %v1798
        %v1829 = vmax.f32 %v1825, %v1801
        %v1830 = vmax.f32 %v1826, %v1806
        %v1831 = vmax.f32 %v1827, %v1809
        %v1832 = vmax.f32 %v1828, %v1814
        %v1833 = vmax.f32 %v1829, %v1817
        %v1834 = vmax.f32 %v1830, %v1831
        %v1835 = vmax.f32 %v1832, %v1833
        %v1836 = vmax.f32 %v1834, %v1835
        %v1837 = vrot.slane %v1836, 4
        %v1838 = vmax.f32 %v1836, %v1837
        %v1839 = vrot.slane %v1838, 2
        %v1840 = vmax.f32 %v1838, %v1839
        %v1841 = vrot.slane %v1840, 1
        %v1842 = vmax.f32 %v1840, %v1841
        %v1843 = vmax.f32 %v1820, %v1842
        %v1844 = vsub.f32 %v1820, %v1843
        %v1845 = vmul.f32 %v1844, 1.442695
        %v1846 = vpow.pop %v1845
        %v1847 = vlaneseq
        %v1848 = vshrl.u32 %v1847, 7
        %v1849 = vsub.s32 0, %v1848
        %v1850 = vrot.slane %v1843, %v1849
        %v1851 = vsub.f32 %v1758, %v1850
        %v1852 = vsub.f32 %v1761, %v1850
        %v1853 = vsub.f32 %v1766, %v1850
        %v1854 = vsub.f32 %v1769, %v1850
        %v1855 = vsub.f32 %v1774, %v1850
        %v1856 = vsub.f32 %v1777, %v1850
        %v1857 = vsub.f32 %v1782, %v1850
        %v1858 = vsub.f32 %v1785, %v1850
        %v1859 = vsub.f32 %v1790, %v1850
        %v1860 = vsub.f32 %v1793, %v1850
        %v1861 = vsub.f32 %v1798, %v1850
        %v1862 = vsub.f32 %v1801, %v1850
        %v1863 = vsub.f32 %v1806, %v1850
        %v1864 = vsub.f32 %v1809, %v1850
        %v1865 = vsub.f32 %v1814, %v1850
        %v1866 = vsub.f32 %v1817, %v1850
        %v1867 = vmul.f32 %v1851, 1.442695
        %v1868 = vpow.pop %v1867
        %v1869 = vmul.f32 %v1852, 1.442695
        %v1870 = vpow.pop %v1869
        %v1871 = vmul.f32 %v1853, 1.442695
        %v1872 = vpow.pop %v1871
        %v1873 = vmul.f32 %v1854, 1.442695
        %v1874 = vpow.pop %v1873
        %v1875 = vmul.f32 %v1855, 1.442695
        %v1876 = vpow.pop %v1875
        %v1877 = vmul.f32 %v1856, 1.442695
        %v1878 = vpow.pop %v1877
        %v1879 = vmul.f32 %v1857, 1.442695
        %v1880 = vpow.pop %v1879
        %v1881 = vmul.f32 %v1858, 1.442695
        %v1882 = vpow.pop %v1881
        %v1883 = vmul.f32 %v1859, 1.442695
        %v1884 = vpow.pop %v1883
        %v1885 = vmul.f32 %v1860, 1.442695
        %v1886 = vpow.pop %v1885
        %v1887 = vmul.f32 %v1861, 1.442695
        %v1888 = vpow.pop %v1887
        %v1889 = vmul.f32 %v1862, 1.442695
        %v1890 = vpow.pop %v1889
        %v1891 = vmul.f32 %v1863, 1.442695
        %v1892 = vpow.pop %v1891
        %v1893 = vmul.f32 %v1864, 1.442695
        %v1894 = vpow.pop %v1893
        %v1895 = vmul.f32 %v1865, 1.442695
        %v1896 = vpow.pop %v1895
        %v1897 = vmul.f32 %v1866, 1.442695
        %v1898 = vpow.pop %v1897
        %1899 = vst [vmem:[#allocation5 + $0x2] sm:$0x1] %v1843
        %v1900 = vmul.f32 %v1846, %v1821
        %v1901 = vadd.f32 %v1868, %v1870
        %v1902 = vadd.f32 %v1901, %v1872
        %v1903 = vadd.f32 %v1902, %v1874
        %v1904 = vadd.f32 %v1903, %v1876
        %v1905 = vadd.f32 %v1904, %v1878
        %v1906 = vadd.f32 %v1905, %v1880
        %v1907 = vadd.f32 %v1906, %v1882
        %v1908 = vadd.f32 %v1907, %v1884
        %v1909 = vadd.f32 %v1908, %v1886
        %v1910 = vadd.f32 %v1909, %v1888
        %v1911 = vadd.f32 %v1910, %v1890
        %v1912 = vadd.f32 %v1911, %v1892
        %v1913 = vadd.f32 %v1912, %v1894
        %v1914 = vadd.f32 %v1913, %v1896
        %v1915 = vadd.f32 %v1914, %v1898
        %v1916 = vrot.slane %v1915, 4
        %v1917 = vadd.f32 %v1915, %v1916
        %v1918 = vrot.slane %v1917, 2
        %v1919 = vadd.f32 %v1917, %v1918
        %v1920 = vrot.slane %v1919, 1
        %v1921 = vadd.f32 %v1919, %v1920
        %v1922 = vadd.f32 %v1900, %v1921
        %1923 = vst [vmem:[#allocation6 + $0x2] sm:$0x1] %v1922
        %v1924 = vpack.c.bf16 %v1870, %v1868
        %v1925 = vpack.c.bf16 %v1874, %v1872
        %v1926 = vpack.c.bf16 %v1878, %v1876
        %v1927 = vpack.c.bf16 %v1882, %v1880
        %v1928 = vpack.c.bf16 %v1886, %v1884
        %v1929 = vpack.c.bf16 %v1890, %v1888
        %v1930 = vpack.c.bf16 %v1894, %v1892
        %v1931 = vpack.c.bf16 %v1898, %v1896
        %1932 = vmatprep.subr.bf16.mxu0 0
        %1933 = vmatpush1.bf16.msra.mxu0 %v1924
        %1934 = vmatprep.subr.bf16.mxu0 0
        %1935 = vmatpush1.bf16.msra.mxu0 %v1925
        %1936 = vmatprep.subr.bf16.mxu0 0
        %1937 = vmatpush1.bf16.msra.mxu0 %v1926
        %1938 = vmatprep.subr.bf16.mxu0 0
        %1939 = vmatpush1.bf16.msra.mxu0 %v1927
        %1940 = vmatprep.subr.bf16.mxu0 0
        %1941 = vmatpush1.bf16.msra.mxu0 %v1928
        %1942 = vmatprep.subr.bf16.mxu0 0
        %1943 = vmatpush1.bf16.msra.mxu0 %v1929
        %1944 = vmatprep.subr.bf16.mxu0 0
        %1945 = vmatpush1.bf16.msra.mxu0 %v1930
        %1946 = vmatprep.subr.bf16.mxu0 0
        %1947 = vmatpush1.bf16.msra.mxu0 %v1931
        %1948 = vmatprep.subr.bf16.mxu0 0
        %1949 = vmatpush1.bf16.msra.mxu0 0
        %1950 = vmatprep.subr.bf16.mxu0 0
        %1951 = vmatpush1.bf16.msra.mxu0 0
        %1952 = vmatprep.subr.bf16.mxu0 0
        %1953 = vmatpush1.bf16.msra.mxu0 0
        %1954 = vmatprep.subr.bf16.mxu0 0
        %1955 = vmatpush1.bf16.msra.mxu0 0
        %1956 = vmatprep.subr.bf16.mxu0 0
        %1957 = vmatpush1.bf16.msra.mxu0 0
        %1958 = vmatprep.subr.bf16.mxu0 0
        %1959 = vmatpush1.bf16.msra.mxu0 0
        %1960 = vmatprep.subr.bf16.mxu0 0
        %1961 = vmatpush1.bf16.msra.mxu0 0
        %1962 = vmatprep.subr.bf16.mxu0 0
        %1963 = vmatpush1.bf16.msra.mxu0 0
        %1964 = vmatprep.mubr.bf16.mxu0 0
        %1965 = vmatmul.mubr.bf16.gmra.mrb[0].mxu0 %v1682
        %v1966 = vpop.f32.mrb[0].mxu0
        %v1967 = vadd.f32 0.0, %v1966
        %v1968 = vpop.f32.mrb[0].mxu0
        %v1969 = vpop.f32.mrb[0].mxu0
        %v1970 = vadd.f32 0.0, %v1969
        %v1971 = vpop.f32.mrb[0].mxu0
        %1972 = vdwg.mxu0
        %s1973 = scalar_lea.vmem [#allocation7], 32
        %v1974 = vld [vmem:[%s1973] sm:$0xff]
        %v1975 = vld [vmem:[%s1973 + $0x8] sm:$0xff]
        %v1976 = vlaneseq
        %v1977 = vshrl.u32 %v1976, 7
        %v1978 = vsub.s32 0, %v1977
        %v1979 = vrot.slane %v1846, %v1978
        %v1980 = vmul.f32 %v1979, %v1974
        %v1981 = vmul.f32 %v1979, %v1975
        %v1982 = vadd.f32 %v1980, %v1967
        %v1983 = vadd.f32 %v1981, %v1970
        %1984 = vst [vmem:[%s1973] sm:$0xff] %v1982
        %1985 = vst [vmem:[%s1973 + $0x8] sm:$0xff] %v1983
        %s1986 = scalar_lea.vmem [#allocation2], 24
        %v1987 = vld [vmem:[%s1986] sm:$0xff]
        %s1988 = smul.u32 3, 3
        %s1989 = sadd.s32 %s1047, %s1988
        %s1990 = smul.addr %s1989, 8
        %s1991 = scalar_lea.vmem [#allocation3], %s1990
        %v1992 = vld [vmem:[%s1991] sm:$0xff]
        %s1993 = smul.addr %s1989, 8
        %s1994 = scalar_lea.vmem [#allocation4], %s1993
        %v1995 = vld [vmem:[%s1994] sm:$0xff]
        %1996 = vxpose.xlu0.c.b16.start [1/8] %v1992, 128
        %1997 = vxpose.xlu0.c.b16.cont [2/8] 0, 128
        %1998 = vxpose.xlu0.c.b16.cont [3/8] 0, 128
        %1999 = vxpose.xlu0.c.b16.cont [4/8] 0, 128
        %2000 = vxpose.xlu0.c.b16.cont [5/8] 0, 128
        %2001 = vxpose.xlu0.c.b16.cont [6/8] 0, 128
        %2002 = vxpose.xlu0.c.b16.cont [7/8] 0, 128
        %2003 = vxpose.xlu0.c.b16.end [8/8] 0, 128
        %v2004 = vpop.trf.xlu0
        %v2005 = vpop.trf.xlu0
        %v2006 = vpop.trf.xlu0
        %v2007 = vpop.trf.xlu0
        %v2008 = vpop.trf.xlu0
        %v2009 = vpop.trf.xlu0
        %v2010 = vpop.trf.xlu0
        %v2011 = vpop.trf.xlu0
        %v2013 = vsel %vm1073, %v2004, 0
        %v2016 = vsel %vm1073, %v2005, 0
        %v2019 = vsel %vm1073, %v2006, 0
        %v2022 = vsel %vm1073, %v2007, 0
        %v2025 = vsel %vm1073, %v2008, 0
        %v2028 = vsel %vm1073, %v2009, 0
        %v2031 = vsel %vm1073, %v2010, 0
        %v2034 = vsel %vm1073, %v2011, 0
        %2036 = vmatprep.subr.bf16.mxu0 0
        %2037 = vmatpush1.bf16.msra.mxu0 %v1987
        %2038 = vmatprep.subr.bf16.mxu0 0
        %2039 = vmatpush1.bf16.msra.mxu0 0
        %2040 = vmatprep.subr.bf16.mxu0 0
        %2041 = vmatpush1.bf16.msra.mxu0 0
        %2042 = vmatprep.subr.bf16.mxu0 0
        %2043 = vmatpush1.bf16.msra.mxu0 0
        %2044 = vmatprep.subr.bf16.mxu0 0
        %2045 = vmatpush1.bf16.msra.mxu0 0
        %2046 = vmatprep.subr.bf16.mxu0 0
        %2047 = vmatpush1.bf16.msra.mxu0 0
        %2048 = vmatprep.subr.bf16.mxu0 0
        %2049 = vmatpush1.bf16.msra.mxu0 0
        %2050 = vmatprep.subr.bf16.mxu0 0
        %2051 = vmatpush1.bf16.msra.mxu0 0
        %2052 = vmatprep.subr.bf16.mxu0 0
        %2053 = vmatpush1.bf16.msra.mxu0 0
        %2054 = vmatprep.subr.bf16.mxu0 0
        %2055 = vmatpush1.bf16.msra.mxu0 0
        %2056 = vmatprep.subr.bf16.mxu0 0
        %2057 = vmatpush1.bf16.msra.mxu0 0
        %2058 = vmatprep.subr.bf16.mxu0 0
        %2059 = vmatpush1.bf16.msra.mxu0 0
        %2060 = vmatprep.subr.bf16.mxu0 0
        %2061 = vmatpush1.bf16.msra.mxu0 0
        %2062 = vmatprep.subr.bf16.mxu0 0
        %2063 = vmatpush1.bf16.msra.mxu0 0
        %2064 = vmatprep.subr.bf16.mxu0 0
        %2065 = vmatpush1.bf16.msra.mxu0 0
        %2066 = vmatprep.subr.bf16.mxu0 0
        %2067 = vmatpush1.bf16.msra.mxu0 0
        %2068 = vmatprep.mubr.bf16.mxu0 0
        %2069 = vmatmul.mubr.bf16.gmra.mrb[0].mxu0 %v2013
        %v2070 = vpop.f32.mrb[0].mxu0
        %v2071 = vadd.f32 0.0, %v2070
        %v2072 = vpop.f32.mrb[0].mxu0
        %v2073 = vpop.f32.mrb[0].mxu0
        %v2074 = vadd.f32 0.0, %v2073
        %v2075 = vpop.f32.mrb[0].mxu0
        %2076 = vmatprep.mubr.bf16.mxu0 0
        %2077 = vmatmul.mubr.bf16.gmra.mrb[0].mxu0 %v2016
        %v2078 = vpop.f32.mrb[0].mxu0
        %v2079 = vadd.f32 0.0, %v2078
        %v2080 = vpop.f32.mrb[0].mxu0
        %v2081 = vpop.f32.mrb[0].mxu0
        %v2082 = vadd.f32 0.0, %v2081
        %v2083 = vpop.f32.mrb[0].mxu0
        %2084 = vmatprep.mubr.bf16.mxu0 0
        %2085 = vmatmul.mubr.bf16.gmra.mrb[0].mxu0 %v2019
        %v2086 = vpop.f32.mrb[0].mxu0
        %v2087 = vadd.f32 0.0, %v2086
        %v2088 = vpop.f32.mrb[0].mxu0
        %v2089 = vpop.f32.mrb[0].mxu0
        %v2090 = vadd.f32 0.0, %v2089
        %v2091 = vpop.f32.mrb[0].mxu0
        %2092 = vmatprep.mubr.bf16.mxu0 0
        %2093 = vmatmul.mubr.bf16.gmra.mrb[0].mxu0 %v2022
        %v2094 = vpop.f32.mrb[0].mxu0
        %v2095 = vadd.f32 0.0, %v2094
        %v2096 = vpop.f32.mrb[0].mxu0
        %v2097 = vpop.f32.mrb[0].mxu0
        %v2098 = vadd.f32 0.0, %v2097
        %v2099 = vpop.f32.mrb[0].mxu0
        %2100 = vmatprep.mubr.bf16.mxu0 0
        %2101 = vmatmul.mubr.bf16.gmra.mrb[0].mxu0 %v2025
        %v2102 = vpop.f32.mrb[0].mxu0
        %v2103 = vadd.f32 0.0, %v2102
        %v2104 = vpop.f32.mrb[0].mxu0
        %v2105 = vpop.f32.mrb[0].mxu0
        %v2106 = vadd.f32 0.0, %v2105
        %v2107 = vpop.f32.mrb[0].mxu0
        %2108 = vmatprep.mubr.bf16.mxu0 0
        %2109 = vmatmul.mubr.bf16.gmra.mrb[0].mxu0 %v2028
        %v2110 = vpop.f32.mrb[0].mxu0
        %v2111 = vadd.f32 0.0, %v2110
        %v2112 = vpop.f32.mrb[0].mxu0
        %v2113 = vpop.f32.mrb[0].mxu0
        %v2114 = vadd.f32 0.0, %v2113
        %v2115 = vpop.f32.mrb[0].mxu0
        %2116 = vmatprep.mubr.bf16.mxu0 0
        %2117 = vmatmul.mubr.bf16.gmra.mrb[0].mxu0 %v2031
        %v2118 = vpop.f32.mrb[0].mxu0
        %v2119 = vadd.f32 0.0, %v2118
        %v2120 = vpop.f32.mrb[0].mxu0
        %v2121 = vpop.f32.mrb[0].mxu0
        %v2122 = vadd.f32 0.0, %v2121
        %v2123 = vpop.f32.mrb[0].mxu0
        %2124 = vmatprep.mubr.bf16.mxu0 0
        %2125 = vmatmul.mubr.bf16.gmra.mrb[0].mxu0 %v2034
        %v2126 = vpop.f32.mrb[0].mxu0
        %v2127 = vadd.f32 0.0, %v2126
        %v2128 = vpop.f32.mrb[0].mxu0
        %v2129 = vpop.f32.mrb[0].mxu0
        %v2130 = vadd.f32 0.0, %v2129
        %v2131 = vpop.f32.mrb[0].mxu0
        %2132 = vdwg.mxu0
        %v2133 = vld [vmem:[#allocation5 + $0x3] sm:$0x1]
        %v2134 = vld [vmem:[#allocation6 + $0x3] sm:$0x1]
        %v2135 = vmax.f32 %v2071, %v2087
        %v2136 = vmax.f32 %v2074, %v2090
        %v2137 = vmax.f32 %v2079, %v2095
        %v2138 = vmax.f32 %v2082, %v2098
        %v2139 = vmax.f32 %v2135, %v2103
        %v2140 = vmax.f32 %v2136, %v2106
        %v2141 = vmax.f32 %v2137, %v2111
        %v2142 = vmax.f32 %v2138, %v2114
        %v2143 = vmax.f32 %v2139, %v2119
        %v2144 = vmax.f32 %v2140, %v2122
        %v2145 = vmax.f32 %v2141, %v2127
        %v2146 = vmax.f32 %v2142, %v2130
        %v2147 = vmax.f32 %v2143, %v2144
        %v2148 = vmax.f32 %v2145, %v2146
        %v2149 = vmax.f32 %v2147, %v2148
        %v2150 = vrot.slane %v2149, 4
        %v2151 = vmax.f32 %v2149, %v2150
        %v2152 = vrot.slane %v2151, 2
        %v2153 = vmax.f32 %v2151, %v2152
        %v2154 = vrot.slane %v2153, 1
        %v2155 = vmax.f32 %v2153, %v2154
        %v2156 = vmax.f32 %v2133, %v2155
        %v2157 = vsub.f32 %v2133, %v2156
        %v2158 = vmul.f32 %v2157, 1.442695
        %v2159 = vpow.pop %v2158
        %v2160 = vlaneseq
        %v2161 = vshrl.u32 %v2160, 7
        %v2162 = vsub.s32 0, %v2161
        %v2163 = vrot.slane %v2156, %v2162
        %v2164 = vsub.f32 %v2071, %v2163
        %v2165 = vsub.f32 %v2074, %v2163
        %v2166 = vsub.f32 %v2079, %v2163
        %v2167 = vsub.f32 %v2082, %v2163
        %v2168 = vsub.f32 %v2087, %v2163
        %v2169 = vsub.f32 %v2090, %v2163
        %v2170 = vsub.f32 %v2095, %v2163
        %v2171 = vsub.f32 %v2098, %v2163
        %v2172 = vsub.f32 %v2103, %v2163
        %v2173 = vsub.f32 %v2106, %v2163
        %v2174 = vsub.f32 %v2111, %v2163
        %v2175 = vsub.f32 %v2114, %v2163
        %v2176 = vsub.f32 %v2119, %v2163
        %v2177 = vsub.f32 %v2122, %v2163
        %v2178 = vsub.f32 %v2127, %v2163
        %v2179 = vsub.f32 %v2130, %v2163
        %v2180 = vmul.f32 %v2164, 1.442695
        %v2181 = vpow.pop %v2180
        %v2182 = vmul.f32 %v2165, 1.442695
        %v2183 = vpow.pop %v2182
        %v2184 = vmul.f32 %v2166, 1.442695
        %v2185 = vpow.pop %v2184
        %v2186 = vmul.f32 %v2167, 1.442695
        %v2187 = vpow.pop %v2186
        %v2188 = vmul.f32 %v2168, 1.442695
        %v2189 = vpow.pop %v2188
        %v2190 = vmul.f32 %v2169, 1.442695
        %v2191 = vpow.pop %v2190
        %v2192 = vmul.f32 %v2170, 1.442695
        %v2193 = vpow.pop %v2192
        %v2194 = vmul.f32 %v2171, 1.442695
        %v2195 = vpow.pop %v2194
        %v2196 = vmul.f32 %v2172, 1.442695
        %v2197 = vpow.pop %v2196
        %v2198 = vmul.f32 %v2173, 1.442695
        %v2199 = vpow.pop %v2198
        %v2200 = vmul.f32 %v2174, 1.442695
        %v2201 = vpow.pop %v2200
        %v2202 = vmul.f32 %v2175, 1.442695
        %v2203 = vpow.pop %v2202
        %v2204 = vmul.f32 %v2176, 1.442695
        %v2205 = vpow.pop %v2204
        %v2206 = vmul.f32 %v2177, 1.442695
        %v2207 = vpow.pop %v2206
        %v2208 = vmul.f32 %v2178, 1.442695
        %v2209 = vpow.pop %v2208
        %v2210 = vmul.f32 %v2179, 1.442695
        %v2211 = vpow.pop %v2210
        %2212 = vst [vmem:[#allocation5 + $0x3] sm:$0x1] %v2156
        %v2213 = vmul.f32 %v2159, %v2134
        %v2214 = vadd.f32 %v2181, %v2183
        %v2215 = vadd.f32 %v2214, %v2185
        %v2216 = vadd.f32 %v2215, %v2187
        %v2217 = vadd.f32 %v2216, %v2189
        %v2218 = vadd.f32 %v2217, %v2191
        %v2219 = vadd.f32 %v2218, %v2193
        %v2220 = vadd.f32 %v2219, %v2195
        %v2221 = vadd.f32 %v2220, %v2197
        %v2222 = vadd.f32 %v2221, %v2199
        %v2223 = vadd.f32 %v2222, %v2201
        %v2224 = vadd.f32 %v2223, %v2203
        %v2225 = vadd.f32 %v2224, %v2205
        %v2226 = vadd.f32 %v2225, %v2207
        %v2227 = vadd.f32 %v2226, %v2209
        %v2228 = vadd.f32 %v2227, %v2211
        %v2229 = vrot.slane %v2228, 4
        %v2230 = vadd.f32 %v2228, %v2229
        %v2231 = vrot.slane %v2230, 2
        %v2232 = vadd.f32 %v2230, %v2231
        %v2233 = vrot.slane %v2232, 1
        %v2234 = vadd.f32 %v2232, %v2233
        %v2235 = vadd.f32 %v2213, %v2234
        %2236 = vst [vmem:[#allocation6 + $0x3] sm:$0x1] %v2235
        %v2237 = vpack.c.bf16 %v2183, %v2181
        %v2238 = vpack.c.bf16 %v2187, %v2185
        %v2239 = vpack.c.bf16 %v2191, %v2189
        %v2240 = vpack.c.bf16 %v2195, %v2193
        %v2241 = vpack.c.bf16 %v2199, %v2197
        %v2242 = vpack.c.bf16 %v2203, %v2201
        %v2243 = vpack.c.bf16 %v2207, %v2205
        %v2244 = vpack.c.bf16 %v2211, %v2209
        %2245 = vmatprep.subr.bf16.mxu0 0
        %2246 = vmatpush1.bf16.msra.mxu0 %v2237
        %2247 = vmatprep.subr.bf16.mxu0 0
        %2248 = vmatpush1.bf16.msra.mxu0 %v2238
        %2249 = vmatprep.subr.bf16.mxu0 0
        %2250 = vmatpush1.bf16.msra.mxu0 %v2239
        %2251 = vmatprep.subr.bf16.mxu0 0
        %2252 = vmatpush1.bf16.msra.mxu0 %v2240
        %2253 = vmatprep.subr.bf16.mxu0 0
        %2254 = vmatpush1.bf16.msra.mxu0 %v2241
        %2255 = vmatprep.subr.bf16.mxu0 0
        %2256 = vmatpush1.bf16.msra.mxu0 %v2242
        %2257 = vmatprep.subr.bf16.mxu0 0
        %2258 = vmatpush1.bf16.msra.mxu0 %v2243
        %2259 = vmatprep.subr.bf16.mxu0 0
        %2260 = vmatpush1.bf16.msra.mxu0 %v2244
        %2261 = vmatprep.subr.bf16.mxu0 0
        %2262 = vmatpush1.bf16.msra.mxu0 0
        %2263 = vmatprep.subr.bf16.mxu0 0
        %2264 = vmatpush1.bf16.msra.mxu0 0
        %2265 = vmatprep.subr.bf16.mxu0 0
        %2266 = vmatpush1.bf16.msra.mxu0 0
        %2267 = vmatprep.subr.bf16.mxu0 0
        %2268 = vmatpush1.bf16.msra.mxu0 0
        %2269 = vmatprep.subr.bf16.mxu0 0
        %2270 = vmatpush1.bf16.msra.mxu0 0
        %2271 = vmatprep.subr.bf16.mxu0 0
        %2272 = vmatpush1.bf16.msra.mxu0 0
        %2273 = vmatprep.subr.bf16.mxu0 0
        %2274 = vmatpush1.bf16.msra.mxu0 0
        %2275 = vmatprep.subr.bf16.mxu0 0
        %2276 = vmatpush1.bf16.msra.mxu0 0
        %2277 = vmatprep.mubr.bf16.mxu0 0
        %2278 = vmatmul.mubr.bf16.gmra.mrb[0].mxu0 %v1995
        %v2279 = vpop.f32.mrb[0].mxu0
        %v2280 = vadd.f32 0.0, %v2279
        %v2281 = vpop.f32.mrb[0].mxu0
        %v2282 = vpop.f32.mrb[0].mxu0
        %v2283 = vadd.f32 0.0, %v2282
        %v2284 = vpop.f32.mrb[0].mxu0
        %2285 = vdwg.mxu0
        %s2286 = scalar_lea.vmem [#allocation7], 48
        %v2287 = vld [vmem:[%s2286] sm:$0xff]
        %v2288 = vld [vmem:[%s2286 + $0x8] sm:$0xff]
        %v2289 = vlaneseq
        %v2290 = vshrl.u32 %v2289, 7
        %v2291 = vsub.s32 0, %v2290
        %v2292 = vrot.slane %v2159, %v2291
        %v2293 = vmul.f32 %v2292, %v2287
        %v2294 = vmul.f32 %v2292, %v2288
        %v2295 = vadd.f32 %v2293, %v2280
        %v2296 = vadd.f32 %v2294, %v2283
        %2297 = vst [vmem:[%s2286] sm:$0xff] %v2295
        %2298 = vst [vmem:[%s2286 + $0x8] sm:$0xff] %v2296
        %p2299 = scmp.eq.s32.totalorder %s35, 2
        // Predicated region
        $region111: #{tpu_custom_call.1} parent=81 // pred_check
          %p2300 = pneg %p2299
        $region112: #{tpu_custom_call.1} parent=81 // pred_check_branch
          %2302 = sbr.rel (%p2300) target = $region114
        $region113: #{tpu_custom_call.1} parent=81 // pred_region
          %v2303 = vld [vmem:[#allocation6] sm:$0x1]
          %v2304 = vrcp.pop %v2303
          %v2305 = vld [vmem:[#allocation7] sm:$0xff]
          %v2306 = vld [vmem:[#allocation7 + $0x8] sm:$0xff]
          %v2307 = vlaneseq
          %v2308 = vshrl.u32 %v2307, 7
          %v2309 = vsub.s32 0, %v2308
          %v2310 = vrot.slane %v2304, %v2309
          %v2311 = vmul.f32 %v2305, %v2310
          %v2312 = vmul.f32 %v2306, %v2310
          %2313 = vst [vmem:[#allocation7] sm:$0xff] %v2311
          %2314 = vst [vmem:[#allocation7 + $0x8] sm:$0xff] %v2312
          %v2315 = vld [vmem:[#allocation6 + $0x1] sm:$0x1]
          %v2316 = vrcp.pop %v2315
          %v2317 = vld [vmem:[%s1660] sm:$0xff]
          %v2318 = vld [vmem:[%s1660 + $0x8] sm:$0xff]
          %v2319 = vlaneseq
          %v2320 = vshrl.u32 %v2319, 7
          %v2321 = vsub.s32 0, %v2320
          %v2322 = vrot.slane %v2316, %v2321
          %v2323 = vmul.f32 %v2317, %v2322
          %v2324 = vmul.f32 %v2318, %v2322
          %2325 = vst [vmem:[%s1660] sm:$0xff] %v2323
          %2326 = vst [vmem:[%s1660 + $0x8] sm:$0xff] %v2324
          %v2327 = vld [vmem:[#allocation6 + $0x2] sm:$0x1]
          %v2328 = vrcp.pop %v2327
          %v2329 = vld [vmem:[%s1973] sm:$0xff]
          %v2330 = vld [vmem:[%s1973 + $0x8] sm:$0xff]
          %v2331 = vlaneseq
          %v2332 = vshrl.u32 %v2331, 7
          %v2333 = vsub.s32 0, %v2332
          %v2334 = vrot.slane %v2328, %v2333
          %v2335 = vmul.f32 %v2329, %v2334
          %v2336 = vmul.f32 %v2330, %v2334
          %2337 = vst [vmem:[%s1973] sm:$0xff] %v2335
          %2338 = vst [vmem:[%s1973 + $0x8] sm:$0xff] %v2336
          %v2339 = vld [vmem:[#allocation6 + $0x3] sm:$0x1]
          %v2340 = vrcp.pop %v2339
          %v2341 = vld [vmem:[%s2286] sm:$0xff]
          %v2342 = vld [vmem:[%s2286 + $0x8] sm:$0xff]
          %v2343 = vlaneseq
          %v2344 = vshrl.u32 %v2343, 7
          %v2345 = vsub.s32 0, %v2344
          %v2346 = vrot.slane %v2340, %v2345
          %v2347 = vmul.f32 %v2341, %v2346
          %v2348 = vmul.f32 %v2342, %v2346
          %2349 = vst [vmem:[%s2286] sm:$0xff] %v2347
          %2350 = vst [vmem:[%s2286 + $0x8] sm:$0xff] %v2348
          %v2351 = vld [vmem:[#allocation15] sm:$0xf]
          %v2352 = vld [vmem:[#allocation15 + $0x4] sm:$0xf]
          %v2353 = vld [vmem:[#allocation15 + $0x8] sm:$0xf]
          %v2354 = vld [vmem:[#allocation15 + $0xc] sm:$0xf]
          %v2355 = vld [vmem:[#allocation15 + $0x10] sm:$0xf]
          %v2356 = vld [vmem:[#allocation15 + $0x14] sm:$0xf]
          %v2357 = vld [vmem:[#allocation15 + $0x18] sm:$0xf]
          %v2358 = vld [vmem:[#allocation15 + $0x1c] sm:$0xf]
          %v2359 = vld [vmem:[#allocation7] sm:$0xff]
          %v2360 = vld [vmem:[#allocation7 + $0x8] sm:$0xff]
          %v2361 = vld [vmem:[#allocation7 + $0x10] sm:$0xff]
          %v2362 = vld [vmem:[#allocation7 + $0x18] sm:$0xff]
          %v2363 = vld [vmem:[#allocation7 + $0x20] sm:$0xff]
          %v2364 = vld [vmem:[#allocation7 + $0x28] sm:$0xff]
          %v2365 = vld [vmem:[#allocation7 + $0x30] sm:$0xff]
          %v2366 = vld [vmem:[#allocation7 + $0x38] sm:$0xff]
          %v2367 = vpack.c.bf16 %v2360, %v2359
          %v2368 = vpack.c.bf16 %v2362, %v2361
          %v2369 = vpack.c.bf16 %v2364, %v2363
          %v2370 = vpack.c.bf16 %v2366, %v2365
          %v2371 = vld [vmem:[%s6] sm:$0xff]
          %v2372 = vld [vmem:[%s6 + $0x8] sm:$0xff]
          %v2373 = vld [vmem:[%s6 + $0x10] sm:$0xff]
          %v2374 = vld [vmem:[%s6 + $0x18] sm:$0xff]
          %v2375 = vld [vmem:[%s6 + $0x20] sm:$0xff]
          %v2376 = vld [vmem:[%s6 + $0x28] sm:$0xff]
          %v2377 = vld [vmem:[%s6 + $0x30] sm:$0xff]
          %v2378 = vld [vmem:[%s6 + $0x38] sm:$0xff]
          %2380 = vset.pattern.permute.xlu0 0
          %2381 = vperm.xlu0 %2380, %v2371
          %v2382 = vpop.permute.xlu0 %2381
          %2385 = vset.pattern.permute.xlu0 0
          %2386 = vperm.xlu0 %2385, %v2372
          %v2387 = vpop.permute.xlu0 %2386
          %2390 = vset.pattern.permute.xlu0 0
          %2391 = vperm.xlu0 %2390, %v2373
          %v2392 = vpop.permute.xlu0 %2391
          %2395 = vset.pattern.permute.xlu0 0
          %2396 = vperm.xlu0 %2395, %v2374
          %v2397 = vpop.permute.xlu0 %2396
          %2400 = vset.pattern.permute.xlu0 0
          %2401 = vperm.xlu0 %2400, %v2375
          %v2402 = vpop.permute.xlu0 %2401
          %2405 = vset.pattern.permute.xlu0 0
          %2406 = vperm.xlu0 %2405, %v2376
          %v2407 = vpop.permute.xlu0 %2406
          %2410 = vset.pattern.permute.xlu0 0
          %2411 = vperm.xlu0 %2410, %v2377
          %v2412 = vpop.permute.xlu0 %2411
          %2415 = vset.pattern.permute.xlu0 0
          %2416 = vperm.xlu0 %2415, %v2378
          %v2417 = vpop.permute.xlu0 %2416
          %v2427 = vunpack.c.l.b16 %v2351
          %v2428 = vunpack.c.l.b16 %v2352
          %v2429 = vunpack.c.l.b16 %v2353
          %v2430 = vunpack.c.l.b16 %v2354
          %v2431 = vunpack.c.l.b16 %v2355
          %v2432 = vunpack.c.l.b16 %v2356
          %v2433 = vunpack.c.l.b16 %v2357
          %v2434 = vunpack.c.l.b16 %v2358
          %v2435 = vpack.c.b16 %v2428, %v2427
          %v2436 = vpack.c.b16 %v2430, %v2429
          %v2437 = vpack.c.b16 %v2432, %v2431
          %v2438 = vpack.c.b16 %v2434, %v2433
          %vm2439 = vcmask 523264
          %v2441 = vsel %vm2439, %v2435, 0
          %v2444 = vsel %vm2439, %v2436, 0
          %v2447 = vsel %vm2439, %v2437, 0
          %v2450 = vsel %vm2439, %v2438, 0
          %2452 = vmatprep.subr.bf16.mxu0 0
          %2453 = vmatpush1.bf16.msra.mxu0 %v2367
          %2454 = vmatprep.subr.bf16.mxu0 0
          %2455 = vmatpush1.bf16.msra.mxu0 %v2368
          %2456 = vmatprep.subr.bf16.mxu0 0
          %2457 = vmatpush1.bf16.msra.mxu0 %v2369
          %2458 = vmatprep.subr.bf16.mxu0 0
          %2459 = vmatpush1.bf16.msra.mxu0 %v2370
          %2460 = vmatprep.subr.bf16.mxu0 0
          %2461 = vmatpush1.bf16.msra.mxu0 0
          %2462 = vmatprep.subr.bf16.mxu0 0
          %2463 = vmatpush1.bf16.msra.mxu0 0
          %2464 = vmatprep.subr.bf16.mxu0 0
          %2465 = vmatpush1.bf16.msra.mxu0 0
          %2466 = vmatprep.subr.bf16.mxu0 0
          %2467 = vmatpush1.bf16.msra.mxu0 0
          %2468 = vmatprep.subr.bf16.mxu0 0
          %2469 = vmatpush1.bf16.msra.mxu0 0
          %2470 = vmatprep.subr.bf16.mxu0 0
          %2471 = vmatpush1.bf16.msra.mxu0 0
          %2472 = vmatprep.subr.bf16.mxu0 0
          %2473 = vmatpush1.bf16.msra.mxu0 0
          %2474 = vmatprep.subr.bf16.mxu0 0
          %2475 = vmatpush1.bf16.msra.mxu0 0
          %2476 = vmatprep.subr.bf16.mxu0 0
          %2477 = vmatpush1.bf16.msra.mxu0 0
          %2478 = vmatprep.subr.bf16.mxu0 0
          %2479 = vmatpush1.bf16.msra.mxu0 0
          %2480 = vmatprep.subr.bf16.mxu0 0
          %2481 = vmatpush1.bf16.msra.mxu0 0
          %2482 = vmatprep.subr.bf16.mxu0 0
          %2483 = vmatpush1.bf16.msra.mxu0 0
          %2484 = vmatprep.mubr.bf16.mxu0 0
          %2485 = vmatmul.mubr.bf16.gmra.mrb[0].mxu0 %v2441
          %v2486 = vpop.f32.mrb[0].mxu0
          %v2487 = vadd.f32 %v2382, %v2486
          %v2488 = vpop.f32.mrb[0].mxu0
          %v2489 = vpop.f32.mrb[0].mxu0
          %v2490 = vadd.f32 %v2387, %v2489
          %v2491 = vpop.f32.mrb[0].mxu0
          %2492 = vmatprep.mubr.bf16.mxu0 0
          %2493 = vmatmul.mubr.bf16.gmra.mrb[0].mxu0 %v2444
          %v2494 = vpop.f32.mrb[0].mxu0
          %v2495 = vadd.f32 %v2392, %v2494
          %v2496 = vpop.f32.mrb[0].mxu0
          %v2497 = vpop.f32.mrb[0].mxu0
          %v2498 = vadd.f32 %v2397, %v2497
          %v2499 = vpop.f32.mrb[0].mxu0
          %2500 = vmatprep.mubr.bf16.mxu0 0
          %2501 = vmatmul.mubr.bf16.gmra.mrb[0].mxu0 %v2447
          %v2502 = vpop.f32.mrb[0].mxu0
          %v2503 = vadd.f32 %v2402, %v2502
          %v2504 = vpop.f32.mrb[0].mxu0
          %v2505 = vpop.f32.mrb[0].mxu0
          %v2506 = vadd.f32 %v2407, %v2505
          %v2507 = vpop.f32.mrb[0].mxu0
          %2508 = vmatprep.mubr.bf16.mxu0 0
          %2509 = vmatmul.mubr.bf16.gmra.mrb[0].mxu0 %v2450
          %v2510 = vpop.f32.mrb[0].mxu0
          %v2511 = vadd.f32 %v2412, %v2510
          %v2512 = vpop.f32.mrb[0].mxu0
          %v2513 = vpop.f32.mrb[0].mxu0
          %v2514 = vadd.f32 %v2417, %v2513
          %v2515 = vpop.f32.mrb[0].mxu0
          %2516 = vdwg.mxu0
          %2517 = vst [vmem:[%s490] sm:$0xff] %v2487
          %2518 = vst [vmem:[%s490 + $0x8] sm:$0xff] %v2490
          %2519 = vst [vmem:[%s490 + $0x10] sm:$0xff] %v2495
          %2520 = vst [vmem:[%s490 + $0x18] sm:$0xff] %v2498
          %2521 = vst [vmem:[%s490 + $0x20] sm:$0xff] %v2503
          %2522 = vst [vmem:[%s490 + $0x28] sm:$0xff] %v2506
          %2523 = vst [vmem:[%s490 + $0x30] sm:$0xff] %v2511
          %2524 = vst [vmem:[%s490 + $0x38] sm:$0xff] %v2514
        $region114: #{tpu_custom_call.1} parent=81 // pred_fallthru
          _
        %s2525 = sand.u32 %s233, 1
        %s2526 = scalar_lea.sflag [#allocation11], %s2525
        %s2527 = sand.u32 %s233, 1
        %s2528 = smul.addr %s2527, 64
        %s2529 = scalar_lea.vmem [#allocation17], %s2528
        // Predicated region
        $region115: #{tpu_custom_call.1} parent=81 // pred_check
          %p2530 = pneg %p243
        $region116: #{tpu_custom_call.1} parent=81 // pred_check_branch
          %2532 = sbr.rel (%p2530) target = $region118
        $region117: #{tpu_custom_call.1} parent=81 // pred_region
          %s2534 = ssub.s32 1024, 1024
          %2535 = vsyncadd %s2526, %s2534
          %s2536 = smul.addr %s33, 16
          %s2537 = sadd.s32 %s34, %s2536
          %s2538 = smul.addr %s2537, 128
          %s2539 = scalar_lea.hbm %s7, %s2538
          %s2540 = sshll.u32 %s2529, 4
          %s2541 = int_to_ptr.vmem [resolvable:$true] %s2540
          %2546 = dma.vmem_to_hbm [thread:$0]  %s2541, 1024, %s2539, %s2526, 128, 256, 8
        $region118: #{tpu_custom_call.1} parent=81 // pred_fallthru
          _
      $region82: #{tpu_custom_call.1} parent=5 // pred_fallthru
        _
      %p2547 = scmp.le.s32.totalorder 2, %s23
      // Predicated region
      $region119: #{tpu_custom_call.1} parent=5 // pred_check
        %p2548 = pneg %p2547
      $region120: #{tpu_custom_call.1} parent=5 // pred_check_branch
        %2550 = sbr.rel (%p2548) target = $region122
      $region121: #{tpu_custom_call.1} parent=5 // pred_region
        %s2551 = ssub.s32 %s23, 2
        // Predicated region
        $region123: #{tpu_custom_call.1} parent=121 // pred_check
          %p2552 = pneg %p249
        $region124: #{tpu_custom_call.1} parent=121 // pred_check_branch
          %2554 = sbr.rel (%p2552) target = $region126
        $region125: #{tpu_custom_call.1} parent=121 // pred_region
          %s2555 = sand.u32 %s234, 1
          %s2556 = scalar_lea.sflag [#allocation11], %s2555
          %s2557 = sand.u32 %s234, 1
          %s2558 = smul.addr %s2557, 64
          %s2559 = scalar_lea.vmem [#allocation17], %s2558
          %2560 = dma.done %s2556, 1024
        $region126: #{tpu_custom_call.1} parent=121 // pred_fallthru
          _
      $region122: #{tpu_custom_call.1} parent=5 // pred_fallthru
        _
    $region6: #{tpu_custom_call.1} parent=1 // loop_footer
      %s27 = sadd.s32 1, %s23
    $region7: #{tpu_custom_call.1} parent=1 // loop_footer_branch
      %22 = sbr.rel target = $region3
    $region8: #{tpu_custom_call.1} parent=1 // loop_exit
      _
    %2561 = vsyncpa [#allocation10], 1
    %s2562 = scalar_lea.sflag [#allocation10], 1
    %2563 = vsyncpa %s2562, 1
    %2564 = vsyncpa [#allocation13], 1
    %s2565 = scalar_lea.sflag [#allocation13], 1
    %2566 = vsyncpa %s2565, 1
    %2567 = vsyncpa [#allocation16], 1
    %2568 = vsyncpa [#allocation11], 1
    %s2569 = scalar_lea.sflag [#allocation11], 1
    %2570 = vsyncpa %s2569, 1

</llo_original>
